<compile_context>
chip_gen: v5e
topology: v5e:2x2
jax: 0.10.0
libtpu: 0.0.40
codegen_flags: <defaults>
</compile_context>

<pallas_src>
import functools

import numpy as np

import jax
import jax.numpy as jnp
from jax import lax
from jax.experimental import pallas as pl
from jax.experimental.pallas import tpu as pltpu

# Placeholder label lists (only their lengths matter, as in the original code).
l11_4_one = list(range(6))
l11_4_two = list(range(4))
l11_4_three = list(range(5))
HEAD_CLASSES = (len(l11_4_one), len(l11_4_two), len(l11_4_three))
NUM_HEADS = len(HEAD_CLASSES)

C_IN = 3      # RGB input
C1 = 8        # conv1 output channels per head (assumed LeafNet)
C2 = 16       # conv2 output channels per head (assumed LeafNet)
NC_PAD = 128  # per-head logits live in a lane-dense 128-wide output slab


def _ceil_to(x, m):
    return ((x + m - 1) // m) * m


# ----------------------------------------------------------------------------
# Fused Pallas kernel: whole LeavesGPTNet forward in one invocation.
# ----------------------------------------------------------------------------
def _fused_leaves_kernel(x_ref, w1_ref, b1_ref, w2_ref, b2_ref, wf_ref, bf_ref,
                         o_ref, *, n, h):
    """conv1+ReLU -> conv2+ReLU -> GAP -> FC for all 3 heads.

    All activations are lane-dense rows: row index = image*h + y,
    lane index = x*channels_per_pixel + channel (channels head-stacked).
    Each 3x3/pad-1 conv is ONE MXU matmul against a host-built dy-stacked,
    x-banded weight; the kernel only builds the [y-1 | y | y+1] row blocks.
    """
    f32, bf16 = jnp.float32, jnp.bfloat16

    def with_row_taps(a):
        # a: (n*h, L) lane-dense rows.  Returns (n*h, 3*L): for output row y
        # the input rows y-1 / y / y+1 (zero rows at image boundaries == the
        # conv's zero padding in y), laid out as K blocks [dy=0 | dy=1 | dy=2].
        L = a.shape[-1]
        a3 = a.reshape(n, h, L)
        zrow = jnp.zeros((n, 1, L), a.dtype)
        up = jnp.concatenate([zrow, a3[:, :h - 1, :]], axis=1)   # row y-1
        dn = jnp.concatenate([a3[:, 1:, :], zrow], axis=1)       # row y+1
        return jnp.concatenate([up, a3, dn], axis=2).reshape(n * h, 3 * L)

    # ---- conv1 (3x3, pad=1) + bias + ReLU for ALL heads: one MXU matmul.
    a1 = jnp.dot(with_row_taps(x_ref[...]), w1_ref[...],
                 preferred_element_type=f32) + b1_ref[...]
    h1 = jnp.maximum(a1, 0.0).astype(bf16)           # (n*h, w*24), single cast

    # ---- conv2 (3x3, pad=1) + bias + ReLU for ALL heads: one MXU matmul.
    a2 = jnp.dot(with_row_taps(h1), w2_ref[...],
                 preferred_element_type=f32) + b2_ref[...]
    h2 = jnp.maximum(a2, 0.0)                        # (n*h, w*48) float32

    # ---- global average pool: f32 sum over y here; the sum over x and the
    #      1/(h*w) scale are folded into the FC weight on the host.
    pooled = jnp.sum(h2.reshape(n, h, -1), axis=1)   # (n, w*48)

    # ---- fully-connected epilogue, lane-dense (3*128)-wide output.
    logits = jnp.dot(pooled.astype(bf16), wf_ref[...],
                     preferred_element_type=f32) + bf_ref[...]
    o_ref[...] = logits                              # (n, 3*128) float32


# ----------------------------------------------------------------------------
# Host-side weight packing (banded conv weights, block-diagonal FC).
# ----------------------------------------------------------------------------
def _banded_conv_weight(w_heads, width, shared_input):
    """Fold a 3x3 / pad-1 conv for all heads into 3 dy-indexed banded weights.

    w_heads[i]: (3, 3, cin, cout) in (kh, kw, cin, cout) order with PyTorch
    cross-correlation semantics.  NOTE: a real torch conv weight of shape
    (cout, cin, kh, kw) must be permuted to (kh, kw, cin, cout) before packing.

    Returns float32 (3, width*Cin_all, width*Cout_all):
      row = x_in*Cin_all + (0 if shared_input else head*cin) + ci
      col = x_out*Cout_all + head*cout + co
      val = w_heads[head][dy, x_in - x_out + 1, ci, co]   (zero outside band)
    Missing band entries implement the conv's zero padding along x.
    """
    cin, cout = w_heads[0].shape[2], w_heads[0].shape[3]
    nh = len(w_heads)
    cin_all = cin if shared_input else nh * cin
    cout_all = nh * cout
    W = np.zeros((3, width * cin_all, width * cout_all), np.float32)
    for dy in range(3):
        for x_out in range(width):
            for dx in range(3):
                x_in = x_out + dx - 1
                if not 0 <= x_in < width:
                    continue
                for hd, wk in enumerate(w_heads):
                    r0 = x_in * cin_all + (0 if shared_input else hd * cin)
                    c0 = x_out * cout_all + hd * cout
                    W[dy, r0:r0 + cin, c0:c0 + cout] = wk[dy, dx]
    return W


def init_leafnet_heads(key, head_classes):
    """Random per-head LeafNet parameters (HWIO conv weights, f32)."""
    heads = []
    for hk, nc in zip(jax.random.split(key, len(head_classes)), head_classes):
        k1, k2, k3, k4, k5, k6 = jax.random.split(hk, 6)
        heads.append(dict(
            w1=0.1 * jax.random.normal(k1, (3, 3, C_IN, C1), jnp.float32),
            b1=0.05 * jax.random.normal(k2, (C1,), jnp.float32),
            w2=0.1 * jax.random.normal(k3, (3, 3, C1, C2), jnp.float32),
            b2=0.05 * jax.random.normal(k4, (C2,), jnp.float32),
            wf=0.1 * jax.random.normal(k5, (C2, nc), jnp.float32),
            bf=0.05 * jax.random.normal(k6, (nc,), jnp.float32),
        ))
    return heads


def pack_fused_params(heads, h, w):
    """Pack per-head weights into the fused kernel's matmul operands."""
    nh = len(heads)
    c1_all, c2_all = nh * C1, nh * C2
    in_lane = _ceil_to(w * C_IN, 128)   # pad input rows to 128-aligned lanes

    # conv1: shared RGB input channels, head-stacked output channels.
    w1_3d = _banded_conv_weight([np.asarray(p["w1"]) for p in heads], w,
                                shared_input=True)          # (3, w*3, w*24)
    w1 = np.pad(w1_3d, ((0, 0), (0, in_lane - w * C_IN), (0, 0)))
    w1 = w1.reshape(3 * in_lane, w * c1_all)

    # conv2: block-diagonal across heads in both input and output channels.
    w2 = _banded_conv_weight([np.asarray(p["w2"]) for p in heads], w,
                             shared_input=False)
    w2 = w2.reshape(3 * w * c1_all, w * c2_all)

    b1 = np.tile(np.concatenate([np.asarray(p["b1"]) for p in heads]), w)[None]
    b2 = np.tile(np.concatenate([np.asarray(p["b2"]) for p in heads]), w)[None]

    # FC: fold the GAP 1/(h*w) scale and the sum over x into the weight;
    # each head's logits occupy a lane-dense 128-wide slab of the output.
    wf = np.zeros((w * c2_all, nh * NC_PAD), np.float32)
    bf = np.zeros((1, nh * NC_PAD), np.float32)
    for hd, p in enumerate(heads):
        wfh = np.asarray(p["wf"]) / float(h * w)
        nc = wfh.shape[1]
        for x in range(w):
            r0 = x * c2_all + hd * C2
            wf[r0:r0 + C2, hd * NC_PAD:hd * NC_PAD + nc] = wfh
        bf[0, hd * NC_PAD:hd * NC_PAD + nc] = np.asarray(p["bf"])

    return {
        "w1": jnp.asarray(w1, jnp.bfloat16),   # (3*in_lane, w*24)
        "b1": jnp.asarray(b1, jnp.float32),    # (1, w*24)
        "w2": jnp.asarray(w2, jnp.bfloat16),   # (3*w*24, w*48)
        "b2": jnp.asarray(b2, jnp.float32),    # (1, w*48)
        "wf": jnp.asarray(wf, jnp.bfloat16),   # (w*48, 3*128)
        "bf": jnp.asarray(bf, jnp.float32),    # (1, 3*128)
    }


# ----------------------------------------------------------------------------
# Forward pass wrapper
# ----------------------------------------------------------------------------
def leaves_gpt_net_forward(x_nchw, packed):
    n, c, h, w = x_nchw.shape
    in_lane = packed["w1"].shape[0] // 3
    k1, n1 = packed["w1"].shape
    k2, n2 = packed["w2"].shape
    kf, nf = packed["wf"].shape
    assert k2 == 3 * n1 and kf == n2, "packed params inconsistent with model"

    # NCHW -> lane-dense rows: row = image*h + y, lane = x*c + channel.
    x_ld = jnp.transpose(x_nchw, (0, 2, 3, 1)).reshape(n * h, w * c)
    if in_lane != w * c:
        x_ld = jnp.pad(x_ld, ((0, 0), (0, in_lane - w * c)))
    x_ld = x_ld.astype(jnp.bfloat16)

    kernel = functools.partial(_fused_leaves_kernel, n=n, h=h)

    flops = int(2 * (n * h) * (k1 * n1 + k2 * n2) + 2 * n * kf * nf)
    bytes_accessed = int(
        x_ld.size * 2
        + sum(int(v.size) * v.dtype.itemsize for v in packed.values())
        + n * nf * 4)

    out = pl.pallas_call(
        kernel,
        out_shape=jax.ShapeDtypeStruct((n, nf), jnp.float32),
        grid=(1,),
        in_specs=[
            pl.BlockSpec((n * h, in_lane), lambda i: (0, 0)),   # input rows
            pl.BlockSpec((k1, n1), lambda i: (0, 0)),           # conv1 weight
            pl.BlockSpec((1, n1), lambda i: (0, 0)),            # conv1 bias
            pl.BlockSpec((k2, n2), lambda i: (0, 0)),           # conv2 weight
            pl.BlockSpec((1, n2), lambda i: (0, 0)),            # conv2 bias
            pl.BlockSpec((kf, nf), lambda i: (0, 0)),           # fc weight
            pl.BlockSpec((1, nf), lambda i: (0, 0)),            # fc bias
        ],
        out_specs=pl.BlockSpec((n, nf), lambda i: (0, 0)),
        compiler_params=pltpu.CompilerParams(
            dimension_semantics=("arbitrary",),
            vmem_limit_bytes=32 * 1024 * 1024),
        cost_estimate=pl.CostEstimate(flops=flops, transcendentals=0,
                                      bytes_accessed=bytes_accessed),
    )(x_ld, packed["w1"], packed["b1"], packed["w2"], packed["b2"],
      packed["wf"], packed["bf"])

    # Slice each head's real (unpadded) logits out of its 128-lane slab.
    return tuple(out[:, i * NC_PAD:i * NC_PAD + nc]
                 for i, nc in enumerate(HEAD_CLASSES))


# ----------------------------------------------------------------------------
# Pure-JAX (XLA) reference of the assumed LeafNet heads, for validation.
# ----------------------------------------------------------------------------
def _reference_forward(x_nchw, heads):
    x = jnp.transpose(x_nchw, (0, 2, 3, 1)).astype(jnp.float32)
    dn = ("NHWC", "HWIO", "NHWC")
    outs = []
    for p in heads:
        h1 = jax.nn.relu(lax.conv_general_dilated(
            x, p["w1"], (1, 1), "SAME", dimension_numbers=dn) + p["b1"])
        h2 = jax.nn.relu(lax.conv_general_dilated(
            h1, p["w2"], (1, 1), "SAME", dimension_numbers=dn) + p["b2"])
        pooled = h2.mean(axis=(1, 2))
        outs.append(pooled @ p["wf"] + p["bf"])
    return tuple(outs)


# ----------------------------------------------------------------------------
if __name__ == "__main__":
    key = jax.random.PRNGKey(0)
    kx, kp = jax.random.split(key)

    # PyTorch-style NCHW input: batch=2, channels=3 (RGB), spatial=16x16.
    N, H, W = 2, 16, 16
    x = jax.random.normal(kx, (N, C_IN, H, W), jnp.float32)

    heads = init_leafnet_heads(kp, HEAD_CLASSES)
    packed = pack_fused_params(heads, H, W)

    fwd = jax.jit(leaves_gpt_net_forward)
    out1, out2, out3 = fwd(x, packed)
    jax.block_until_ready((out1, out2, out3))

    assert out1.shape == (N, len(l11_4_one))
    assert out2.shape == (N, len(l11_4_two))
    assert out3.shape == (N, len(l11_4_three))

    # Validate against the f32 XLA reference (bf16 MXU feed => loose tolerance).
    refs = _reference_forward(x, heads)
    for o, r in zip((out1, out2, out3), refs):
        err = float(jnp.max(jnp.abs(o - r)))
        assert err < 5e-2, f"kernel/reference mismatch: max abs err {err}"

    print("KERNEL_OK")
</pallas_src>

<mosaic_0001>
module attributes {stable_mosaic.version = 11 : i64} {
  func.func @_fused_leaves_kernel(%arg0: i32, %arg1: memref<32x128xbf16, #tpu.memory_space<vmem>>, %arg2: memref<384x384xbf16, #tpu.memory_space<vmem>>, %arg3: memref<1x384xf32, #tpu.memory_space<vmem>>, %arg4: memref<1152x768xbf16, #tpu.memory_space<vmem>>, %arg5: memref<1x768xf32, #tpu.memory_space<vmem>>, %arg6: memref<768x384xbf16, #tpu.memory_space<vmem>>, %arg7: memref<1x384xf32, #tpu.memory_space<vmem>>, %arg8: memref<2x384xf32, #tpu.memory_space<vmem>>) attributes {dimension_semantics = [#tpu.dimension_semantics<arbitrary>], iteration_bounds = array<i64: 1>, scalar_prefetch = 0 : i64, scratch_operands = 0 : i64, tpu.core_type = #tpu.core_type<tc>, window_params = [{pipeline_mode = #tpu.pipeline_mode<synchronous>, transform_indices = @transform_0, window_bounds = array<i64: 32, 128>}, {pipeline_mode = #tpu.pipeline_mode<synchronous>, transform_indices = @transform_1, window_bounds = array<i64: 384, 384>}, {pipeline_mode = #tpu.pipeline_mode<synchronous>, transform_indices = @transform_2, window_bounds = array<i64: 1, 384>}, {pipeline_mode = #tpu.pipeline_mode<synchronous>, transform_indices = @transform_3, window_bounds = array<i64: 1152, 768>}, {pipeline_mode = #tpu.pipeline_mode<synchronous>, transform_indices = @transform_4, window_bounds = array<i64: 1, 768>}, {pipeline_mode = #tpu.pipeline_mode<synchronous>, transform_indices = @transform_5, window_bounds = array<i64: 768, 384>}, {pipeline_mode = #tpu.pipeline_mode<synchronous>, transform_indices = @transform_6, window_bounds = array<i64: 1, 384>}, {pipeline_mode = #tpu.pipeline_mode<synchronous>, transform_indices = @transform_7, window_bounds = array<i64: 2, 384>}]} {
    %c0 = arith.constant 0 : index
    %c0_0 = arith.constant 0 : index
    %0 = vector.load %arg1[%c0, %c0_0] : memref<32x128xbf16, #tpu.memory_space<vmem>>, vector<32x128xbf16>
    %1 = vector.shape_cast %0 : vector<32x128xbf16> to vector<2x16x128xbf16>
    %cst = arith.constant 0.000000e+00 : bf16
    %2 = vector.broadcast %cst : bf16 to vector<2x1x128xbf16>
    %3 = vector.extract_strided_slice %1 {offsets = [0, 0, 0], sizes = [2, 15, 128], strides = [1, 1, 1]} : vector<2x16x128xbf16> to vector<2x15x128xbf16>
    %4 = tpu.concatenate %2, %3 in 1 : vector<2x1x128xbf16>, vector<2x15x128xbf16> -> vector<2x16x128xbf16>
    %5 = vector.extract_strided_slice %1 {offsets = [0, 1, 0], sizes = [2, 15, 128], strides = [1, 1, 1]} : vector<2x16x128xbf16> to vector<2x15x128xbf16>
    %6 = tpu.concatenate %5, %2 in 1 : vector<2x15x128xbf16>, vector<2x1x128xbf16> -> vector<2x16x128xbf16>
    %7 = tpu.concatenate %4, %1, %6 in 2 : vector<2x16x128xbf16>, vector<2x16x128xbf16>, vector<2x16x128xbf16> -> vector<2x16x384xbf16>
    %8 = vector.shape_cast %7 : vector<2x16x384xbf16> to vector<32x384xbf16>
    %c0_1 = arith.constant 0 : index
    %c0_2 = arith.constant 0 : index
    %9 = vector.load %arg2[%c0_1, %c0_2] : memref<384x384xbf16, #tpu.memory_space<vmem>>, vector<384x384xbf16>
    %cst_3 = arith.constant dense<0.000000e+00> : vector<32x384xf32>
    %10 = tpu.matmul %8, %9, %cst_3 {dimension_numbers = #tpu.dot_dimension_numbers<[1], [0], [0], [1], [0, 0, 1, 1], [], []>} : vector<32x384xbf16>, vector<384x384xbf16>, vector<32x384xf32> -> vector<32x384xf32>
    %c0_4 = arith.constant 0 : index
    %c0_5 = arith.constant 0 : index
    %11 = vector.load %arg3[%c0_4, %c0_5] : memref<1x384xf32, #tpu.memory_space<vmem>>, vector<1x384xf32>
    %12 = vector.broadcast %11 : vector<1x384xf32> to vector<32x384xf32>
    %13 = arith.addf %10, %12 : vector<32x384xf32>
    %cst_6 = arith.constant 0.000000e+00 : f32
    %14 = vector.broadcast %cst_6 : f32 to vector<32x384xf32>
    %15 = arith.maximumf %13, %14 : vector<32x384xf32>
    %16 = arith.truncf %15 : vector<32x384xf32> to vector<32x384xbf16>
    %17 = vector.shape_cast %16 : vector<32x384xbf16> to vector<2x16x384xbf16>
    %cst_7 = arith.constant 0.000000e+00 : bf16
    %18 = vector.broadcast %cst_7 : bf16 to vector<2x1x384xbf16>
    %19 = vector.extract_strided_slice %17 {offsets = [0, 0, 0], sizes = [2, 15, 384], strides = [1, 1, 1]} : vector<2x16x384xbf16> to vector<2x15x384xbf16>
    %20 = tpu.concatenate %18, %19 in 1 : vector<2x1x384xbf16>, vector<2x15x384xbf16> -> vector<2x16x384xbf16>
    %21 = vector.extract_strided_slice %17 {offsets = [0, 1, 0], sizes = [2, 15, 384], strides = [1, 1, 1]} : vector<2x16x384xbf16> to vector<2x15x384xbf16>
    %22 = tpu.concatenate %21, %18 in 1 : vector<2x15x384xbf16>, vector<2x1x384xbf16> -> vector<2x16x384xbf16>
    %23 = tpu.concatenate %20, %17, %22 in 2 : vector<2x16x384xbf16>, vector<2x16x384xbf16>, vector<2x16x384xbf16> -> vector<2x16x1152xbf16>
    %24 = vector.shape_cast %23 : vector<2x16x1152xbf16> to vector<32x1152xbf16>
    %c0_8 = arith.constant 0 : index
    %c0_9 = arith.constant 0 : index
    %25 = vector.load %arg4[%c0_8, %c0_9] : memref<1152x768xbf16, #tpu.memory_space<vmem>>, vector<1152x768xbf16>
    %cst_10 = arith.constant dense<0.000000e+00> : vector<32x768xf32>
    %26 = tpu.matmul %24, %25, %cst_10 {dimension_numbers = #tpu.dot_dimension_numbers<[1], [0], [0], [1], [0, 0, 1, 1], [], []>} : vector<32x1152xbf16>, vector<1152x768xbf16>, vector<32x768xf32> -> vector<32x768xf32>
    %c0_11 = arith.constant 0 : index
    %c0_12 = arith.constant 0 : index
    %27 = vector.load %arg5[%c0_11, %c0_12] : memref<1x768xf32, #tpu.memory_space<vmem>>, vector<1x768xf32>
    %28 = vector.broadcast %27 : vector<1x768xf32> to vector<32x768xf32>
    %29 = arith.addf %26, %28 : vector<32x768xf32>
    %cst_13 = arith.constant 0.000000e+00 : f32
    %30 = vector.broadcast %cst_13 : f32 to vector<32x768xf32>
    %31 = arith.maximumf %29, %30 : vector<32x768xf32>
    %32 = vector.shape_cast %31 : vector<32x768xf32> to vector<2x16x768xf32>
    %cst_14 = arith.constant dense<0.000000e+00> : vector<2x768xf32>
    %33 = vector.multi_reduction <add>, %32, %cst_14 [1] : vector<2x16x768xf32> to vector<2x768xf32>
    %34 = arith.truncf %33 : vector<2x768xf32> to vector<2x768xbf16>
    %c0_15 = arith.constant 0 : index
    %c0_16 = arith.constant 0 : index
    %35 = vector.load %arg6[%c0_15, %c0_16] : memref<768x384xbf16, #tpu.memory_space<vmem>>, vector<768x384xbf16>
    %cst_17 = arith.constant dense<0.000000e+00> : vector<2x384xf32>
    %36 = tpu.matmul %34, %35, %cst_17 {dimension_numbers = #tpu.dot_dimension_numbers<[1], [0], [0], [1], [0, 0, 1, 1], [], []>} : vector<2x768xbf16>, vector<768x384xbf16>, vector<2x384xf32> -> vector<2x384xf32>
    %c0_18 = arith.constant 0 : index
    %c0_19 = arith.constant 0 : index
    %37 = vector.load %arg7[%c0_18, %c0_19] : memref<1x384xf32, #tpu.memory_space<vmem>>, vector<1x384xf32>
    %38 = vector.broadcast %37 : vector<1x384xf32> to vector<2x384xf32>
    %39 = arith.addf %36, %38 : vector<2x384xf32>
    %c0_20 = arith.constant 0 : index
    %c0_21 = arith.constant 0 : index
    %40 = vector.load %arg8[%c0_20, %c0_21] : memref<2x384xf32, #tpu.memory_space<vmem>>, vector<2x384xf32>
    tpu.vector_store %arg8[%c0_20, %c0_21], %39 {strides = array<i32>} : memref<2x384xf32, #tpu.memory_space<vmem>>, vector<2x384xf32>,
    return
  }
  func.func @transform_0(%arg0: i32) -> (i32, i32) {
    %c0_i32 = arith.constant 0 : i32
    %c0_i32_0 = arith.constant 0 : i32
    %c0_i32_1 = arith.constant 0 : i32
    return %c0_i32, %c0_i32_0 : i32, i32
  }
  func.func @transform_1(%arg0: i32) -> (i32, i32) {
    %c0_i32 = arith.constant 0 : i32
    %c0_i32_0 = arith.constant 0 : i32
    %c0_i32_1 = arith.constant 0 : i32
    return %c0_i32, %c0_i32_0 : i32, i32
  }
  func.func @transform_2(%arg0: i32) -> (i32, i32) {
    %c0_i32 = arith.constant 0 : i32
    %c0_i32_0 = arith.constant 0 : i32
    %c0_i32_1 = arith.constant 0 : i32
    return %c0_i32, %c0_i32_0 : i32, i32
  }
  func.func @transform_3(%arg0: i32) -> (i32, i32) {
    %c0_i32 = arith.constant 0 : i32
    %c0_i32_0 = arith.constant 0 : i32
    %c0_i32_1 = arith.constant 0 : i32
    return %c0_i32, %c0_i32_0 : i32, i32
  }
  func.func @transform_4(%arg0: i32) -> (i32, i32) {
    %c0_i32 = arith.constant 0 : i32
    %c0_i32_0 = arith.constant 0 : i32
    %c0_i32_1 = arith.constant 0 : i32
    return %c0_i32, %c0_i32_0 : i32, i32
  }
  func.func @transform_5(%arg0: i32) -> (i32, i32) {
    %c0_i32 = arith.constant 0 : i32
    %c0_i32_0 = arith.constant 0 : i32
    %c0_i32_1 = arith.constant 0 : i32
    return %c0_i32, %c0_i32_0 : i32, i32
  }
  func.func @transform_6(%arg0: i32) -> (i32, i32) {
    %c0_i32 = arith.constant 0 : i32
    %c0_i32_0 = arith.constant 0 : i32
    %c0_i32_1 = arith.constant 0 : i32
    return %c0_i32, %c0_i32_0 : i32, i32
  }
  func.func @transform_7(%arg0: i32) -> (i32, i32) {
    %c0_i32 = arith.constant 0 : i32
    %c0_i32_0 = arith.constant 0 : i32
    %c0_i32_1 = arith.constant 0 : i32
    return %c0_i32, %c0_i32_0 : i32, i32
  }
}

</mosaic_0001>

<llo_original>
// kernel: leaves_gpt_net_forward.1
$region0: #{leaves_gpt_net_forward.1}
  #allocation0 [shape = 'u32[]', space=smem, size = 0x4, offset = 0x4, fixed_abs, tag = 'smem constant byte address 0x4 - core index']
  #allocation1 [shape = 'u32[72,128]{1,0:T(1,128)}', space=vmem, size = 0x9000, scoped, tag = 'internal scratch']
  %s0 = inlined_call_operand.vmem [shape: bf16[32,128], index: 0, kind: input, shape index: {}]
  %s1 = inlined_call_operand.hbm [shape: bf16[384,384], index: 1, kind: input, shape index: {}]
  %s2 = inlined_call_operand.hbm [shape: f32[1,384], index: 2, kind: input, shape index: {}]
  %s3 = inlined_call_operand.hbm [shape: bf16[1152,768], index: 3, kind: input, shape index: {}]
  %s4 = inlined_call_operand.hbm [shape: f32[1,768], index: 4, kind: input, shape index: {}]
  %s5 = inlined_call_operand.hbm [shape: bf16[768,384], index: 5, kind: input, shape index: {}]
  %s6 = inlined_call_operand.hbm [shape: f32[1,384], index: 6, kind: input, shape index: {}]
  %s7 = inlined_call_operand.vmem [shape: f32[2,384], index: 7, kind: output, shape index: {}]
  %s8 = sld [smem:[#allocation0]]
  $region62: #{leaves_gpt_net_forward.1} parent=0
    _
  %s10 = ssub.s32 1, %s8
  %s11 = scalar_select 0, %s10, %s8
  $region1: #{leaves_gpt_net_forward.1} parent=0
    #allocation2 [shape = 'u8[294912]{0}', space=vmem, size = 0x48000, scoped, tag = 'input window, operand 1, single buffered']
    #allocation3 [shape = 's32[1]{0}', space=sflag, size = 0x4, scoped, tag = 'scoped memory for leaves_gpt_net_forward.1']
    #allocation4 [shape = 'u8[1536]{0}', space=vmem, size = 0x800, scoped, tag = 'input window, operand 2, single buffered']
    #allocation5 [shape = 's32[1]{0}', space=sflag, size = 0x4, scoped, tag = 'scoped memory for leaves_gpt_net_forward.1']
    #allocation6 [shape = 'u8[1769472]{0}', space=vmem, size = 0x1b0000, scoped, tag = 'input window, operand 3, single buffered']
    #allocation7 [shape = 'u8[3072]{0}', space=vmem, size = 0xc00, scoped, tag = 'input window, operand 4, single buffered']
    #allocation8 [shape = 's32[1]{0}', space=sflag, size = 0x4, scoped, tag = 'scoped memory for leaves_gpt_net_forward.1']
    #allocation9 [shape = 'u8[589824]{0}', space=vmem, size = 0x90000, scoped, tag = 'input window, operand 5, single buffered']
    #allocation10 [shape = 'u8[1536]{0}', space=vmem, size = 0x800, scoped, tag = 'input window, operand 6, single buffered']
    #allocation11 [shape = 's32[1]{0}', space=sflag, size = 0x4, scoped, tag = 'scoped memory for leaves_gpt_net_forward.1']
    %12 = vsyncpa [#allocation3], 0
    %13 = vsyncpa [#allocation5], 0
    %14 = vsyncpa [#allocation8], 0
    %15 = vsyncpa [#allocation11], 0
    // Predicated region
    $region2: #{leaves_gpt_net_forward.1} parent=1 // pred_check
      _
    $region3: #{leaves_gpt_net_forward.1} parent=1 // pred_check_branch
      %17 = sbr.rel (0) target = $region5
    $region4: #{leaves_gpt_net_forward.1} parent=1 // pred_region
      _
    $region5: #{leaves_gpt_net_forward.1} parent=1 // pred_fallthru
      _
    // Predicated region
    $region6: #{leaves_gpt_net_forward.1} parent=1 // pred_check
      _
    $region7: #{leaves_gpt_net_forward.1} parent=1 // pred_check_branch
      %19 = sbr.rel (0) target = $region9
    $region8: #{leaves_gpt_net_forward.1} parent=1 // pred_region
      %21 = vsyncadd [#allocation3], 0
      %s22 = sshll.u32 %s1, 4
      %s23 = int_to_ptr.hbm [resolvable:$true] %s22
      %s24 = sshll.u32 [#allocation2], 4
      %s25 = int_to_ptr.vmem [resolvable:$true] %s24
      %30 = dma.hbm_to_vmem [thread:$0]  %s23, 9216, %s25, [#allocation3], 192, 192, 12
    $region9: #{leaves_gpt_net_forward.1} parent=1 // pred_fallthru
      _
    // Predicated region
    $region10: #{leaves_gpt_net_forward.1} parent=1 // pred_check
      _
    $region11: #{leaves_gpt_net_forward.1} parent=1 // pred_check_branch
      %32 = sbr.rel (0) target = $region13
    $region12: #{leaves_gpt_net_forward.1} parent=1 // pred_region
      %34 = vsyncadd [#allocation5], 0
      %s36 = sshll.u32 %s2, 4
      %s37 = int_to_ptr.hbm [resolvable:$true] %s36
      %s38 = sshll.u32 [#allocation4], 4
      %s39 = int_to_ptr.vmem [resolvable:$true] %s38
      %41 = dma.hbm_to_vmem [thread:$0]  %s37, 48, %s39, [#allocation5]
    $region13: #{leaves_gpt_net_forward.1} parent=1 // pred_fallthru
      _
    // Predicated region
    $region14: #{leaves_gpt_net_forward.1} parent=1 // pred_check
      _
    $region15: #{leaves_gpt_net_forward.1} parent=1 // pred_check_branch
      %43 = sbr.rel (0) target = $region17
    $region16: #{leaves_gpt_net_forward.1} parent=1 // pred_region
      %45 = vsyncadd [#allocation5], 0
      %s46 = sshll.u32 %s3, 4
      %s47 = int_to_ptr.hbm [resolvable:$true] %s46
      %s48 = sshll.u32 [#allocation6], 4
      %s49 = int_to_ptr.vmem [resolvable:$true] %s48
      %54 = dma.hbm_to_vmem [thread:$0]  %s47, 55296, %s49, [#allocation5], 384, 384, 24
    $region17: #{leaves_gpt_net_forward.1} parent=1 // pred_fallthru
      _
    // Predicated region
    $region18: #{leaves_gpt_net_forward.1} parent=1 // pred_check
      _
    $region19: #{leaves_gpt_net_forward.1} parent=1 // pred_check_branch
      %56 = sbr.rel (0) target = $region21
    $region20: #{leaves_gpt_net_forward.1} parent=1 // pred_region
      %58 = vsyncadd [#allocation8], 0
      %s60 = sshll.u32 %s4, 4
      %s61 = int_to_ptr.hbm [resolvable:$true] %s60
      %s62 = sshll.u32 [#allocation7], 4
      %s63 = int_to_ptr.vmem [resolvable:$true] %s62
      %65 = dma.hbm_to_vmem [thread:$0]  %s61, 96, %s63, [#allocation8]
    $region21: #{leaves_gpt_net_forward.1} parent=1 // pred_fallthru
      _
    // Predicated region
    $region22: #{leaves_gpt_net_forward.1} parent=1 // pred_check
      _
    $region23: #{leaves_gpt_net_forward.1} parent=1 // pred_check_branch
      %67 = sbr.rel (0) target = $region25
    $region24: #{leaves_gpt_net_forward.1} parent=1 // pred_region
      %69 = vsyncadd [#allocation8], 0
      %s70 = sshll.u32 %s5, 4
      %s71 = int_to_ptr.hbm [resolvable:$true] %s70
      %s72 = sshll.u32 [#allocation9], 4
      %s73 = int_to_ptr.vmem [resolvable:$true] %s72
      %78 = dma.hbm_to_vmem [thread:$0]  %s71, 18432, %s73, [#allocation8], 192, 192, 12
    $region25: #{leaves_gpt_net_forward.1} parent=1 // pred_fallthru
      _
    // Predicated region
    $region26: #{leaves_gpt_net_forward.1} parent=1 // pred_check
      _
    $region27: #{leaves_gpt_net_forward.1} parent=1 // pred_check_branch
      %80 = sbr.rel (0) target = $region29
    $region28: #{leaves_gpt_net_forward.1} parent=1 // pred_region
      %82 = vsyncadd [#allocation11], 0
      %s84 = sshll.u32 %s6, 4
      %s85 = int_to_ptr.hbm [resolvable:$true] %s84
      %s86 = sshll.u32 [#allocation10], 4
      %s87 = int_to_ptr.vmem [resolvable:$true] %s86
      %89 = dma.hbm_to_vmem [thread:$0]  %s85, 48, %s87, [#allocation11]
    $region29: #{leaves_gpt_net_forward.1} parent=1 // pred_fallthru
      _
    // Predicated region
    $region30: #{leaves_gpt_net_forward.1} parent=1 // pred_check
      _
    $region31: #{leaves_gpt_net_forward.1} parent=1 // pred_check_branch
      %91 = sbr.rel (0) target = $region33
    $region32: #{leaves_gpt_net_forward.1} parent=1 // pred_region
      %93 = dma.done [#allocation3], 9216
    $region33: #{leaves_gpt_net_forward.1} parent=1 // pred_fallthru
      _
    // Predicated region
    $region34: #{leaves_gpt_net_forward.1} parent=1 // pred_check
      _
    $region35: #{leaves_gpt_net_forward.1} parent=1 // pred_check_branch
      %95 = sbr.rel (0) target = $region37
    $region36: #{leaves_gpt_net_forward.1} parent=1 // pred_region
      %97 = dma.done [#allocation5], 48
    $region37: #{leaves_gpt_net_forward.1} parent=1 // pred_fallthru
      _
    // Predicated region
    $region38: #{leaves_gpt_net_forward.1} parent=1 // pred_check
      _
    $region39: #{leaves_gpt_net_forward.1} parent=1 // pred_check_branch
      %99 = sbr.rel (0) target = $region41
    $region40: #{leaves_gpt_net_forward.1} parent=1 // pred_region
      %101 = dma.done [#allocation5], 55296
    $region41: #{leaves_gpt_net_forward.1} parent=1 // pred_fallthru
      _
    // Predicated region
    $region42: #{leaves_gpt_net_forward.1} parent=1 // pred_check
      _
    $region43: #{leaves_gpt_net_forward.1} parent=1 // pred_check_branch
      %103 = sbr.rel (0) target = $region45
    $region44: #{leaves_gpt_net_forward.1} parent=1 // pred_region
      %105 = dma.done [#allocation8], 96
    $region45: #{leaves_gpt_net_forward.1} parent=1 // pred_fallthru
      _
    // Predicated region
    $region46: #{leaves_gpt_net_forward.1} parent=1 // pred_check
      _
    $region47: #{leaves_gpt_net_forward.1} parent=1 // pred_check_branch
      %107 = sbr.rel (0) target = $region49
    $region48: #{leaves_gpt_net_forward.1} parent=1 // pred_region
      %109 = dma.done [#allocation8], 18432
    $region49: #{leaves_gpt_net_forward.1} parent=1 // pred_fallthru
      _
    // Predicated region
    $region50: #{leaves_gpt_net_forward.1} parent=1 // pred_check
      _
    $region51: #{leaves_gpt_net_forward.1} parent=1 // pred_check_branch
      %111 = sbr.rel (0) target = $region53
    $region52: #{leaves_gpt_net_forward.1} parent=1 // pred_region
      %113 = dma.done [#allocation11], 48
    $region53: #{leaves_gpt_net_forward.1} parent=1 // pred_fallthru
      _
    %v115 = vld [vmem:[%s0] sm:$0xf]
    %v116 = vld [vmem:[%s0 + $0x4] sm:$0xf]
    %v117 = vld [vmem:[%s0 + $0x8] sm:$0xf]
    %v118 = vld [vmem:[%s0 + $0xc] sm:$0xf]
    %v123 = vunpack.c.l.b16 %v115
    %v124 = vunpack.c.l.b16 %v116
    %v125 = vunpack.c.l.b16 %v117
    %v126 = vunpack.c.l.b16 %v118
    %v127 = vpack.c.b16 %v124, %v123
    %v128 = vpack.c.b16 %v126, %v125
    %v130 = vshrl.u32 %v127, 16
    %v132 = vrot.slane %v130, 7
    %v133 = vshll.u32 %v127, 16
    %v135 = vor.u32 %v132, %v133
    %v137 = vshrl.u32 %v128, 16
    %v139 = vrot.slane %v137, 7
    %v140 = vshll.u32 %v128, 16
    %v142 = vor.u32 %v139, %v140
    %vm145 = vcmask 1040384
    %vm146 = vsmask.f32 256
    %vm147 = vmand %vm145, %vm146
    %v148 = vsel %vm147, 0, %v135
    %v149 = vsel %vm147, 0, %v142
    %v150 = vrot.slane %v133, 1
    %v151 = vor.u32 %v130, %v150
    %v152 = vrot.slane %v140, 1
    %v153 = vor.u32 %v137, %v152
    %vm156 = vcmask 1047552
    %vm157 = vsmask.f32 7424
    %vm158 = vmand %vm156, %vm157
    %v159 = vsel %vm158, %v151, 0
    %v160 = vsel %vm158, %v153, 0
    %v163 = vld [vmem:[#allocation2] sm:$0xff]
    %v164 = vld [vmem:[#allocation2 + $0x8] sm:$0xf]
    %v165 = vld [vmem:[#allocation2 + $0xc] sm:$0xff]
    %v166 = vld [vmem:[#allocation2 + $0x14] sm:$0xf]
    %v167 = vld [vmem:[#allocation2 + $0x18] sm:$0xff]
    %v168 = vld [vmem:[#allocation2 + $0x20] sm:$0xf]
    %v169 = vld [vmem:[#allocation2 + $0x24] sm:$0xff]
    %v170 = vld [vmem:[#allocation2 + $0x2c] sm:$0xf]
    %v171 = vld [vmem:[#allocation2 + $0x30] sm:$0xff]
    %v172 = vld [vmem:[#allocation2 + $0x38] sm:$0xf]
    %v173 = vld [vmem:[#allocation2 + $0x3c] sm:$0xff]
    %v174 = vld [vmem:[#allocation2 + $0x44] sm:$0xf]
    %v175 = vld [vmem:[#allocation2 + $0x48] sm:$0xff]
    %v176 = vld [vmem:[#allocation2 + $0x50] sm:$0xf]
    %v177 = vld [vmem:[#allocation2 + $0x54] sm:$0xff]
    %v178 = vld [vmem:[#allocation2 + $0x5c] sm:$0xf]
    %v179 = vld [vmem:[#allocation2 + $0x60] sm:$0xff]
    %v180 = vld [vmem:[#allocation2 + $0x68] sm:$0xf]
    %v181 = vld [vmem:[#allocation2 + $0x6c] sm:$0xff]
    %v182 = vld [vmem:[#allocation2 + $0x74] sm:$0xf]
    %v183 = vld [vmem:[#allocation2 + $0x78] sm:$0xff]
    %v184 = vld [vmem:[#allocation2 + $0x80] sm:$0xf]
    %v185 = vld [vmem:[#allocation2 + $0x84] sm:$0xff]
    %v186 = vld [vmem:[#allocation2 + $0x8c] sm:$0xf]
    %v187 = vld [vmem:[#allocation2 + $0x90] sm:$0xff]
    %v188 = vld [vmem:[#allocation2 + $0x98] sm:$0xf]
    %v189 = vld [vmem:[#allocation2 + $0x9c] sm:$0xff]
    %v190 = vld [vmem:[#allocation2 + $0xa4] sm:$0xf]
    %v191 = vld [vmem:[#allocation2 + $0xa8] sm:$0xff]
    %v192 = vld [vmem:[#allocation2 + $0xb0] sm:$0xf]
    %v193 = vld [vmem:[#allocation2 + $0xb4] sm:$0xff]
    %v194 = vld [vmem:[#allocation2 + $0xbc] sm:$0xf]
    %v195 = vld [vmem:[#allocation2 + $0xc0] sm:$0xff]
    %v196 = vld [vmem:[#allocation2 + $0xc8] sm:$0xf]
    %v197 = vld [vmem:[#allocation2 + $0xcc] sm:$0xff]
    %v198 = vld [vmem:[#allocation2 + $0xd4] sm:$0xf]
    %v199 = vld [vmem:[#allocation2 + $0xd8] sm:$0xff]
    %v200 = vld [vmem:[#allocation2 + $0xe0] sm:$0xf]
    %v201 = vld [vmem:[#allocation2 + $0xe4] sm:$0xff]
    %v202 = vld [vmem:[#allocation2 + $0xec] sm:$0xf]
    %v203 = vld [vmem:[#allocation2 + $0xf0] sm:$0xff]
    %v204 = vld [vmem:[#allocation2 + $0xf8] sm:$0xf]
    %v205 = vld [vmem:[#allocation2 + $0xfc] sm:$0xff]
    %v206 = vld [vmem:[#allocation2 + $0x104] sm:$0xf]
    %v207 = vld [vmem:[#allocation2 + $0x108] sm:$0xff]
    %v208 = vld [vmem:[#allocation2 + $0x110] sm:$0xf]
    %v209 = vld [vmem:[#allocation2 + $0x114] sm:$0xff]
    %v210 = vld [vmem:[#allocation2 + $0x11c] sm:$0xf]
    %v211 = vld [vmem:[#allocation2 + $0x120] sm:$0xff]
    %v212 = vld [vmem:[#allocation2 + $0x128] sm:$0xf]
    %v213 = vld [vmem:[#allocation2 + $0x12c] sm:$0xff]
    %v214 = vld [vmem:[#allocation2 + $0x134] sm:$0xf]
    %v215 = vld [vmem:[#allocation2 + $0x138] sm:$0xff]
    %v216 = vld [vmem:[#allocation2 + $0x140] sm:$0xf]
    %v217 = vld [vmem:[#allocation2 + $0x144] sm:$0xff]
    %v218 = vld [vmem:[#allocation2 + $0x14c] sm:$0xf]
    %v219 = vld [vmem:[#allocation2 + $0x150] sm:$0xff]
    %v220 = vld [vmem:[#allocation2 + $0x158] sm:$0xf]
    %v221 = vld [vmem:[#allocation2 + $0x15c] sm:$0xff]
    %v222 = vld [vmem:[#allocation2 + $0x164] sm:$0xf]
    %v223 = vld [vmem:[#allocation2 + $0x168] sm:$0xff]
    %v224 = vld [vmem:[#allocation2 + $0x170] sm:$0xf]
    %v225 = vld [vmem:[#allocation2 + $0x174] sm:$0xff]
    %v226 = vld [vmem:[#allocation2 + $0x17c] sm:$0xf]
    %v227 = vld [vmem:[#allocation2 + $0x180] sm:$0xff]
    %v228 = vld [vmem:[#allocation2 + $0x188] sm:$0xf]
    %v229 = vld [vmem:[#allocation2 + $0x18c] sm:$0xff]
    %v230 = vld [vmem:[#allocation2 + $0x194] sm:$0xf]
    %v231 = vld [vmem:[#allocation2 + $0x198] sm:$0xff]
    %v232 = vld [vmem:[#allocation2 + $0x1a0] sm:$0xf]
    %v233 = vld [vmem:[#allocation2 + $0x1a4] sm:$0xff]
    %v234 = vld [vmem:[#allocation2 + $0x1ac] sm:$0xf]
    %v235 = vld [vmem:[#allocation2 + $0x1b0] sm:$0xff]
    %v236 = vld [vmem:[#allocation2 + $0x1b8] sm:$0xf]
    %v237 = vld [vmem:[#allocation2 + $0x1bc] sm:$0xff]
    %v238 = vld [vmem:[#allocation2 + $0x1c4] sm:$0xf]
    %v239 = vld [vmem:[#allocation2 + $0x1c8] sm:$0xff]
    %v240 = vld [vmem:[#allocation2 + $0x1d0] sm:$0xf]
    %v241 = vld [vmem:[#allocation2 + $0x1d4] sm:$0xff]
    %v242 = vld [vmem:[#allocation2 + $0x1dc] sm:$0xf]
    %v243 = vld [vmem:[#allocation2 + $0x1e0] sm:$0xff]
    %v244 = vld [vmem:[#allocation2 + $0x1e8] sm:$0xf]
    %v245 = vld [vmem:[#allocation2 + $0x1ec] sm:$0xff]
    %v246 = vld [vmem:[#allocation2 + $0x1f4] sm:$0xf]
    %v247 = vld [vmem:[#allocation2 + $0x1f8] sm:$0xff]
    %v248 = vld [vmem:[#allocation2 + $0x200] sm:$0xf]
    %v249 = vld [vmem:[#allocation2 + $0x204] sm:$0xff]
    %v250 = vld [vmem:[#allocation2 + $0x20c] sm:$0xf]
    %v251 = vld [vmem:[#allocation2 + $0x210] sm:$0xff]
    %v252 = vld [vmem:[#allocation2 + $0x218] sm:$0xf]
    %v253 = vld [vmem:[#allocation2 + $0x21c] sm:$0xff]
    %v254 = vld [vmem:[#allocation2 + $0x224] sm:$0xf]
    %v255 = vld [vmem:[#allocation2 + $0x228] sm:$0xff]
    %v256 = vld [vmem:[#allocation2 + $0x230] sm:$0xf]
    %v257 = vld [vmem:[#allocation2 + $0x234] sm:$0xff]
    %v258 = vld [vmem:[#allocation2 + $0x23c] sm:$0xf]
    %v259 = vld [vmem:[#allocation4] sm:$0x7]
    %v261 = vperm.slane %v259, 0
    %v262 = vperm.slane %v259, 1
    %v263 = vperm.slane %v259, 2
    %v363 = vunpack.c.l.b16 %v163
    %v364 = vunpack.c.h.b16 %v163
    %v365 = vunpack.c.l.b16 %v164
    %v366 = vunpack.c.l.b16 %v165
    %v367 = vunpack.c.h.b16 %v165
    %v368 = vunpack.c.l.b16 %v166
    %v369 = vunpack.c.l.b16 %v167
    %v370 = vunpack.c.h.b16 %v167
    %v371 = vunpack.c.l.b16 %v168
    %v372 = vunpack.c.l.b16 %v169
    %v373 = vunpack.c.h.b16 %v169
    %v374 = vunpack.c.l.b16 %v170
    %v375 = vunpack.c.l.b16 %v171
    %v376 = vunpack.c.h.b16 %v171
    %v377 = vunpack.c.l.b16 %v172
    %v378 = vunpack.c.l.b16 %v173
    %v379 = vunpack.c.h.b16 %v173
    %v380 = vunpack.c.l.b16 %v174
    %v381 = vunpack.c.l.b16 %v175
    %v382 = vunpack.c.h.b16 %v175
    %v383 = vunpack.c.l.b16 %v176
    %v384 = vunpack.c.l.b16 %v177
    %v385 = vunpack.c.h.b16 %v177
    %v386 = vunpack.c.l.b16 %v178
    %v387 = vunpack.c.l.b16 %v179
    %v388 = vunpack.c.h.b16 %v179
    %v389 = vunpack.c.l.b16 %v180
    %v390 = vunpack.c.l.b16 %v181
    %v391 = vunpack.c.h.b16 %v181
    %v392 = vunpack.c.l.b16 %v182
    %v393 = vunpack.c.l.b16 %v183
    %v394 = vunpack.c.h.b16 %v183
    %v395 = vunpack.c.l.b16 %v184
    %v396 = vunpack.c.l.b16 %v185
    %v397 = vunpack.c.h.b16 %v185
    %v398 = vunpack.c.l.b16 %v186
    %v399 = vunpack.c.l.b16 %v187
    %v400 = vunpack.c.h.b16 %v187
    %v401 = vunpack.c.l.b16 %v188
    %v402 = vunpack.c.l.b16 %v189
    %v403 = vunpack.c.h.b16 %v189
    %v404 = vunpack.c.l.b16 %v190
    %v405 = vunpack.c.l.b16 %v191
    %v406 = vunpack.c.h.b16 %v191
    %v407 = vunpack.c.l.b16 %v192
    %v408 = vunpack.c.l.b16 %v193
    %v409 = vunpack.c.h.b16 %v193
    %v410 = vunpack.c.l.b16 %v194
    %v411 = vunpack.c.l.b16 %v195
    %v412 = vunpack.c.h.b16 %v195
    %v413 = vunpack.c.l.b16 %v196
    %v414 = vunpack.c.l.b16 %v197
    %v415 = vunpack.c.h.b16 %v197
    %v416 = vunpack.c.l.b16 %v198
    %v417 = vunpack.c.l.b16 %v199
    %v418 = vunpack.c.h.b16 %v199
    %v419 = vunpack.c.l.b16 %v200
    %v420 = vunpack.c.l.b16 %v201
    %v421 = vunpack.c.h.b16 %v201
    %v422 = vunpack.c.l.b16 %v202
    %v423 = vunpack.c.l.b16 %v203
    %v424 = vunpack.c.h.b16 %v203
    %v425 = vunpack.c.l.b16 %v204
    %v426 = vunpack.c.l.b16 %v205
    %v427 = vunpack.c.h.b16 %v205
    %v428 = vunpack.c.l.b16 %v206
    %v429 = vunpack.c.l.b16 %v207
    %v430 = vunpack.c.h.b16 %v207
    %v431 = vunpack.c.l.b16 %v208
    %v432 = vunpack.c.l.b16 %v209
    %v433 = vunpack.c.h.b16 %v209
    %v434 = vunpack.c.l.b16 %v210
    %v435 = vunpack.c.l.b16 %v211
    %v436 = vunpack.c.h.b16 %v211
    %v437 = vunpack.c.l.b16 %v212
    %v438 = vunpack.c.l.b16 %v213
    %v439 = vunpack.c.h.b16 %v213
    %v440 = vunpack.c.l.b16 %v214
    %v441 = vunpack.c.l.b16 %v215
    %v442 = vunpack.c.h.b16 %v215
    %v443 = vunpack.c.l.b16 %v216
    %v444 = vunpack.c.l.b16 %v217
    %v445 = vunpack.c.h.b16 %v217
    %v446 = vunpack.c.l.b16 %v218
    %v447 = vunpack.c.l.b16 %v219
    %v448 = vunpack.c.h.b16 %v219
    %v449 = vunpack.c.l.b16 %v220
    %v450 = vunpack.c.l.b16 %v221
    %v451 = vunpack.c.h.b16 %v221
    %v452 = vunpack.c.l.b16 %v222
    %v453 = vunpack.c.l.b16 %v223
    %v454 = vunpack.c.h.b16 %v223
    %v455 = vunpack.c.l.b16 %v224
    %v456 = vunpack.c.l.b16 %v225
    %v457 = vunpack.c.h.b16 %v225
    %v458 = vunpack.c.l.b16 %v226
    %v459 = vunpack.c.l.b16 %v227
    %v460 = vunpack.c.h.b16 %v227
    %v461 = vunpack.c.l.b16 %v228
    %v462 = vunpack.c.l.b16 %v229
    %v463 = vunpack.c.h.b16 %v229
    %v464 = vunpack.c.l.b16 %v230
    %v465 = vunpack.c.l.b16 %v231
    %v466 = vunpack.c.h.b16 %v231
    %v467 = vunpack.c.l.b16 %v232
    %v468 = vunpack.c.l.b16 %v233
    %v469 = vunpack.c.h.b16 %v233
    %v470 = vunpack.c.l.b16 %v234
    %v471 = vunpack.c.l.b16 %v235
    %v472 = vunpack.c.h.b16 %v235
    %v473 = vunpack.c.l.b16 %v236
    %v474 = vunpack.c.l.b16 %v237
    %v475 = vunpack.c.h.b16 %v237
    %v476 = vunpack.c.l.b16 %v238
    %v477 = vunpack.c.l.b16 %v239
    %v478 = vunpack.c.h.b16 %v239
    %v479 = vunpack.c.l.b16 %v240
    %v480 = vunpack.c.l.b16 %v241
    %v481 = vunpack.c.h.b16 %v241
    %v482 = vunpack.c.l.b16 %v242
    %v483 = vunpack.c.l.b16 %v243
    %v484 = vunpack.c.h.b16 %v243
    %v485 = vunpack.c.l.b16 %v244
    %v486 = vunpack.c.l.b16 %v245
    %v487 = vunpack.c.h.b16 %v245
    %v488 = vunpack.c.l.b16 %v246
    %v489 = vunpack.c.l.b16 %v247
    %v490 = vunpack.c.h.b16 %v247
    %v491 = vunpack.c.l.b16 %v248
    %v492 = vunpack.c.l.b16 %v249
    %v493 = vunpack.c.h.b16 %v249
    %v494 = vunpack.c.l.b16 %v250
    %v495 = vunpack.c.l.b16 %v251
    %v496 = vunpack.c.h.b16 %v251
    %v497 = vunpack.c.l.b16 %v252
    %v498 = vunpack.c.l.b16 %v253
    %v499 = vunpack.c.h.b16 %v253
    %v500 = vunpack.c.l.b16 %v254
    %v501 = vunpack.c.l.b16 %v255
    %v502 = vunpack.c.h.b16 %v255
    %v503 = vunpack.c.l.b16 %v256
    %v504 = vunpack.c.l.b16 %v257
    %v505 = vunpack.c.h.b16 %v257
    %v506 = vunpack.c.l.b16 %v258
    %v507 = vpack.c.b16 %v366, %v363
    %v508 = vpack.c.b16 %v367, %v364
    %v509 = vpack.c.b16 %v368, %v365
    %v510 = vpack.c.b16 %v372, %v369
    %v511 = vpack.c.b16 %v373, %v370
    %v512 = vpack.c.b16 %v374, %v371
    %v513 = vpack.c.b16 %v378, %v375
    %v514 = vpack.c.b16 %v379, %v376
    %v515 = vpack.c.b16 %v380, %v377
    %v516 = vpack.c.b16 %v384, %v381
    %v517 = vpack.c.b16 %v385, %v382
    %v518 = vpack.c.b16 %v386, %v383
    %v519 = vpack.c.b16 %v390, %v387
    %v520 = vpack.c.b16 %v391, %v388
    %v521 = vpack.c.b16 %v392, %v389
    %v522 = vpack.c.b16 %v396, %v393
    %v523 = vpack.c.b16 %v397, %v394
    %v524 = vpack.c.b16 %v398, %v395
    %v525 = vpack.c.b16 %v402, %v399
    %v526 = vpack.c.b16 %v403, %v400
    %v527 = vpack.c.b16 %v404, %v401
    %v528 = vpack.c.b16 %v408, %v405
    %v529 = vpack.c.b16 %v409, %v406
    %v530 = vpack.c.b16 %v410, %v407
    %v531 = vpack.c.b16 %v414, %v411
    %v532 = vpack.c.b16 %v415, %v412
    %v533 = vpack.c.b16 %v416, %v413
    %v534 = vpack.c.b16 %v420, %v417
    %v535 = vpack.c.b16 %v421, %v418
    %v536 = vpack.c.b16 %v422, %v419
    %v537 = vpack.c.b16 %v426, %v423
    %v538 = vpack.c.b16 %v427, %v424
    %v539 = vpack.c.b16 %v428, %v425
    %v540 = vpack.c.b16 %v432, %v429
    %v541 = vpack.c.b16 %v433, %v430
    %v542 = vpack.c.b16 %v434, %v431
    %v543 = vpack.c.b16 %v438, %v435
    %v544 = vpack.c.b16 %v439, %v436
    %v545 = vpack.c.b16 %v440, %v437
    %v546 = vpack.c.b16 %v444, %v441
    %v547 = vpack.c.b16 %v445, %v442
    %v548 = vpack.c.b16 %v446, %v443
    %v549 = vpack.c.b16 %v450, %v447
    %v550 = vpack.c.b16 %v451, %v448
    %v551 = vpack.c.b16 %v452, %v449
    %v552 = vpack.c.b16 %v456, %v453
    %v553 = vpack.c.b16 %v457, %v454
    %v554 = vpack.c.b16 %v458, %v455
    %v555 = vpack.c.b16 %v462, %v459
    %v556 = vpack.c.b16 %v463, %v460
    %v557 = vpack.c.b16 %v464, %v461
    %v558 = vpack.c.b16 %v468, %v465
    %v559 = vpack.c.b16 %v469, %v466
    %v560 = vpack.c.b16 %v470, %v467
    %v561 = vpack.c.b16 %v474, %v471
    %v562 = vpack.c.b16 %v475, %v472
    %v563 = vpack.c.b16 %v476, %v473
    %v564 = vpack.c.b16 %v480, %v477
    %v565 = vpack.c.b16 %v481, %v478
    %v566 = vpack.c.b16 %v482, %v479
    %v567 = vpack.c.b16 %v486, %v483
    %v568 = vpack.c.b16 %v487, %v484
    %v569 = vpack.c.b16 %v488, %v485
    %v570 = vpack.c.b16 %v492, %v489
    %v571 = vpack.c.b16 %v493, %v490
    %v572 = vpack.c.b16 %v494, %v491
    %v573 = vpack.c.b16 %v498, %v495
    %v574 = vpack.c.b16 %v499, %v496
    %v575 = vpack.c.b16 %v500, %v497
    %v576 = vpack.c.b16 %v504, %v501
    %v577 = vpack.c.b16 %v505, %v502
    %v578 = vpack.c.b16 %v506, %v503
    %651 = vmatpush.bf16.msra.mxu0 %v528
    %652 = vmatpush.bf16.msra.mxu0 %v525
    %653 = vmatpush.bf16.msra.mxu0 %v522
    %654 = vmatpush.bf16.msra.mxu0 %v519
    %655 = vmatpush.bf16.msra.mxu0 %v516
    %656 = vmatpush.bf16.msra.mxu0 %v513
    %657 = vmatpush.bf16.msra.mxu0 %v510
    %658 = vmatpush.bf16.msra.mxu0 %v507
    %659 = vmatmul.bf16.gmra.mxu0 %v148
    %v660 = vpop.f32.mrf.mxu0
    %v661 = vadd.f32 %v261, %v660
    %v662 = vpop.f32.mrf.mxu0
    %v663 = vadd.f32 %v261, %v662
    %664 = vmatmul.bf16.gmra.mxu0 %v149
    %v665 = vpop.f32.mrf.mxu0
    %v666 = vadd.f32 %v261, %v665
    %v667 = vpop.f32.mrf.mxu0
    %v668 = vadd.f32 %v261, %v667
    %669 = vdwg.mxu0
    %670 = vmatpush.bf16.msra.mxu0 %v552
    %671 = vmatpush.bf16.msra.mxu0 %v549
    %672 = vmatpush.bf16.msra.mxu0 %v546
    %673 = vmatpush.bf16.msra.mxu0 %v543
    %674 = vmatpush.bf16.msra.mxu0 %v540
    %675 = vmatpush.bf16.msra.mxu0 %v537
    %676 = vmatpush.bf16.msra.mxu0 %v534
    %677 = vmatpush.bf16.msra.mxu0 %v531
    %678 = vmatmul.bf16.gmra.mxu0 %v127
    %v679 = vpop.f32.mrf.mxu0
    %v680 = vadd.f32 %v661, %v679
    %v681 = vpop.f32.mrf.mxu0
    %v682 = vadd.f32 %v663, %v681
    %683 = vmatmul.bf16.gmra.mxu0 %v128
    %v684 = vpop.f32.mrf.mxu0
    %v685 = vadd.f32 %v666, %v684
    %v686 = vpop.f32.mrf.mxu0
    %v687 = vadd.f32 %v668, %v686
    %688 = vdwg.mxu0
    %689 = vmatpush.bf16.msra.mxu0 %v576
    %690 = vmatpush.bf16.msra.mxu0 %v573
    %691 = vmatpush.bf16.msra.mxu0 %v570
    %692 = vmatpush.bf16.msra.mxu0 %v567
    %693 = vmatpush.bf16.msra.mxu0 %v564
    %694 = vmatpush.bf16.msra.mxu0 %v561
    %695 = vmatpush.bf16.msra.mxu0 %v558
    %696 = vmatpush.bf16.msra.mxu0 %v555
    %697 = vmatmul.bf16.gmra.mxu0 %v159
    %v698 = vpop.f32.mrf.mxu0
    %v699 = vadd.f32 %v680, %v698
    %v700 = vpop.f32.mrf.mxu0
    %v701 = vadd.f32 %v682, %v700
    %702 = vmatmul.bf16.gmra.mxu0 %v160
    %v703 = vpop.f32.mrf.mxu0
    %v704 = vadd.f32 %v685, %v703
    %v705 = vpop.f32.mrf.mxu0
    %v706 = vadd.f32 %v687, %v705
    %707 = vdwg.mxu0
    %708 = vmatpush.bf16.msra.mxu0 %v529
    %709 = vmatpush.bf16.msra.mxu0 %v526
    %710 = vmatpush.bf16.msra.mxu0 %v523
    %711 = vmatpush.bf16.msra.mxu0 %v520
    %712 = vmatpush.bf16.msra.mxu0 %v517
    %713 = vmatpush.bf16.msra.mxu0 %v514
    %714 = vmatpush.bf16.msra.mxu0 %v511
    %715 = vmatpush.bf16.msra.mxu0 %v508
    %716 = vmatmul.bf16.gmra.mxu0 %v148
    %v717 = vpop.f32.mrf.mxu0
    %v718 = vadd.f32 %v262, %v717
    %v719 = vpop.f32.mrf.mxu0
    %v720 = vadd.f32 %v262, %v719
    %721 = vmatmul.bf16.gmra.mxu0 %v149
    %v722 = vpop.f32.mrf.mxu0
    %v723 = vadd.f32 %v262, %v722
    %v724 = vpop.f32.mrf.mxu0
    %v725 = vadd.f32 %v262, %v724
    %726 = vdwg.mxu0
    %727 = vmatpush.bf16.msra.mxu0 %v553
    %728 = vmatpush.bf16.msra.mxu0 %v550
    %729 = vmatpush.bf16.msra.mxu0 %v547
    %730 = vmatpush.bf16.msra.mxu0 %v544
    %731 = vmatpush.bf16.msra.mxu0 %v541
    %732 = vmatpush.bf16.msra.mxu0 %v538
    %733 = vmatpush.bf16.msra.mxu0 %v535
    %734 = vmatpush.bf16.msra.mxu0 %v532
    %735 = vmatmul.bf16.gmra.mxu0 %v127
    %v736 = vpop.f32.mrf.mxu0
    %v737 = vadd.f32 %v718, %v736
    %v738 = vpop.f32.mrf.mxu0
    %v739 = vadd.f32 %v720, %v738
    %740 = vmatmul.bf16.gmra.mxu0 %v128
    %v741 = vpop.f32.mrf.mxu0
    %v742 = vadd.f32 %v723, %v741
    %v743 = vpop.f32.mrf.mxu0
    %v744 = vadd.f32 %v725, %v743
    %745 = vdwg.mxu0
    %746 = vmatpush.bf16.msra.mxu0 %v577
    %747 = vmatpush.bf16.msra.mxu0 %v574
    %748 = vmatpush.bf16.msra.mxu0 %v571
    %749 = vmatpush.bf16.msra.mxu0 %v568
    %750 = vmatpush.bf16.msra.mxu0 %v565
    %751 = vmatpush.bf16.msra.mxu0 %v562
    %752 = vmatpush.bf16.msra.mxu0 %v559
    %753 = vmatpush.bf16.msra.mxu0 %v556
    %754 = vmatmul.bf16.gmra.mxu0 %v159
    %v755 = vpop.f32.mrf.mxu0
    %v756 = vadd.f32 %v737, %v755
    %v757 = vpop.f32.mrf.mxu0
    %v758 = vadd.f32 %v739, %v757
    %759 = vmatmul.bf16.gmra.mxu0 %v160
    %v760 = vpop.f32.mrf.mxu0
    %v761 = vadd.f32 %v742, %v760
    %v762 = vpop.f32.mrf.mxu0
    %v763 = vadd.f32 %v744, %v762
    %764 = vdwg.mxu0
    %765 = vmatpush.bf16.msra.mxu0 %v530
    %766 = vmatpush.bf16.msra.mxu0 %v527
    %767 = vmatpush.bf16.msra.mxu0 %v524
    %768 = vmatpush.bf16.msra.mxu0 %v521
    %769 = vmatpush.bf16.msra.mxu0 %v518
    %770 = vmatpush.bf16.msra.mxu0 %v515
    %771 = vmatpush.bf16.msra.mxu0 %v512
    %772 = vmatpush.bf16.msra.mxu0 %v509
    %773 = vmatmul.bf16.gmra.mxu0 %v148
    %v774 = vpop.f32.mrf.mxu0
    %v775 = vadd.f32 %v263, %v774
    %v776 = vpop.f32.mrf.mxu0
    %v777 = vadd.f32 %v263, %v776
    %778 = vmatmul.bf16.gmra.mxu0 %v149
    %v779 = vpop.f32.mrf.mxu0
    %v780 = vadd.f32 %v263, %v779
    %v781 = vpop.f32.mrf.mxu0
    %v782 = vadd.f32 %v263, %v781
    %783 = vdwg.mxu0
    %784 = vmatpush.bf16.msra.mxu0 %v554
    %785 = vmatpush.bf16.msra.mxu0 %v551
    %786 = vmatpush.bf16.msra.mxu0 %v548
    %787 = vmatpush.bf16.msra.mxu0 %v545
    %788 = vmatpush.bf16.msra.mxu0 %v542
    %789 = vmatpush.bf16.msra.mxu0 %v539
    %790 = vmatpush.bf16.msra.mxu0 %v536
    %791 = vmatpush.bf16.msra.mxu0 %v533
    %792 = vmatmul.bf16.gmra.mxu0 %v127
    %v793 = vpop.f32.mrf.mxu0
    %v794 = vadd.f32 %v775, %v793
    %v795 = vpop.f32.mrf.mxu0
    %v796 = vadd.f32 %v777, %v795
    %797 = vmatmul.bf16.gmra.mxu0 %v128
    %v798 = vpop.f32.mrf.mxu0
    %v799 = vadd.f32 %v780, %v798
    %v800 = vpop.f32.mrf.mxu0
    %v801 = vadd.f32 %v782, %v800
    %802 = vdwg.mxu0
    %803 = vmatpush.bf16.msra.mxu0 %v578
    %804 = vmatpush.bf16.msra.mxu0 %v575
    %805 = vmatpush.bf16.msra.mxu0 %v572
    %806 = vmatpush.bf16.msra.mxu0 %v569
    %807 = vmatpush.bf16.msra.mxu0 %v566
    %808 = vmatpush.bf16.msra.mxu0 %v563
    %809 = vmatpush.bf16.msra.mxu0 %v560
    %810 = vmatpush.bf16.msra.mxu0 %v557
    %811 = vmatmul.bf16.gmra.mxu0 %v159
    %v812 = vpop.f32.mrf.mxu0
    %v813 = vadd.f32 %v794, %v812
    %v814 = vpop.f32.mrf.mxu0
    %v815 = vadd.f32 %v796, %v814
    %816 = vmatmul.bf16.gmra.mxu0 %v160
    %v817 = vpop.f32.mrf.mxu0
    %v818 = vadd.f32 %v799, %v817
    %v819 = vpop.f32.mrf.mxu0
    %v820 = vadd.f32 %v801, %v819
    %821 = vdwg.mxu0
    %v822 = vmax.f32 %v699, 0.0
    %v823 = vmax.f32 %v756, 0.0
    %v824 = vmax.f32 %v813, 0.0
    %v825 = vmax.f32 %v701, 0.0
    %v826 = vmax.f32 %v758, 0.0
    %v827 = vmax.f32 %v815, 0.0
    %v828 = vmax.f32 %v704, 0.0
    %v829 = vmax.f32 %v761, 0.0
    %v830 = vmax.f32 %v818, 0.0
    %v831 = vmax.f32 %v706, 0.0
    %v832 = vmax.f32 %v763, 0.0
    %v833 = vmax.f32 %v820, 0.0
    %v834 = vpack.c.bf16 %v823, %v822
    %v835 = vpack.c.bf16 %v824, %v824
    %v836 = vpack.c.bf16 %v826, %v825
    %v837 = vpack.c.bf16 %v827, %v827
    %v838 = vpack.c.bf16 %v829, %v828
    %v839 = vpack.c.bf16 %v830, %v830
    %v840 = vpack.c.bf16 %v832, %v831
    %v841 = vpack.c.bf16 %v833, %v833
    %v850 = vunpack.c.l.b16 %v834
    %v851 = vunpack.c.h.b16 %v834
    %v852 = vunpack.c.l.b16 %v835
    %v853 = vunpack.c.l.b16 %v836
    %v854 = vunpack.c.h.b16 %v836
    %v855 = vunpack.c.l.b16 %v837
    %v856 = vunpack.c.l.b16 %v838
    %v857 = vunpack.c.h.b16 %v838
    %v858 = vunpack.c.l.b16 %v839
    %v859 = vunpack.c.l.b16 %v840
    %v860 = vunpack.c.h.b16 %v840
    %v861 = vunpack.c.l.b16 %v841
    %v862 = vpack.c.b16 %v853, %v850
    %v863 = vpack.c.b16 %v854, %v851
    %v864 = vpack.c.b16 %v855, %v852
    %v865 = vpack.c.b16 %v859, %v856
    %v866 = vpack.c.b16 %v860, %v857
    %v867 = vpack.c.b16 %v861, %v858
    %v869 = vshrl.u32 %v862, 16
    %v871 = vrot.slane %v869, 7
    %v872 = vshll.u32 %v862, 16
    %v874 = vor.u32 %v871, %v872
    %v876 = vshrl.u32 %v863, 16
    %v878 = vrot.slane %v876, 7
    %v879 = vshll.u32 %v863, 16
    %v881 = vor.u32 %v878, %v879
    %v883 = vshrl.u32 %v864, 16
    %v885 = vrot.slane %v883, 7
    %v886 = vshll.u32 %v864, 16
    %v888 = vor.u32 %v885, %v886
    %v890 = vshrl.u32 %v865, 16
    %v892 = vrot.slane %v890, 7
    %v893 = vshll.u32 %v865, 16
    %v895 = vor.u32 %v892, %v893
    %v897 = vshrl.u32 %v866, 16
    %v899 = vrot.slane %v897, 7
    %v900 = vshll.u32 %v866, 16
    %v902 = vor.u32 %v899, %v900
    %v904 = vshrl.u32 %v867, 16
    %v906 = vrot.slane %v904, 7
    %v907 = vshll.u32 %v867, 16
    %v909 = vor.u32 %v906, %v907
    %v916 = vsel %vm147, 0, %v874
    %v917 = vsel %vm147, 0, %v881
    %v918 = vsel %vm147, 0, %v888
    %v919 = vsel %vm147, 0, %v895
    %v920 = vsel %vm147, 0, %v902
    %v921 = vsel %vm147, 0, %v909
    %v922 = vrot.slane %v872, 1
    %v923 = vor.u32 %v869, %v922
    %v924 = vrot.slane %v879, 1
    %v925 = vor.u32 %v876, %v924
    %v926 = vrot.slane %v886, 1
    %v927 = vor.u32 %v883, %v926
    %v928 = vrot.slane %v893, 1
    %v929 = vor.u32 %v890, %v928
    %v930 = vrot.slane %v900, 1
    %v931 = vor.u32 %v897, %v930
    %v932 = vrot.slane %v907, 1
    %v933 = vor.u32 %v904, %v932
    %v940 = vsel %vm158, %v923, 0
    %v941 = vsel %vm158, %v925, 0
    %v942 = vsel %vm158, %v927, 0
    %v943 = vsel %vm158, %v929, 0
    %v944 = vsel %vm158, %v931, 0
    %v945 = vsel %vm158, %v933, 0
    %v952 = vld [vmem:[#allocation6] sm:$0xff]
    %v953 = vld [vmem:[#allocation6 + $0x8] sm:$0xff]
    %v954 = vld [vmem:[#allocation6 + $0x10] sm:$0xff]
    %v955 = vld [vmem:[#allocation6 + $0x18] sm:$0xff]
    %v956 = vld [vmem:[#allocation6 + $0x20] sm:$0xff]
    %v957 = vld [vmem:[#allocation6 + $0x28] sm:$0xff]
    %v958 = vld [vmem:[#allocation6 + $0x30] sm:$0xff]
    %v959 = vld [vmem:[#allocation6 + $0x38] sm:$0xff]
    %v960 = vld [vmem:[#allocation6 + $0x40] sm:$0xff]
    %v961 = vld [vmem:[#allocation6 + $0x48] sm:$0xff]
    %v962 = vld [vmem:[#allocation6 + $0x50] sm:$0xff]
    %v963 = vld [vmem:[#allocation6 + $0x58] sm:$0xff]
    %v964 = vld [vmem:[#allocation6 + $0x60] sm:$0xff]
    %v965 = vld [vmem:[#allocation6 + $0x68] sm:$0xff]
    %v966 = vld [vmem:[#allocation6 + $0x70] sm:$0xff]
    %v967 = vld [vmem:[#allocation6 + $0x78] sm:$0xff]
    %v968 = vld [vmem:[#allocation6 + $0x80] sm:$0xff]
    %v969 = vld [vmem:[#allocation6 + $0x88] sm:$0xff]
    %v970 = vld [vmem:[#allocation6 + $0x90] sm:$0xff]
    %v971 = vld [vmem:[#allocation6 + $0x98] sm:$0xff]
    %v972 = vld [vmem:[#allocation6 + $0xa0] sm:$0xff]
    %v973 = vld [vmem:[#allocation6 + $0xa8] sm:$0xff]
    %v974 = vld [vmem:[#allocation6 + $0xb0] sm:$0xff]
    %v975 = vld [vmem:[#allocation6 + $0xb8] sm:$0xff]
    %v976 = vld [vmem:[#allocation6 + $0xc0] sm:$0xff]
    %v977 = vld [vmem:[#allocation6 + $0xc8] sm:$0xff]
    %v978 = vld [vmem:[#allocation6 + $0xd0] sm:$0xff]
    %v979 = vld [vmem:[#allocation6 + $0xd8] sm:$0xff]
    %v980 = vld [vmem:[#allocation6 + $0xe0] sm:$0xff]
    %v981 = vld [vmem:[#allocation6 + $0xe8] sm:$0xff]
    %v982 = vld [vmem:[#allocation6 + $0xf0] sm:$0xff]
    %v983 = vld [vmem:[#allocation6 + $0xf8] sm:$0xff]
    %v984 = vld [vmem:[#allocation6 + $0x100] sm:$0xff]
    %v985 = vld [vmem:[#allocation6 + $0x108] sm:$0xff]
    %v986 = vld [vmem:[#allocation6 + $0x110] sm:$0xff]
    %v987 = vld [vmem:[#allocation6 + $0x118] sm:$0xff]
    %v988 = vld [vmem:[#allocation6 + $0x120] sm:$0xff]
    %v989 = vld [vmem:[#allocation6 + $0x128] sm:$0xff]
    %v990 = vld [vmem:[#allocation6 + $0x130] sm:$0xff]
    %v991 = vld [vmem:[#allocation6 + $0x138] sm:$0xff]
    %v992 = vld [vmem:[#allocation6 + $0x140] sm:$0xff]
    %v993 = vld [vmem:[#allocation6 + $0x148] sm:$0xff]
    %v994 = vld [vmem:[#allocation6 + $0x150] sm:$0xff]
    %v995 = vld [vmem:[#allocation6 + $0x158] sm:$0xff]
    %v996 = vld [vmem:[#allocation6 + $0x160] sm:$0xff]
    %v997 = vld [vmem:[#allocation6 + $0x168] sm:$0xff]
    %v998 = vld [vmem:[#allocation6 + $0x170] sm:$0xff]
    %v999 = vld [vmem:[#allocation6 + $0x178] sm:$0xff]
    %v1000 = vld [vmem:[#allocation6 + $0x180] sm:$0xff]
    %v1001 = vld [vmem:[#allocation6 + $0x188] sm:$0xff]
    %v1002 = vld [vmem:[#allocation6 + $0x190] sm:$0xff]
    %v1003 = vld [vmem:[#allocation6 + $0x198] sm:$0xff]
    %v1004 = vld [vmem:[#allocation6 + $0x1a0] sm:$0xff]
    %v1005 = vld [vmem:[#allocation6 + $0x1a8] sm:$0xff]
    %v1006 = vld [vmem:[#allocation6 + $0x1b0] sm:$0xff]
    %v1007 = vld [vmem:[#allocation6 + $0x1b8] sm:$0xff]
    %v1008 = vld [vmem:[#allocation6 + $0x1c0] sm:$0xff]
    %v1009 = vld [vmem:[#allocation6 + $0x1c8] sm:$0xff]
    %v1010 = vld [vmem:[#allocation6 + $0x1d0] sm:$0xff]
    %v1011 = vld [vmem:[#allocation6 + $0x1d8] sm:$0xff]
    %v1012 = vld [vmem:[#allocation6 + $0x1e0] sm:$0xff]
    %v1013 = vld [vmem:[#allocation6 + $0x1e8] sm:$0xff]
    %v1014 = vld [vmem:[#allocation6 + $0x1f0] sm:$0xff]
    %v1015 = vld [vmem:[#allocation6 + $0x1f8] sm:$0xff]
    %v1016 = vld [vmem:[#allocation6 + $0x200] sm:$0xff]
    %v1017 = vld [vmem:[#allocation6 + $0x208] sm:$0xff]
    %v1018 = vld [vmem:[#allocation6 + $0x210] sm:$0xff]
    %v1019 = vld [vmem:[#allocation6 + $0x218] sm:$0xff]
    %v1020 = vld [vmem:[#allocation6 + $0x220] sm:$0xff]
    %v1021 = vld [vmem:[#allocation6 + $0x228] sm:$0xff]
    %v1022 = vld [vmem:[#allocation6 + $0x230] sm:$0xff]
    %v1023 = vld [vmem:[#allocation6 + $0x238] sm:$0xff]
    %v1024 = vld [vmem:[#allocation6 + $0x240] sm:$0xff]
    %v1025 = vld [vmem:[#allocation6 + $0x248] sm:$0xff]
    %v1026 = vld [vmem:[#allocation6 + $0x250] sm:$0xff]
    %v1027 = vld [vmem:[#allocation6 + $0x258] sm:$0xff]
    %v1028 = vld [vmem:[#allocation6 + $0x260] sm:$0xff]
    %v1029 = vld [vmem:[#allocation6 + $0x268] sm:$0xff]
    %v1030 = vld [vmem:[#allocation6 + $0x270] sm:$0xff]
    %v1031 = vld [vmem:[#allocation6 + $0x278] sm:$0xff]
    %v1032 = vld [vmem:[#allocation6 + $0x280] sm:$0xff]
    %v1033 = vld [vmem:[#allocation6 + $0x288] sm:$0xff]
    %v1034 = vld [vmem:[#allocation6 + $0x290] sm:$0xff]
    %v1035 = vld [vmem:[#allocation6 + $0x298] sm:$0xff]
    %v1036 = vld [vmem:[#allocation6 + $0x2a0] sm:$0xff]
    %v1037 = vld [vmem:[#allocation6 + $0x2a8] sm:$0xff]
    %v1038 = vld [vmem:[#allocation6 + $0x2b0] sm:$0xff]
    %v1039 = vld [vmem:[#allocation6 + $0x2b8] sm:$0xff]
    %v1040 = vld [vmem:[#allocation6 + $0x2c0] sm:$0xff]
    %v1041 = vld [vmem:[#allocation6 + $0x2c8] sm:$0xff]
    %v1042 = vld [vmem:[#allocation6 + $0x2d0] sm:$0xff]
    %v1043 = vld [vmem:[#allocation6 + $0x2d8] sm:$0xff]
    %v1044 = vld [vmem:[#allocation6 + $0x2e0] sm:$0xff]
    %v1045 = vld [vmem:[#allocation6 + $0x2e8] sm:$0xff]
    %v1046 = vld [vmem:[#allocation6 + $0x2f0] sm:$0xff]
    %v1047 = vld [vmem:[#allocation6 + $0x2f8] sm:$0xff]
    %v1048 = vld [vmem:[#allocation6 + $0x300] sm:$0xff]
    %v1049 = vld [vmem:[#allocation6 + $0x308] sm:$0xff]
    %v1050 = vld [vmem:[#allocation6 + $0x310] sm:$0xff]
    %v1051 = vld [vmem:[#allocation6 + $0x318] sm:$0xff]
    %v1052 = vld [vmem:[#allocation6 + $0x320] sm:$0xff]
    %v1053 = vld [vmem:[#allocation6 + $0x328] sm:$0xff]
    %v1054 = vld [vmem:[#allocation6 + $0x330] sm:$0xff]
    %v1055 = vld [vmem:[#allocation6 + $0x338] sm:$0xff]
    %v1056 = vld [vmem:[#allocation6 + $0x340] sm:$0xff]
    %v1057 = vld [vmem:[#allocation6 + $0x348] sm:$0xff]
    %v1058 = vld [vmem:[#allocation6 + $0x350] sm:$0xff]
    %v1059 = vld [vmem:[#allocation6 + $0x358] sm:$0xff]
    %v1060 = vld [vmem:[#allocation6 + $0x360] sm:$0xff]
    %v1061 = vld [vmem:[#allocation6 + $0x368] sm:$0xff]
    %v1062 = vld [vmem:[#allocation6 + $0x370] sm:$0xff]
    %v1063 = vld [vmem:[#allocation6 + $0x378] sm:$0xff]
    %v1064 = vld [vmem:[#allocation6 + $0x380] sm:$0xff]
    %v1065 = vld [vmem:[#allocation6 + $0x388] sm:$0xff]
    %v1066 = vld [vmem:[#allocation6 + $0x390] sm:$0xff]
    %v1067 = vld [vmem:[#allocation6 + $0x398] sm:$0xff]
    %v1068 = vld [vmem:[#allocation6 + $0x3a0] sm:$0xff]
    %v1069 = vld [vmem:[#allocation6 + $0x3a8] sm:$0xff]
    %v1070 = vld [vmem:[#allocation6 + $0x3b0] sm:$0xff]
    %v1071 = vld [vmem:[#allocation6 + $0x3b8] sm:$0xff]
    %v1072 = vld [vmem:[#allocation6 + $0x3c0] sm:$0xff]
    %v1073 = vld [vmem:[#allocation6 + $0x3c8] sm:$0xff]
    %v1074 = vld [vmem:[#allocation6 + $0x3d0] sm:$0xff]
    %v1075 = vld [vmem:[#allocation6 + $0x3d8] sm:$0xff]
    %v1076 = vld [vmem:[#allocation6 + $0x3e0] sm:$0xff]
    %v1077 = vld [vmem:[#allocation6 + $0x3e8] sm:$0xff]
    %v1078 = vld [vmem:[#allocation6 + $0x3f0] sm:$0xff]
    %v1079 = vld [vmem:[#allocation6 + $0x3f8] sm:$0xff]
    %v1080 = vld [vmem:[#allocation6 + $0x400] sm:$0xff]
    %v1081 = vld [vmem:[#allocation6 + $0x408] sm:$0xff]
    %v1082 = vld [vmem:[#allocation6 + $0x410] sm:$0xff]
    %v1083 = vld [vmem:[#allocation6 + $0x418] sm:$0xff]
    %v1084 = vld [vmem:[#allocation6 + $0x420] sm:$0xff]
    %v1085 = vld [vmem:[#allocation6 + $0x428] sm:$0xff]
    %v1086 = vld [vmem:[#allocation6 + $0x430] sm:$0xff]
    %v1087 = vld [vmem:[#allocation6 + $0x438] sm:$0xff]
    %v1088 = vld [vmem:[#allocation6 + $0x440] sm:$0xff]
    %v1089 = vld [vmem:[#allocation6 + $0x448] sm:$0xff]
    %v1090 = vld [vmem:[#allocation6 + $0x450] sm:$0xff]
    %v1091 = vld [vmem:[#allocation6 + $0x458] sm:$0xff]
    %v1092 = vld [vmem:[#allocation6 + $0x460] sm:$0xff]
    %v1093 = vld [vmem:[#allocation6 + $0x468] sm:$0xff]
    %v1094 = vld [vmem:[#allocation6 + $0x470] sm:$0xff]
    %v1095 = vld [vmem:[#allocation6 + $0x478] sm:$0xff]
    %v1096 = vld [vmem:[#allocation6 + $0x480] sm:$0xff]
    %v1097 = vld [vmem:[#allocation6 + $0x488] sm:$0xff]
    %v1098 = vld [vmem:[#allocation6 + $0x490] sm:$0xff]
    %v1099 = vld [vmem:[#allocation6 + $0x498] sm:$0xff]
    %v1100 = vld [vmem:[#allocation6 + $0x4a0] sm:$0xff]
    %v1101 = vld [vmem:[#allocation6 + $0x4a8] sm:$0xff]
    %v1102 = vld [vmem:[#allocation6 + $0x4b0] sm:$0xff]
    %v1103 = vld [vmem:[#allocation6 + $0x4b8] sm:$0xff]
    %v1104 = vld [vmem:[#allocation6 + $0x4c0] sm:$0xff]
    %v1105 = vld [vmem:[#allocation6 + $0x4c8] sm:$0xff]
    %v1106 = vld [vmem:[#allocation6 + $0x4d0] sm:$0xff]
    %v1107 = vld [vmem:[#allocation6 + $0x4d8] sm:$0xff]
    %v1108 = vld [vmem:[#allocation6 + $0x4e0] sm:$0xff]
    %v1109 = vld [vmem:[#allocation6 + $0x4e8] sm:$0xff]
    %v1110 = vld [vmem:[#allocation6 + $0x4f0] sm:$0xff]
    %v1111 = vld [vmem:[#allocation6 + $0x4f8] sm:$0xff]
    %v1112 = vld [vmem:[#allocation6 + $0x500] sm:$0xff]
    %v1113 = vld [vmem:[#allocation6 + $0x508] sm:$0xff]
    %v1114 = vld [vmem:[#allocation6 + $0x510] sm:$0xff]
    %v1115 = vld [vmem:[#allocation6 + $0x518] sm:$0xff]
    %v1116 = vld [vmem:[#allocation6 + $0x520] sm:$0xff]
    %v1117 = vld [vmem:[#allocation6 + $0x528] sm:$0xff]
    %v1118 = vld [vmem:[#allocation6 + $0x530] sm:$0xff]
    %v1119 = vld [vmem:[#allocation6 + $0x538] sm:$0xff]
    %v1120 = vld [vmem:[#allocation6 + $0x540] sm:$0xff]
    %v1121 = vld [vmem:[#allocation6 + $0x548] sm:$0xff]
    %v1122 = vld [vmem:[#allocation6 + $0x550] sm:$0xff]
    %v1123 = vld [vmem:[#allocation6 + $0x558] sm:$0xff]
    %v1124 = vld [vmem:[#allocation6 + $0x560] sm:$0xff]
    %v1125 = vld [vmem:[#allocation6 + $0x568] sm:$0xff]
    %v1126 = vld [vmem:[#allocation6 + $0x570] sm:$0xff]
    %v1127 = vld [vmem:[#allocation6 + $0x578] sm:$0xff]
    %v1128 = vld [vmem:[#allocation6 + $0x580] sm:$0xff]
    %v1129 = vld [vmem:[#allocation6 + $0x588] sm:$0xff]
    %v1130 = vld [vmem:[#allocation6 + $0x590] sm:$0xff]
    %v1131 = vld [vmem:[#allocation6 + $0x598] sm:$0xff]
    %v1132 = vld [vmem:[#allocation6 + $0x5a0] sm:$0xff]
    %v1133 = vld [vmem:[#allocation6 + $0x5a8] sm:$0xff]
    %v1134 = vld [vmem:[#allocation6 + $0x5b0] sm:$0xff]
    %v1135 = vld [vmem:[#allocation6 + $0x5b8] sm:$0xff]
    %v1136 = vld [vmem:[#allocation6 + $0x5c0] sm:$0xff]
    %v1137 = vld [vmem:[#allocation6 + $0x5c8] sm:$0xff]
    %v1138 = vld [vmem:[#allocation6 + $0x5d0] sm:$0xff]
    %v1139 = vld [vmem:[#allocation6 + $0x5d8] sm:$0xff]
    %v1140 = vld [vmem:[#allocation6 + $0x5e0] sm:$0xff]
    %v1141 = vld [vmem:[#allocation6 + $0x5e8] sm:$0xff]
    %v1142 = vld [vmem:[#allocation6 + $0x5f0] sm:$0xff]
    %v1143 = vld [vmem:[#allocation6 + $0x5f8] sm:$0xff]
    %v1144 = vld [vmem:[#allocation6 + $0x600] sm:$0xff]
    %v1145 = vld [vmem:[#allocation6 + $0x608] sm:$0xff]
    %v1146 = vld [vmem:[#allocation6 + $0x610] sm:$0xff]
    %v1147 = vld [vmem:[#allocation6 + $0x618] sm:$0xff]
    %v1148 = vld [vmem:[#allocation6 + $0x620] sm:$0xff]
    %v1149 = vld [vmem:[#allocation6 + $0x628] sm:$0xff]
    %v1150 = vld [vmem:[#allocation6 + $0x630] sm:$0xff]
    %v1151 = vld [vmem:[#allocation6 + $0x638] sm:$0xff]
    %v1152 = vld [vmem:[#allocation6 + $0x640] sm:$0xff]
    %v1153 = vld [vmem:[#allocation6 + $0x648] sm:$0xff]
    %v1154 = vld [vmem:[#allocation6 + $0x650] sm:$0xff]
    %v1155 = vld [vmem:[#allocation6 + $0x658] sm:$0xff]
    %v1156 = vld [vmem:[#allocation6 + $0x660] sm:$0xff]
    %v1157 = vld [vmem:[#allocation6 + $0x668] sm:$0xff]
    %v1158 = vld [vmem:[#allocation6 + $0x670] sm:$0xff]
    %v1159 = vld [vmem:[#allocation6 + $0x678] sm:$0xff]
    %v1160 = vld [vmem:[#allocation6 + $0x680] sm:$0xff]
    %v1161 = vld [vmem:[#allocation6 + $0x688] sm:$0xff]
    %v1162 = vld [vmem:[#allocation6 + $0x690] sm:$0xff]
    %v1163 = vld [vmem:[#allocation6 + $0x698] sm:$0xff]
    %v1164 = vld [vmem:[#allocation6 + $0x6a0] sm:$0xff]
    %v1165 = vld [vmem:[#allocation6 + $0x6a8] sm:$0xff]
    %v1166 = vld [vmem:[#allocation6 + $0x6b0] sm:$0xff]
    %v1167 = vld [vmem:[#allocation6 + $0x6b8] sm:$0xff]
    %v1168 = vld [vmem:[#allocation6 + $0x6c0] sm:$0xff]
    %v1169 = vld [vmem:[#allocation6 + $0x6c8] sm:$0xff]
    %v1170 = vld [vmem:[#allocation6 + $0x6d0] sm:$0xff]
    %v1171 = vld [vmem:[#allocation6 + $0x6d8] sm:$0xff]
    %v1172 = vld [vmem:[#allocation6 + $0x6e0] sm:$0xff]
    %v1173 = vld [vmem:[#allocation6 + $0x6e8] sm:$0xff]
    %v1174 = vld [vmem:[#allocation6 + $0x6f0] sm:$0xff]
    %v1175 = vld [vmem:[#allocation6 + $0x6f8] sm:$0xff]
    %v1176 = vld [vmem:[#allocation6 + $0x700] sm:$0xff]
    %v1177 = vld [vmem:[#allocation6 + $0x708] sm:$0xff]
    %v1178 = vld [vmem:[#allocation6 + $0x710] sm:$0xff]
    %v1179 = vld [vmem:[#allocation6 + $0x718] sm:$0xff]
    %v1180 = vld [vmem:[#allocation6 + $0x720] sm:$0xff]
    %v1181 = vld [vmem:[#allocation6 + $0x728] sm:$0xff]
    %v1182 = vld [vmem:[#allocation6 + $0x730] sm:$0xff]
    %v1183 = vld [vmem:[#allocation6 + $0x738] sm:$0xff]
    %v1184 = vld [vmem:[#allocation6 + $0x740] sm:$0xff]
    %v1185 = vld [vmem:[#allocation6 + $0x748] sm:$0xff]
    %v1186 = vld [vmem:[#allocation6 + $0x750] sm:$0xff]
    %v1187 = vld [vmem:[#allocation6 + $0x758] sm:$0xff]
    %v1188 = vld [vmem:[#allocation6 + $0x760] sm:$0xff]
    %v1189 = vld [vmem:[#allocation6 + $0x768] sm:$0xff]
    %v1190 = vld [vmem:[#allocation6 + $0x770] sm:$0xff]
    %v1191 = vld [vmem:[#allocation6 + $0x778] sm:$0xff]
    %v1192 = vld [vmem:[#allocation6 + $0x780] sm:$0xff]
    %v1193 = vld [vmem:[#allocation6 + $0x788] sm:$0xff]
    %v1194 = vld [vmem:[#allocation6 + $0x790] sm:$0xff]
    %v1195 = vld [vmem:[#allocation6 + $0x798] sm:$0xff]
    %v1196 = vld [vmem:[#allocation6 + $0x7a0] sm:$0xff]
    %v1197 = vld [vmem:[#allocation6 + $0x7a8] sm:$0xff]
    %v1198 = vld [vmem:[#allocation6 + $0x7b0] sm:$0xff]
    %v1199 = vld [vmem:[#allocation6 + $0x7b8] sm:$0xff]
    %v1200 = vld [vmem:[#allocation6 + $0x7c0] sm:$0xff]
    %v1201 = vld [vmem:[#allocation6 + $0x7c8] sm:$0xff]
    %v1202 = vld [vmem:[#allocation6 + $0x7d0] sm:$0xff]
    %v1203 = vld [vmem:[#allocation6 + $0x7d8] sm:$0xff]
    %v1204 = vld [vmem:[#allocation6 + $0x7e0] sm:$0xff]
    %v1205 = vld [vmem:[#allocation6 + $0x7e8] sm:$0xff]
    %v1206 = vld [vmem:[#allocation6 + $0x7f0] sm:$0xff]
    %v1207 = vld [vmem:[#allocation6 + $0x7f8] sm:$0xff]
    %v1208 = vld [vmem:[#allocation6 + $0x800] sm:$0xff]
    %v1209 = vld [vmem:[#allocation6 + $0x808] sm:$0xff]
    %v1210 = vld [vmem:[#allocation6 + $0x810] sm:$0xff]
    %v1211 = vld [vmem:[#allocation6 + $0x818] sm:$0xff]
    %v1212 = vld [vmem:[#allocation6 + $0x820] sm:$0xff]
    %v1213 = vld [vmem:[#allocation6 + $0x828] sm:$0xff]
    %v1214 = vld [vmem:[#allocation6 + $0x830] sm:$0xff]
    %v1215 = vld [vmem:[#allocation6 + $0x838] sm:$0xff]
    %v1216 = vld [vmem:[#allocation6 + $0x840] sm:$0xff]
    %v1217 = vld [vmem:[#allocation6 + $0x848] sm:$0xff]
    %v1218 = vld [vmem:[#allocation6 + $0x850] sm:$0xff]
    %v1219 = vld [vmem:[#allocation6 + $0x858] sm:$0xff]
    %v1220 = vld [vmem:[#allocation6 + $0x860] sm:$0xff]
    %v1221 = vld [vmem:[#allocation6 + $0x868] sm:$0xff]
    %v1222 = vld [vmem:[#allocation6 + $0x870] sm:$0xff]
    %v1223 = vld [vmem:[#allocation6 + $0x878] sm:$0xff]
    %v1224 = vld [vmem:[#allocation6 + $0x880] sm:$0xff]
    %v1225 = vld [vmem:[#allocation6 + $0x888] sm:$0xff]
    %v1226 = vld [vmem:[#allocation6 + $0x890] sm:$0xff]
    %v1227 = vld [vmem:[#allocation6 + $0x898] sm:$0xff]
    %v1228 = vld [vmem:[#allocation6 + $0x8a0] sm:$0xff]
    %v1229 = vld [vmem:[#allocation6 + $0x8a8] sm:$0xff]
    %v1230 = vld [vmem:[#allocation6 + $0x8b0] sm:$0xff]
    %v1231 = vld [vmem:[#allocation6 + $0x8b8] sm:$0xff]
    %v1232 = vld [vmem:[#allocation6 + $0x8c0] sm:$0xff]
    %v1233 = vld [vmem:[#allocation6 + $0x8c8] sm:$0xff]
    %v1234 = vld [vmem:[#allocation6 + $0x8d0] sm:$0xff]
    %v1235 = vld [vmem:[#allocation6 + $0x8d8] sm:$0xff]
    %v1236 = vld [vmem:[#allocation6 + $0x8e0] sm:$0xff]
    %v1237 = vld [vmem:[#allocation6 + $0x8e8] sm:$0xff]
    %v1238 = vld [vmem:[#allocation6 + $0x8f0] sm:$0xff]
    %v1239 = vld [vmem:[#allocation6 + $0x8f8] sm:$0xff]
    %v1240 = vld [vmem:[#allocation6 + $0x900] sm:$0xff]
    %v1241 = vld [vmem:[#allocation6 + $0x908] sm:$0xff]
    %v1242 = vld [vmem:[#allocation6 + $0x910] sm:$0xff]
    %v1243 = vld [vmem:[#allocation6 + $0x918] sm:$0xff]
    %v1244 = vld [vmem:[#allocation6 + $0x920] sm:$0xff]
    %v1245 = vld [vmem:[#allocation6 + $0x928] sm:$0xff]
    %v1246 = vld [vmem:[#allocation6 + $0x930] sm:$0xff]
    %v1247 = vld [vmem:[#allocation6 + $0x938] sm:$0xff]
    %v1248 = vld [vmem:[#allocation6 + $0x940] sm:$0xff]
    %v1249 = vld [vmem:[#allocation6 + $0x948] sm:$0xff]
    %v1250 = vld [vmem:[#allocation6 + $0x950] sm:$0xff]
    %v1251 = vld [vmem:[#allocation6 + $0x958] sm:$0xff]
    %v1252 = vld [vmem:[#allocation6 + $0x960] sm:$0xff]
    %v1253 = vld [vmem:[#allocation6 + $0x968] sm:$0xff]
    %v1254 = vld [vmem:[#allocation6 + $0x970] sm:$0xff]
    %v1255 = vld [vmem:[#allocation6 + $0x978] sm:$0xff]
    %v1256 = vld [vmem:[#allocation6 + $0x980] sm:$0xff]
    %v1257 = vld [vmem:[#allocation6 + $0x988] sm:$0xff]
    %v1258 = vld [vmem:[#allocation6 + $0x990] sm:$0xff]
    %v1259 = vld [vmem:[#allocation6 + $0x998] sm:$0xff]
    %v1260 = vld [vmem:[#allocation6 + $0x9a0] sm:$0xff]
    %v1261 = vld [vmem:[#allocation6 + $0x9a8] sm:$0xff]
    %v1262 = vld [vmem:[#allocation6 + $0x9b0] sm:$0xff]
    %v1263 = vld [vmem:[#allocation6 + $0x9b8] sm:$0xff]
    %v1264 = vld [vmem:[#allocation6 + $0x9c0] sm:$0xff]
    %v1265 = vld [vmem:[#allocation6 + $0x9c8] sm:$0xff]
    %v1266 = vld [vmem:[#allocation6 + $0x9d0] sm:$0xff]
    %v1267 = vld [vmem:[#allocation6 + $0x9d8] sm:$0xff]
    %v1268 = vld [vmem:[#allocation6 + $0x9e0] sm:$0xff]
    %v1269 = vld [vmem:[#allocation6 + $0x9e8] sm:$0xff]
    %v1270 = vld [vmem:[#allocation6 + $0x9f0] sm:$0xff]
    %v1271 = vld [vmem:[#allocation6 + $0x9f8] sm:$0xff]
    %v1272 = vld [vmem:[#allocation6 + $0xa00] sm:$0xff]
    %v1273 = vld [vmem:[#allocation6 + $0xa08] sm:$0xff]
    %v1274 = vld [vmem:[#allocation6 + $0xa10] sm:$0xff]
    %v1275 = vld [vmem:[#allocation6 + $0xa18] sm:$0xff]
    %v1276 = vld [vmem:[#allocation6 + $0xa20] sm:$0xff]
    %v1277 = vld [vmem:[#allocation6 + $0xa28] sm:$0xff]
    %v1278 = vld [vmem:[#allocation6 + $0xa30] sm:$0xff]
    %v1279 = vld [vmem:[#allocation6 + $0xa38] sm:$0xff]
    %v1280 = vld [vmem:[#allocation6 + $0xa40] sm:$0xff]
    %v1281 = vld [vmem:[#allocation6 + $0xa48] sm:$0xff]
    %v1282 = vld [vmem:[#allocation6 + $0xa50] sm:$0xff]
    %v1283 = vld [vmem:[#allocation6 + $0xa58] sm:$0xff]
    %v1284 = vld [vmem:[#allocation6 + $0xa60] sm:$0xff]
    %v1285 = vld [vmem:[#allocation6 + $0xa68] sm:$0xff]
    %v1286 = vld [vmem:[#allocation6 + $0xa70] sm:$0xff]
    %v1287 = vld [vmem:[#allocation6 + $0xa78] sm:$0xff]
    %v1288 = vld [vmem:[#allocation6 + $0xa80] sm:$0xff]
    %v1289 = vld [vmem:[#allocation6 + $0xa88] sm:$0xff]
    %v1290 = vld [vmem:[#allocation6 + $0xa90] sm:$0xff]
    %v1291 = vld [vmem:[#allocation6 + $0xa98] sm:$0xff]
    %v1292 = vld [vmem:[#allocation6 + $0xaa0] sm:$0xff]
    %v1293 = vld [vmem:[#allocation6 + $0xaa8] sm:$0xff]
    %v1294 = vld [vmem:[#allocation6 + $0xab0] sm:$0xff]
    %v1295 = vld [vmem:[#allocation6 + $0xab8] sm:$0xff]
    %v1296 = vld [vmem:[#allocation6 + $0xac0] sm:$0xff]
    %v1297 = vld [vmem:[#allocation6 + $0xac8] sm:$0xff]
    %v1298 = vld [vmem:[#allocation6 + $0xad0] sm:$0xff]
    %v1299 = vld [vmem:[#allocation6 + $0xad8] sm:$0xff]
    %v1300 = vld [vmem:[#allocation6 + $0xae0] sm:$0xff]
    %v1301 = vld [vmem:[#allocation6 + $0xae8] sm:$0xff]
    %v1302 = vld [vmem:[#allocation6 + $0xaf0] sm:$0xff]
    %v1303 = vld [vmem:[#allocation6 + $0xaf8] sm:$0xff]
    %v1304 = vld [vmem:[#allocation6 + $0xb00] sm:$0xff]
    %v1305 = vld [vmem:[#allocation6 + $0xb08] sm:$0xff]
    %v1306 = vld [vmem:[#allocation6 + $0xb10] sm:$0xff]
    %v1307 = vld [vmem:[#allocation6 + $0xb18] sm:$0xff]
    %v1308 = vld [vmem:[#allocation6 + $0xb20] sm:$0xff]
    %v1309 = vld [vmem:[#allocation6 + $0xb28] sm:$0xff]
    %v1310 = vld [vmem:[#allocation6 + $0xb30] sm:$0xff]
    %v1311 = vld [vmem:[#allocation6 + $0xb38] sm:$0xff]
    %v1312 = vld [vmem:[#allocation6 + $0xb40] sm:$0xff]
    %v1313 = vld [vmem:[#allocation6 + $0xb48] sm:$0xff]
    %v1314 = vld [vmem:[#allocation6 + $0xb50] sm:$0xff]
    %v1315 = vld [vmem:[#allocation6 + $0xb58] sm:$0xff]
    %v1316 = vld [vmem:[#allocation6 + $0xb60] sm:$0xff]
    %v1317 = vld [vmem:[#allocation6 + $0xb68] sm:$0xff]
    %v1318 = vld [vmem:[#allocation6 + $0xb70] sm:$0xff]
    %v1319 = vld [vmem:[#allocation6 + $0xb78] sm:$0xff]
    %v1320 = vld [vmem:[#allocation6 + $0xb80] sm:$0xff]
    %v1321 = vld [vmem:[#allocation6 + $0xb88] sm:$0xff]
    %v1322 = vld [vmem:[#allocation6 + $0xb90] sm:$0xff]
    %v1323 = vld [vmem:[#allocation6 + $0xb98] sm:$0xff]
    %v1324 = vld [vmem:[#allocation6 + $0xba0] sm:$0xff]
    %v1325 = vld [vmem:[#allocation6 + $0xba8] sm:$0xff]
    %v1326 = vld [vmem:[#allocation6 + $0xbb0] sm:$0xff]
    %v1327 = vld [vmem:[#allocation6 + $0xbb8] sm:$0xff]
    %v1328 = vld [vmem:[#allocation6 + $0xbc0] sm:$0xff]
    %v1329 = vld [vmem:[#allocation6 + $0xbc8] sm:$0xff]
    %v1330 = vld [vmem:[#allocation6 + $0xbd0] sm:$0xff]
    %v1331 = vld [vmem:[#allocation6 + $0xbd8] sm:$0xff]
    %v1332 = vld [vmem:[#allocation6 + $0xbe0] sm:$0xff]
    %v1333 = vld [vmem:[#allocation6 + $0xbe8] sm:$0xff]
    %v1334 = vld [vmem:[#allocation6 + $0xbf0] sm:$0xff]
    %v1335 = vld [vmem:[#allocation6 + $0xbf8] sm:$0xff]
    %v1336 = vld [vmem:[#allocation6 + $0xc00] sm:$0xff]
    %v1337 = vld [vmem:[#allocation6 + $0xc08] sm:$0xff]
    %v1338 = vld [vmem:[#allocation6 + $0xc10] sm:$0xff]
    %v1339 = vld [vmem:[#allocation6 + $0xc18] sm:$0xff]
    %v1340 = vld [vmem:[#allocation6 + $0xc20] sm:$0xff]
    %v1341 = vld [vmem:[#allocation6 + $0xc28] sm:$0xff]
    %v1342 = vld [vmem:[#allocation6 + $0xc30] sm:$0xff]
    %v1343 = vld [vmem:[#allocation6 + $0xc38] sm:$0xff]
    %v1344 = vld [vmem:[#allocation6 + $0xc40] sm:$0xff]
    %v1345 = vld [vmem:[#allocation6 + $0xc48] sm:$0xff]
    %v1346 = vld [vmem:[#allocation6 + $0xc50] sm:$0xff]
    %v1347 = vld [vmem:[#allocation6 + $0xc58] sm:$0xff]
    %v1348 = vld [vmem:[#allocation6 + $0xc60] sm:$0xff]
    %v1349 = vld [vmem:[#allocation6 + $0xc68] sm:$0xff]
    %v1350 = vld [vmem:[#allocation6 + $0xc70] sm:$0xff]
    %v1351 = vld [vmem:[#allocation6 + $0xc78] sm:$0xff]
    %v1352 = vld [vmem:[#allocation6 + $0xc80] sm:$0xff]
    %v1353 = vld [vmem:[#allocation6 + $0xc88] sm:$0xff]
    %v1354 = vld [vmem:[#allocation6 + $0xc90] sm:$0xff]
    %v1355 = vld [vmem:[#allocation6 + $0xc98] sm:$0xff]
    %v1356 = vld [vmem:[#allocation6 + $0xca0] sm:$0xff]
    %v1357 = vld [vmem:[#allocation6 + $0xca8] sm:$0xff]
    %v1358 = vld [vmem:[#allocation6 + $0xcb0] sm:$0xff]
    %v1359 = vld [vmem:[#allocation6 + $0xcb8] sm:$0xff]
    %v1360 = vld [vmem:[#allocation6 + $0xcc0] sm:$0xff]
    %v1361 = vld [vmem:[#allocation6 + $0xcc8] sm:$0xff]
    %v1362 = vld [vmem:[#allocation6 + $0xcd0] sm:$0xff]
    %v1363 = vld [vmem:[#allocation6 + $0xcd8] sm:$0xff]
    %v1364 = vld [vmem:[#allocation6 + $0xce0] sm:$0xff]
    %v1365 = vld [vmem:[#allocation6 + $0xce8] sm:$0xff]
    %v1366 = vld [vmem:[#allocation6 + $0xcf0] sm:$0xff]
    %v1367 = vld [vmem:[#allocation6 + $0xcf8] sm:$0xff]
    %v1368 = vld [vmem:[#allocation6 + $0xd00] sm:$0xff]
    %v1369 = vld [vmem:[#allocation6 + $0xd08] sm:$0xff]
    %v1370 = vld [vmem:[#allocation6 + $0xd10] sm:$0xff]
    %v1371 = vld [vmem:[#allocation6 + $0xd18] sm:$0xff]
    %v1372 = vld [vmem:[#allocation6 + $0xd20] sm:$0xff]
    %v1373 = vld [vmem:[#allocation6 + $0xd28] sm:$0xff]
    %v1374 = vld [vmem:[#allocation6 + $0xd30] sm:$0xff]
    %v1375 = vld [vmem:[#allocation6 + $0xd38] sm:$0xff]
    %v1376 = vld [vmem:[#allocation6 + $0xd40] sm:$0xff]
    %v1377 = vld [vmem:[#allocation6 + $0xd48] sm:$0xff]
    %v1378 = vld [vmem:[#allocation6 + $0xd50] sm:$0xff]
    %v1379 = vld [vmem:[#allocation6 + $0xd58] sm:$0xff]
    %v1380 = vld [vmem:[#allocation6 + $0xd60] sm:$0xff]
    %v1381 = vld [vmem:[#allocation6 + $0xd68] sm:$0xff]
    %v1382 = vld [vmem:[#allocation6 + $0xd70] sm:$0xff]
    %v1383 = vld [vmem:[#allocation6 + $0xd78] sm:$0xff]
    %v1384 = vld [vmem:[#allocation7] sm:$0x3f]
    %v1386 = vperm.slane %v1384, 0
    %v1387 = vperm.slane %v1384, 1
    %v1388 = vperm.slane %v1384, 2
    %v1389 = vperm.slane %v1384, 3
    %v1390 = vperm.slane %v1384, 4
    %v1391 = vperm.slane %v1384, 5
    %v1830 = vunpack.c.l.b16 %v952
    %v1831 = vunpack.c.h.b16 %v952
    %v1832 = vunpack.c.l.b16 %v953
    %v1833 = vunpack.c.h.b16 %v953
    %v1834 = vunpack.c.l.b16 %v954
    %v1835 = vunpack.c.h.b16 %v954
    %v1836 = vunpack.c.l.b16 %v955
    %v1837 = vunpack.c.h.b16 %v955
    %v1838 = vunpack.c.l.b16 %v956
    %v1839 = vunpack.c.h.b16 %v956
    %v1840 = vunpack.c.l.b16 %v957
    %v1841 = vunpack.c.h.b16 %v957
    %v1842 = vunpack.c.l.b16 %v958
    %v1843 = vunpack.c.h.b16 %v958
    %v1844 = vunpack.c.l.b16 %v959
    %v1845 = vunpack.c.h.b16 %v959
    %v1846 = vunpack.c.l.b16 %v960
    %v1847 = vunpack.c.h.b16 %v960
    %v1848 = vunpack.c.l.b16 %v961
    %v1849 = vunpack.c.h.b16 %v961
    %v1850 = vunpack.c.l.b16 %v962
    %v1851 = vunpack.c.h.b16 %v962
    %v1852 = vunpack.c.l.b16 %v963
    %v1853 = vunpack.c.h.b16 %v963
    %v1854 = vunpack.c.l.b16 %v964
    %v1855 = vunpack.c.h.b16 %v964
    %v1856 = vunpack.c.l.b16 %v965
    %v1857 = vunpack.c.h.b16 %v965
    %v1858 = vunpack.c.l.b16 %v966
    %v1859 = vunpack.c.h.b16 %v966
    %v1860 = vunpack.c.l.b16 %v967
    %v1861 = vunpack.c.h.b16 %v967
    %v1862 = vunpack.c.l.b16 %v968
    %v1863 = vunpack.c.h.b16 %v968
    %v1864 = vunpack.c.l.b16 %v969
    %v1865 = vunpack.c.h.b16 %v969
    %v1866 = vunpack.c.l.b16 %v970
    %v1867 = vunpack.c.h.b16 %v970
    %v1868 = vunpack.c.l.b16 %v971
    %v1869 = vunpack.c.h.b16 %v971
    %v1870 = vunpack.c.l.b16 %v972
    %v1871 = vunpack.c.h.b16 %v972
    %v1872 = vunpack.c.l.b16 %v973
    %v1873 = vunpack.c.h.b16 %v973
    %v1874 = vunpack.c.l.b16 %v974
    %v1875 = vunpack.c.h.b16 %v974
    %v1876 = vunpack.c.l.b16 %v975
    %v1877 = vunpack.c.h.b16 %v975
    %v1878 = vunpack.c.l.b16 %v976
    %v1879 = vunpack.c.h.b16 %v976
    %v1880 = vunpack.c.l.b16 %v977
    %v1881 = vunpack.c.h.b16 %v977
    %v1882 = vunpack.c.l.b16 %v978
    %v1883 = vunpack.c.h.b16 %v978
    %v1884 = vunpack.c.l.b16 %v979
    %v1885 = vunpack.c.h.b16 %v979
    %v1886 = vunpack.c.l.b16 %v980
    %v1887 = vunpack.c.h.b16 %v980
    %v1888 = vunpack.c.l.b16 %v981
    %v1889 = vunpack.c.h.b16 %v981
    %v1890 = vunpack.c.l.b16 %v982
    %v1891 = vunpack.c.h.b16 %v982
    %v1892 = vunpack.c.l.b16 %v983
    %v1893 = vunpack.c.h.b16 %v983
    %v1894 = vunpack.c.l.b16 %v984
    %v1895 = vunpack.c.h.b16 %v984
    %v1896 = vunpack.c.l.b16 %v985
    %v1897 = vunpack.c.h.b16 %v985
    %v1898 = vunpack.c.l.b16 %v986
    %v1899 = vunpack.c.h.b16 %v986
    %v1900 = vunpack.c.l.b16 %v987
    %v1901 = vunpack.c.h.b16 %v987
    %v1902 = vunpack.c.l.b16 %v988
    %v1903 = vunpack.c.h.b16 %v988
    %v1904 = vunpack.c.l.b16 %v989
    %v1905 = vunpack.c.h.b16 %v989
    %v1906 = vunpack.c.l.b16 %v990
    %v1907 = vunpack.c.h.b16 %v990
    %v1908 = vunpack.c.l.b16 %v991
    %v1909 = vunpack.c.h.b16 %v991
    %v1910 = vunpack.c.l.b16 %v992
    %v1911 = vunpack.c.h.b16 %v992
    %v1912 = vunpack.c.l.b16 %v993
    %v1913 = vunpack.c.h.b16 %v993
    %v1914 = vunpack.c.l.b16 %v994
    %v1915 = vunpack.c.h.b16 %v994
    %v1916 = vunpack.c.l.b16 %v995
    %v1917 = vunpack.c.h.b16 %v995
    %v1918 = vunpack.c.l.b16 %v996
    %v1919 = vunpack.c.h.b16 %v996
    %v1920 = vunpack.c.l.b16 %v997
    %v1921 = vunpack.c.h.b16 %v997
    %v1922 = vunpack.c.l.b16 %v998
    %v1923 = vunpack.c.h.b16 %v998
    %v1924 = vunpack.c.l.b16 %v999
    %v1925 = vunpack.c.h.b16 %v999
    %v1926 = vunpack.c.l.b16 %v1000
    %v1927 = vunpack.c.h.b16 %v1000
    %v1928 = vunpack.c.l.b16 %v1001
    %v1929 = vunpack.c.h.b16 %v1001
    %v1930 = vunpack.c.l.b16 %v1002
    %v1931 = vunpack.c.h.b16 %v1002
    %v1932 = vunpack.c.l.b16 %v1003
    %v1933 = vunpack.c.h.b16 %v1003
    %v1934 = vunpack.c.l.b16 %v1004
    %v1935 = vunpack.c.h.b16 %v1004
    %v1936 = vunpack.c.l.b16 %v1005
    %v1937 = vunpack.c.h.b16 %v1005
    %v1938 = vunpack.c.l.b16 %v1006
    %v1939 = vunpack.c.h.b16 %v1006
    %v1940 = vunpack.c.l.b16 %v1007
    %v1941 = vunpack.c.h.b16 %v1007
    %v1942 = vunpack.c.l.b16 %v1008
    %v1943 = vunpack.c.h.b16 %v1008
    %v1944 = vunpack.c.l.b16 %v1009
    %v1945 = vunpack.c.h.b16 %v1009
    %v1946 = vunpack.c.l.b16 %v1010
    %v1947 = vunpack.c.h.b16 %v1010
    %v1948 = vunpack.c.l.b16 %v1011
    %v1949 = vunpack.c.h.b16 %v1011
    %v1950 = vunpack.c.l.b16 %v1012
    %v1951 = vunpack.c.h.b16 %v1012
    %v1952 = vunpack.c.l.b16 %v1013
    %v1953 = vunpack.c.h.b16 %v1013
    %v1954 = vunpack.c.l.b16 %v1014
    %v1955 = vunpack.c.h.b16 %v1014
    %v1956 = vunpack.c.l.b16 %v1015
    %v1957 = vunpack.c.h.b16 %v1015
    %v1958 = vunpack.c.l.b16 %v1016
    %v1959 = vunpack.c.h.b16 %v1016
    %v1960 = vunpack.c.l.b16 %v1017
    %v1961 = vunpack.c.h.b16 %v1017
    %v1962 = vunpack.c.l.b16 %v1018
    %v1963 = vunpack.c.h.b16 %v1018
    %v1964 = vunpack.c.l.b16 %v1019
    %v1965 = vunpack.c.h.b16 %v1019
    %v1966 = vunpack.c.l.b16 %v1020
    %v1967 = vunpack.c.h.b16 %v1020
    %v1968 = vunpack.c.l.b16 %v1021
    %v1969 = vunpack.c.h.b16 %v1021
    %v1970 = vunpack.c.l.b16 %v1022
    %v1971 = vunpack.c.h.b16 %v1022
    %v1972 = vunpack.c.l.b16 %v1023
    %v1973 = vunpack.c.h.b16 %v1023
    %v1974 = vunpack.c.l.b16 %v1024
    %v1975 = vunpack.c.h.b16 %v1024
    %v1976 = vunpack.c.l.b16 %v1025
    %v1977 = vunpack.c.h.b16 %v1025
    %v1978 = vunpack.c.l.b16 %v1026
    %v1979 = vunpack.c.h.b16 %v1026
    %v1980 = vunpack.c.l.b16 %v1027
    %v1981 = vunpack.c.h.b16 %v1027
    %v1982 = vunpack.c.l.b16 %v1028
    %v1983 = vunpack.c.h.b16 %v1028
    %v1984 = vunpack.c.l.b16 %v1029
    %v1985 = vunpack.c.h.b16 %v1029
    %v1986 = vunpack.c.l.b16 %v1030
    %v1987 = vunpack.c.h.b16 %v1030
    %v1988 = vunpack.c.l.b16 %v1031
    %v1989 = vunpack.c.h.b16 %v1031
    %v1990 = vunpack.c.l.b16 %v1032
    %v1991 = vunpack.c.h.b16 %v1032
    %v1992 = vunpack.c.l.b16 %v1033
    %v1993 = vunpack.c.h.b16 %v1033
    %v1994 = vunpack.c.l.b16 %v1034
    %v1995 = vunpack.c.h.b16 %v1034
    %v1996 = vunpack.c.l.b16 %v1035
    %v1997 = vunpack.c.h.b16 %v1035
    %v1998 = vunpack.c.l.b16 %v1036
    %v1999 = vunpack.c.h.b16 %v1036
    %v2000 = vunpack.c.l.b16 %v1037
    %v2001 = vunpack.c.h.b16 %v1037
    %v2002 = vunpack.c.l.b16 %v1038
    %v2003 = vunpack.c.h.b16 %v1038
    %v2004 = vunpack.c.l.b16 %v1039
    %v2005 = vunpack.c.h.b16 %v1039
    %v2006 = vunpack.c.l.b16 %v1040
    %v2007 = vunpack.c.h.b16 %v1040
    %v2008 = vunpack.c.l.b16 %v1041
    %v2009 = vunpack.c.h.b16 %v1041
    %v2010 = vunpack.c.l.b16 %v1042
    %v2011 = vunpack.c.h.b16 %v1042
    %v2012 = vunpack.c.l.b16 %v1043
    %v2013 = vunpack.c.h.b16 %v1043
    %v2014 = vunpack.c.l.b16 %v1044
    %v2015 = vunpack.c.h.b16 %v1044
    %v2016 = vunpack.c.l.b16 %v1045
    %v2017 = vunpack.c.h.b16 %v1045
    %v2018 = vunpack.c.l.b16 %v1046
    %v2019 = vunpack.c.h.b16 %v1046
    %v2020 = vunpack.c.l.b16 %v1047
    %v2021 = vunpack.c.h.b16 %v1047
    %v2022 = vunpack.c.l.b16 %v1048
    %v2023 = vunpack.c.h.b16 %v1048
    %v2024 = vunpack.c.l.b16 %v1049
    %v2025 = vunpack.c.h.b16 %v1049
    %v2026 = vunpack.c.l.b16 %v1050
    %v2027 = vunpack.c.h.b16 %v1050
    %v2028 = vunpack.c.l.b16 %v1051
    %v2029 = vunpack.c.h.b16 %v1051
    %v2030 = vunpack.c.l.b16 %v1052
    %v2031 = vunpack.c.h.b16 %v1052
    %v2032 = vunpack.c.l.b16 %v1053
    %v2033 = vunpack.c.h.b16 %v1053
    %v2034 = vunpack.c.l.b16 %v1054
    %v2035 = vunpack.c.h.b16 %v1054
    %v2036 = vunpack.c.l.b16 %v1055
    %v2037 = vunpack.c.h.b16 %v1055
    %v2038 = vunpack.c.l.b16 %v1056
    %v2039 = vunpack.c.h.b16 %v1056
    %v2040 = vunpack.c.l.b16 %v1057
    %v2041 = vunpack.c.h.b16 %v1057
    %v2042 = vunpack.c.l.b16 %v1058
    %v2043 = vunpack.c.h.b16 %v1058
    %v2044 = vunpack.c.l.b16 %v1059
    %v2045 = vunpack.c.h.b16 %v1059
    %v2046 = vunpack.c.l.b16 %v1060
    %v2047 = vunpack.c.h.b16 %v1060
    %v2048 = vunpack.c.l.b16 %v1061
    %v2049 = vunpack.c.h.b16 %v1061
    %v2050 = vunpack.c.l.b16 %v1062
    %v2051 = vunpack.c.h.b16 %v1062
    %v2052 = vunpack.c.l.b16 %v1063
    %v2053 = vunpack.c.h.b16 %v1063
    %v2054 = vunpack.c.l.b16 %v1064
    %v2055 = vunpack.c.h.b16 %v1064
    %v2056 = vunpack.c.l.b16 %v1065
    %v2057 = vunpack.c.h.b16 %v1065
    %v2058 = vunpack.c.l.b16 %v1066
    %v2059 = vunpack.c.h.b16 %v1066
    %v2060 = vunpack.c.l.b16 %v1067
    %v2061 = vunpack.c.h.b16 %v1067
    %v2062 = vunpack.c.l.b16 %v1068
    %v2063 = vunpack.c.h.b16 %v1068
    %v2064 = vunpack.c.l.b16 %v1069
    %v2065 = vunpack.c.h.b16 %v1069
    %v2066 = vunpack.c.l.b16 %v1070
    %v2067 = vunpack.c.h.b16 %v1070
    %v2068 = vunpack.c.l.b16 %v1071
    %v2069 = vunpack.c.h.b16 %v1071
    %v2070 = vunpack.c.l.b16 %v1072
    %v2071 = vunpack.c.h.b16 %v1072
    %v2072 = vunpack.c.l.b16 %v1073
    %v2073 = vunpack.c.h.b16 %v1073
    %v2074 = vunpack.c.l.b16 %v1074
    %v2075 = vunpack.c.h.b16 %v1074
    %v2076 = vunpack.c.l.b16 %v1075
    %v2077 = vunpack.c.h.b16 %v1075
    %v2078 = vunpack.c.l.b16 %v1076
    %v2079 = vunpack.c.h.b16 %v1076
    %v2080 = vunpack.c.l.b16 %v1077
    %v2081 = vunpack.c.h.b16 %v1077
    %v2082 = vunpack.c.l.b16 %v1078
    %v2083 = vunpack.c.h.b16 %v1078
    %v2084 = vunpack.c.l.b16 %v1079
    %v2085 = vunpack.c.h.b16 %v1079
    %v2086 = vunpack.c.l.b16 %v1080
    %v2087 = vunpack.c.h.b16 %v1080
    %v2088 = vunpack.c.l.b16 %v1081
    %v2089 = vunpack.c.h.b16 %v1081
    %v2090 = vunpack.c.l.b16 %v1082
    %v2091 = vunpack.c.h.b16 %v1082
    %v2092 = vunpack.c.l.b16 %v1083
    %v2093 = vunpack.c.h.b16 %v1083
    %v2094 = vunpack.c.l.b16 %v1084
    %v2095 = vunpack.c.h.b16 %v1084
    %v2096 = vunpack.c.l.b16 %v1085
    %v2097 = vunpack.c.h.b16 %v1085
    %v2098 = vunpack.c.l.b16 %v1086
    %v2099 = vunpack.c.h.b16 %v1086
    %v2100 = vunpack.c.l.b16 %v1087
    %v2101 = vunpack.c.h.b16 %v1087
    %v2102 = vunpack.c.l.b16 %v1088
    %v2103 = vunpack.c.h.b16 %v1088
    %v2104 = vunpack.c.l.b16 %v1089
    %v2105 = vunpack.c.h.b16 %v1089
    %v2106 = vunpack.c.l.b16 %v1090
    %v2107 = vunpack.c.h.b16 %v1090
    %v2108 = vunpack.c.l.b16 %v1091
    %v2109 = vunpack.c.h.b16 %v1091
    %v2110 = vunpack.c.l.b16 %v1092
    %v2111 = vunpack.c.h.b16 %v1092
    %v2112 = vunpack.c.l.b16 %v1093
    %v2113 = vunpack.c.h.b16 %v1093
    %v2114 = vunpack.c.l.b16 %v1094
    %v2115 = vunpack.c.h.b16 %v1094
    %v2116 = vunpack.c.l.b16 %v1095
    %v2117 = vunpack.c.h.b16 %v1095
    %v2118 = vunpack.c.l.b16 %v1096
    %v2119 = vunpack.c.h.b16 %v1096
    %v2120 = vunpack.c.l.b16 %v1097
    %v2121 = vunpack.c.h.b16 %v1097
    %v2122 = vunpack.c.l.b16 %v1098
    %v2123 = vunpack.c.h.b16 %v1098
    %v2124 = vunpack.c.l.b16 %v1099
    %v2125 = vunpack.c.h.b16 %v1099
    %v2126 = vunpack.c.l.b16 %v1100
    %v2127 = vunpack.c.h.b16 %v1100
    %v2128 = vunpack.c.l.b16 %v1101
    %v2129 = vunpack.c.h.b16 %v1101
    %v2130 = vunpack.c.l.b16 %v1102
    %v2131 = vunpack.c.h.b16 %v1102
    %v2132 = vunpack.c.l.b16 %v1103
    %v2133 = vunpack.c.h.b16 %v1103
    %v2134 = vunpack.c.l.b16 %v1104
    %v2135 = vunpack.c.h.b16 %v1104
    %v2136 = vunpack.c.l.b16 %v1105
    %v2137 = vunpack.c.h.b16 %v1105
    %v2138 = vunpack.c.l.b16 %v1106
    %v2139 = vunpack.c.h.b16 %v1106
    %v2140 = vunpack.c.l.b16 %v1107
    %v2141 = vunpack.c.h.b16 %v1107
    %v2142 = vunpack.c.l.b16 %v1108
    %v2143 = vunpack.c.h.b16 %v1108
    %v2144 = vunpack.c.l.b16 %v1109
    %v2145 = vunpack.c.h.b16 %v1109
    %v2146 = vunpack.c.l.b16 %v1110
    %v2147 = vunpack.c.h.b16 %v1110
    %v2148 = vunpack.c.l.b16 %v1111
    %v2149 = vunpack.c.h.b16 %v1111
    %v2150 = vunpack.c.l.b16 %v1112
    %v2151 = vunpack.c.h.b16 %v1112
    %v2152 = vunpack.c.l.b16 %v1113
    %v2153 = vunpack.c.h.b16 %v1113
    %v2154 = vunpack.c.l.b16 %v1114
    %v2155 = vunpack.c.h.b16 %v1114
    %v2156 = vunpack.c.l.b16 %v1115
    %v2157 = vunpack.c.h.b16 %v1115
    %v2158 = vunpack.c.l.b16 %v1116
    %v2159 = vunpack.c.h.b16 %v1116
    %v2160 = vunpack.c.l.b16 %v1117
    %v2161 = vunpack.c.h.b16 %v1117
    %v2162 = vunpack.c.l.b16 %v1118
    %v2163 = vunpack.c.h.b16 %v1118
    %v2164 = vunpack.c.l.b16 %v1119
    %v2165 = vunpack.c.h.b16 %v1119
    %v2166 = vunpack.c.l.b16 %v1120
    %v2167 = vunpack.c.h.b16 %v1120
    %v2168 = vunpack.c.l.b16 %v1121
    %v2169 = vunpack.c.h.b16 %v1121
    %v2170 = vunpack.c.l.b16 %v1122
    %v2171 = vunpack.c.h.b16 %v1122
    %v2172 = vunpack.c.l.b16 %v1123
    %v2173 = vunpack.c.h.b16 %v1123
    %v2174 = vunpack.c.l.b16 %v1124
    %v2175 = vunpack.c.h.b16 %v1124
    %v2176 = vunpack.c.l.b16 %v1125
    %v2177 = vunpack.c.h.b16 %v1125
    %v2178 = vunpack.c.l.b16 %v1126
    %v2179 = vunpack.c.h.b16 %v1126
    %v2180 = vunpack.c.l.b16 %v1127
    %v2181 = vunpack.c.h.b16 %v1127
    %v2182 = vunpack.c.l.b16 %v1128
    %v2183 = vunpack.c.h.b16 %v1128
    %v2184 = vunpack.c.l.b16 %v1129
    %v2185 = vunpack.c.h.b16 %v1129
    %v2186 = vunpack.c.l.b16 %v1130
    %v2187 = vunpack.c.h.b16 %v1130
    %v2188 = vunpack.c.l.b16 %v1131
    %v2189 = vunpack.c.h.b16 %v1131
    %v2190 = vunpack.c.l.b16 %v1132
    %v2191 = vunpack.c.h.b16 %v1132
    %v2192 = vunpack.c.l.b16 %v1133
    %v2193 = vunpack.c.h.b16 %v1133
    %v2194 = vunpack.c.l.b16 %v1134
    %v2195 = vunpack.c.h.b16 %v1134
    %v2196 = vunpack.c.l.b16 %v1135
    %v2197 = vunpack.c.h.b16 %v1135
    %v2198 = vunpack.c.l.b16 %v1136
    %v2199 = vunpack.c.h.b16 %v1136
    %v2200 = vunpack.c.l.b16 %v1137
    %v2201 = vunpack.c.h.b16 %v1137
    %v2202 = vunpack.c.l.b16 %v1138
    %v2203 = vunpack.c.h.b16 %v1138
    %v2204 = vunpack.c.l.b16 %v1139
    %v2205 = vunpack.c.h.b16 %v1139
    %v2206 = vunpack.c.l.b16 %v1140
    %v2207 = vunpack.c.h.b16 %v1140
    %v2208 = vunpack.c.l.b16 %v1141
    %v2209 = vunpack.c.h.b16 %v1141
    %v2210 = vunpack.c.l.b16 %v1142
    %v2211 = vunpack.c.h.b16 %v1142
    %v2212 = vunpack.c.l.b16 %v1143
    %v2213 = vunpack.c.h.b16 %v1143
    %v2214 = vunpack.c.l.b16 %v1144
    %v2215 = vunpack.c.h.b16 %v1144
    %v2216 = vunpack.c.l.b16 %v1145
    %v2217 = vunpack.c.h.b16 %v1145
    %v2218 = vunpack.c.l.b16 %v1146
    %v2219 = vunpack.c.h.b16 %v1146
    %v2220 = vunpack.c.l.b16 %v1147
    %v2221 = vunpack.c.h.b16 %v1147
    %v2222 = vunpack.c.l.b16 %v1148
    %v2223 = vunpack.c.h.b16 %v1148
    %v2224 = vunpack.c.l.b16 %v1149
    %v2225 = vunpack.c.h.b16 %v1149
    %v2226 = vunpack.c.l.b16 %v1150
    %v2227 = vunpack.c.h.b16 %v1150
    %v2228 = vunpack.c.l.b16 %v1151
    %v2229 = vunpack.c.h.b16 %v1151
    %v2230 = vunpack.c.l.b16 %v1152
    %v2231 = vunpack.c.h.b16 %v1152
    %v2232 = vunpack.c.l.b16 %v1153
    %v2233 = vunpack.c.h.b16 %v1153
    %v2234 = vunpack.c.l.b16 %v1154
    %v2235 = vunpack.c.h.b16 %v1154
    %v2236 = vunpack.c.l.b16 %v1155
    %v2237 = vunpack.c.h.b16 %v1155
    %v2238 = vunpack.c.l.b16 %v1156
    %v2239 = vunpack.c.h.b16 %v1156
    %v2240 = vunpack.c.l.b16 %v1157
    %v2241 = vunpack.c.h.b16 %v1157
    %v2242 = vunpack.c.l.b16 %v1158
    %v2243 = vunpack.c.h.b16 %v1158
    %v2244 = vunpack.c.l.b16 %v1159
    %v2245 = vunpack.c.h.b16 %v1159
    %v2246 = vunpack.c.l.b16 %v1160
    %v2247 = vunpack.c.h.b16 %v1160
    %v2248 = vunpack.c.l.b16 %v1161
    %v2249 = vunpack.c.h.b16 %v1161
    %v2250 = vunpack.c.l.b16 %v1162
    %v2251 = vunpack.c.h.b16 %v1162
    %v2252 = vunpack.c.l.b16 %v1163
    %v2253 = vunpack.c.h.b16 %v1163
    %v2254 = vunpack.c.l.b16 %v1164
    %v2255 = vunpack.c.h.b16 %v1164
    %v2256 = vunpack.c.l.b16 %v1165
    %v2257 = vunpack.c.h.b16 %v1165
    %v2258 = vunpack.c.l.b16 %v1166
    %v2259 = vunpack.c.h.b16 %v1166
    %v2260 = vunpack.c.l.b16 %v1167
    %v2261 = vunpack.c.h.b16 %v1167
    %v2262 = vunpack.c.l.b16 %v1168
    %v2263 = vunpack.c.h.b16 %v1168
    %v2264 = vunpack.c.l.b16 %v1169
    %v2265 = vunpack.c.h.b16 %v1169
    %v2266 = vunpack.c.l.b16 %v1170
    %v2267 = vunpack.c.h.b16 %v1170
    %v2268 = vunpack.c.l.b16 %v1171
    %v2269 = vunpack.c.h.b16 %v1171
    %v2270 = vunpack.c.l.b16 %v1172
    %v2271 = vunpack.c.h.b16 %v1172
    %v2272 = vunpack.c.l.b16 %v1173
    %v2273 = vunpack.c.h.b16 %v1173
    %v2274 = vunpack.c.l.b16 %v1174
    %v2275 = vunpack.c.h.b16 %v1174
    %v2276 = vunpack.c.l.b16 %v1175
    %v2277 = vunpack.c.h.b16 %v1175
    %v2278 = vunpack.c.l.b16 %v1176
    %v2279 = vunpack.c.h.b16 %v1176
    %v2280 = vunpack.c.l.b16 %v1177
    %v2281 = vunpack.c.h.b16 %v1177
    %v2282 = vunpack.c.l.b16 %v1178
    %v2283 = vunpack.c.h.b16 %v1178
    %v2284 = vunpack.c.l.b16 %v1179
    %v2285 = vunpack.c.h.b16 %v1179
    %v2286 = vunpack.c.l.b16 %v1180
    %v2287 = vunpack.c.h.b16 %v1180
    %v2288 = vunpack.c.l.b16 %v1181
    %v2289 = vunpack.c.h.b16 %v1181
    %v2290 = vunpack.c.l.b16 %v1182
    %v2291 = vunpack.c.h.b16 %v1182
    %v2292 = vunpack.c.l.b16 %v1183
    %v2293 = vunpack.c.h.b16 %v1183
    %v2294 = vunpack.c.l.b16 %v1184
    %v2295 = vunpack.c.h.b16 %v1184
    %v2296 = vunpack.c.l.b16 %v1185
    %v2297 = vunpack.c.h.b16 %v1185
    %v2298 = vunpack.c.l.b16 %v1186
    %v2299 = vunpack.c.h.b16 %v1186
    %v2300 = vunpack.c.l.b16 %v1187
    %v2301 = vunpack.c.h.b16 %v1187
    %v2302 = vunpack.c.l.b16 %v1188
    %v2303 = vunpack.c.h.b16 %v1188
    %v2304 = vunpack.c.l.b16 %v1189
    %v2305 = vunpack.c.h.b16 %v1189
    %v2306 = vunpack.c.l.b16 %v1190
    %v2307 = vunpack.c.h.b16 %v1190
    %v2308 = vunpack.c.l.b16 %v1191
    %v2309 = vunpack.c.h.b16 %v1191
    %v2310 = vunpack.c.l.b16 %v1192
    %v2311 = vunpack.c.h.b16 %v1192
    %v2312 = vunpack.c.l.b16 %v1193
    %v2313 = vunpack.c.h.b16 %v1193
    %v2314 = vunpack.c.l.b16 %v1194
    %v2315 = vunpack.c.h.b16 %v1194
    %v2316 = vunpack.c.l.b16 %v1195
    %v2317 = vunpack.c.h.b16 %v1195
    %v2318 = vunpack.c.l.b16 %v1196
    %v2319 = vunpack.c.h.b16 %v1196
    %v2320 = vunpack.c.l.b16 %v1197
    %v2321 = vunpack.c.h.b16 %v1197
    %v2322 = vunpack.c.l.b16 %v1198
    %v2323 = vunpack.c.h.b16 %v1198
    %v2324 = vunpack.c.l.b16 %v1199
    %v2325 = vunpack.c.h.b16 %v1199
    %v2326 = vunpack.c.l.b16 %v1200
    %v2327 = vunpack.c.h.b16 %v1200
    %v2328 = vunpack.c.l.b16 %v1201
    %v2329 = vunpack.c.h.b16 %v1201
    %v2330 = vunpack.c.l.b16 %v1202
    %v2331 = vunpack.c.h.b16 %v1202
    %v2332 = vunpack.c.l.b16 %v1203
    %v2333 = vunpack.c.h.b16 %v1203
    %v2334 = vunpack.c.l.b16 %v1204
    %v2335 = vunpack.c.h.b16 %v1204
    %v2336 = vunpack.c.l.b16 %v1205
    %v2337 = vunpack.c.h.b16 %v1205
    %v2338 = vunpack.c.l.b16 %v1206
    %v2339 = vunpack.c.h.b16 %v1206
    %v2340 = vunpack.c.l.b16 %v1207
    %v2341 = vunpack.c.h.b16 %v1207
    %v2342 = vunpack.c.l.b16 %v1208
    %v2343 = vunpack.c.h.b16 %v1208
    %v2344 = vunpack.c.l.b16 %v1209
    %v2345 = vunpack.c.h.b16 %v1209
    %v2346 = vunpack.c.l.b16 %v1210
    %v2347 = vunpack.c.h.b16 %v1210
    %v2348 = vunpack.c.l.b16 %v1211
    %v2349 = vunpack.c.h.b16 %v1211
    %v2350 = vunpack.c.l.b16 %v1212
    %v2351 = vunpack.c.h.b16 %v1212
    %v2352 = vunpack.c.l.b16 %v1213
    %v2353 = vunpack.c.h.b16 %v1213
    %v2354 = vunpack.c.l.b16 %v1214
    %v2355 = vunpack.c.h.b16 %v1214
    %v2356 = vunpack.c.l.b16 %v1215
    %v2357 = vunpack.c.h.b16 %v1215
    %v2358 = vunpack.c.l.b16 %v1216
    %v2359 = vunpack.c.h.b16 %v1216
    %v2360 = vunpack.c.l.b16 %v1217
    %v2361 = vunpack.c.h.b16 %v1217
    %v2362 = vunpack.c.l.b16 %v1218
    %v2363 = vunpack.c.h.b16 %v1218
    %v2364 = vunpack.c.l.b16 %v1219
    %v2365 = vunpack.c.h.b16 %v1219
    %v2366 = vunpack.c.l.b16 %v1220
    %v2367 = vunpack.c.h.b16 %v1220
    %v2368 = vunpack.c.l.b16 %v1221
    %v2369 = vunpack.c.h.b16 %v1221
    %v2370 = vunpack.c.l.b16 %v1222
    %v2371 = vunpack.c.h.b16 %v1222
    %v2372 = vunpack.c.l.b16 %v1223
    %v2373 = vunpack.c.h.b16 %v1223
    %v2374 = vunpack.c.l.b16 %v1224
    %v2375 = vunpack.c.h.b16 %v1224
    %v2376 = vunpack.c.l.b16 %v1225
    %v2377 = vunpack.c.h.b16 %v1225
    %v2378 = vunpack.c.l.b16 %v1226
    %v2379 = vunpack.c.h.b16 %v1226
    %v2380 = vunpack.c.l.b16 %v1227
    %v2381 = vunpack.c.h.b16 %v1227
    %v2382 = vunpack.c.l.b16 %v1228
    %v2383 = vunpack.c.h.b16 %v1228
    %v2384 = vunpack.c.l.b16 %v1229
    %v2385 = vunpack.c.h.b16 %v1229
    %v2386 = vunpack.c.l.b16 %v1230
    %v2387 = vunpack.c.h.b16 %v1230
    %v2388 = vunpack.c.l.b16 %v1231
    %v2389 = vunpack.c.h.b16 %v1231
    %v2390 = vunpack.c.l.b16 %v1232
    %v2391 = vunpack.c.h.b16 %v1232
    %v2392 = vunpack.c.l.b16 %v1233
    %v2393 = vunpack.c.h.b16 %v1233
    %v2394 = vunpack.c.l.b16 %v1234
    %v2395 = vunpack.c.h.b16 %v1234
    %v2396 = vunpack.c.l.b16 %v1235
    %v2397 = vunpack.c.h.b16 %v1235
    %v2398 = vunpack.c.l.b16 %v1236
    %v2399 = vunpack.c.h.b16 %v1236
    %v2400 = vunpack.c.l.b16 %v1237
    %v2401 = vunpack.c.h.b16 %v1237
    %v2402 = vunpack.c.l.b16 %v1238
    %v2403 = vunpack.c.h.b16 %v1238
    %v2404 = vunpack.c.l.b16 %v1239
    %v2405 = vunpack.c.h.b16 %v1239
    %v2406 = vunpack.c.l.b16 %v1240
    %v2407 = vunpack.c.h.b16 %v1240
    %v2408 = vunpack.c.l.b16 %v1241
    %v2409 = vunpack.c.h.b16 %v1241
    %v2410 = vunpack.c.l.b16 %v1242
    %v2411 = vunpack.c.h.b16 %v1242
    %v2412 = vunpack.c.l.b16 %v1243
    %v2413 = vunpack.c.h.b16 %v1243
    %v2414 = vunpack.c.l.b16 %v1244
    %v2415 = vunpack.c.h.b16 %v1244
    %v2416 = vunpack.c.l.b16 %v1245
    %v2417 = vunpack.c.h.b16 %v1245
    %v2418 = vunpack.c.l.b16 %v1246
    %v2419 = vunpack.c.h.b16 %v1246
    %v2420 = vunpack.c.l.b16 %v1247
    %v2421 = vunpack.c.h.b16 %v1247
    %v2422 = vunpack.c.l.b16 %v1248
    %v2423 = vunpack.c.h.b16 %v1248
    %v2424 = vunpack.c.l.b16 %v1249
    %v2425 = vunpack.c.h.b16 %v1249
    %v2426 = vunpack.c.l.b16 %v1250
    %v2427 = vunpack.c.h.b16 %v1250
    %v2428 = vunpack.c.l.b16 %v1251
    %v2429 = vunpack.c.h.b16 %v1251
    %v2430 = vunpack.c.l.b16 %v1252
    %v2431 = vunpack.c.h.b16 %v1252
    %v2432 = vunpack.c.l.b16 %v1253
    %v2433 = vunpack.c.h.b16 %v1253
    %v2434 = vunpack.c.l.b16 %v1254
    %v2435 = vunpack.c.h.b16 %v1254
    %v2436 = vunpack.c.l.b16 %v1255
    %v2437 = vunpack.c.h.b16 %v1255
    %v2438 = vunpack.c.l.b16 %v1256
    %v2439 = vunpack.c.h.b16 %v1256
    %v2440 = vunpack.c.l.b16 %v1257
    %v2441 = vunpack.c.h.b16 %v1257
    %v2442 = vunpack.c.l.b16 %v1258
    %v2443 = vunpack.c.h.b16 %v1258
    %v2444 = vunpack.c.l.b16 %v1259
    %v2445 = vunpack.c.h.b16 %v1259
    %v2446 = vunpack.c.l.b16 %v1260
    %v2447 = vunpack.c.h.b16 %v1260
    %v2448 = vunpack.c.l.b16 %v1261
    %v2449 = vunpack.c.h.b16 %v1261
    %v2450 = vunpack.c.l.b16 %v1262
    %v2451 = vunpack.c.h.b16 %v1262
    %v2452 = vunpack.c.l.b16 %v1263
    %v2453 = vunpack.c.h.b16 %v1263
    %v2454 = vunpack.c.l.b16 %v1264
    %v2455 = vunpack.c.h.b16 %v1264
    %v2456 = vunpack.c.l.b16 %v1265
    %v2457 = vunpack.c.h.b16 %v1265
    %v2458 = vunpack.c.l.b16 %v1266
    %v2459 = vunpack.c.h.b16 %v1266
    %v2460 = vunpack.c.l.b16 %v1267
    %v2461 = vunpack.c.h.b16 %v1267
    %v2462 = vunpack.c.l.b16 %v1268
    %v2463 = vunpack.c.h.b16 %v1268
    %v2464 = vunpack.c.l.b16 %v1269
    %v2465 = vunpack.c.h.b16 %v1269
    %v2466 = vunpack.c.l.b16 %v1270
    %v2467 = vunpack.c.h.b16 %v1270
    %v2468 = vunpack.c.l.b16 %v1271
    %v2469 = vunpack.c.h.b16 %v1271
    %v2470 = vunpack.c.l.b16 %v1272
    %v2471 = vunpack.c.h.b16 %v1272
    %v2472 = vunpack.c.l.b16 %v1273
    %v2473 = vunpack.c.h.b16 %v1273
    %v2474 = vunpack.c.l.b16 %v1274
    %v2475 = vunpack.c.h.b16 %v1274
    %v2476 = vunpack.c.l.b16 %v1275
    %v2477 = vunpack.c.h.b16 %v1275
    %v2478 = vunpack.c.l.b16 %v1276
    %v2479 = vunpack.c.h.b16 %v1276
    %v2480 = vunpack.c.l.b16 %v1277
    %v2481 = vunpack.c.h.b16 %v1277
    %v2482 = vunpack.c.l.b16 %v1278
    %v2483 = vunpack.c.h.b16 %v1278
    %v2484 = vunpack.c.l.b16 %v1279
    %v2485 = vunpack.c.h.b16 %v1279
    %v2486 = vunpack.c.l.b16 %v1280
    %v2487 = vunpack.c.h.b16 %v1280
    %v2488 = vunpack.c.l.b16 %v1281
    %v2489 = vunpack.c.h.b16 %v1281
    %v2490 = vunpack.c.l.b16 %v1282
    %v2491 = vunpack.c.h.b16 %v1282
    %v2492 = vunpack.c.l.b16 %v1283
    %v2493 = vunpack.c.h.b16 %v1283
    %v2494 = vunpack.c.l.b16 %v1284
    %v2495 = vunpack.c.h.b16 %v1284
    %v2496 = vunpack.c.l.b16 %v1285
    %v2497 = vunpack.c.h.b16 %v1285
    %v2498 = vunpack.c.l.b16 %v1286
    %v2499 = vunpack.c.h.b16 %v1286
    %v2500 = vunpack.c.l.b16 %v1287
    %v2501 = vunpack.c.h.b16 %v1287
    %v2502 = vunpack.c.l.b16 %v1288
    %v2503 = vunpack.c.h.b16 %v1288
    %v2504 = vunpack.c.l.b16 %v1289
    %v2505 = vunpack.c.h.b16 %v1289
    %v2506 = vunpack.c.l.b16 %v1290
    %v2507 = vunpack.c.h.b16 %v1290
    %v2508 = vunpack.c.l.b16 %v1291
    %v2509 = vunpack.c.h.b16 %v1291
    %v2510 = vunpack.c.l.b16 %v1292
    %v2511 = vunpack.c.h.b16 %v1292
    %v2512 = vunpack.c.l.b16 %v1293
    %v2513 = vunpack.c.h.b16 %v1293
    %v2514 = vunpack.c.l.b16 %v1294
    %v2515 = vunpack.c.h.b16 %v1294
    %v2516 = vunpack.c.l.b16 %v1295
    %v2517 = vunpack.c.h.b16 %v1295
    %v2518 = vunpack.c.l.b16 %v1296
    %v2519 = vunpack.c.h.b16 %v1296
    %v2520 = vunpack.c.l.b16 %v1297
    %v2521 = vunpack.c.h.b16 %v1297
    %v2522 = vunpack.c.l.b16 %v1298
    %v2523 = vunpack.c.h.b16 %v1298
    %v2524 = vunpack.c.l.b16 %v1299
    %v2525 = vunpack.c.h.b16 %v1299
    %v2526 = vunpack.c.l.b16 %v1300
    %v2527 = vunpack.c.h.b16 %v1300
    %v2528 = vunpack.c.l.b16 %v1301
    %v2529 = vunpack.c.h.b16 %v1301
    %v2530 = vunpack.c.l.b16 %v1302
    %v2531 = vunpack.c.h.b16 %v1302
    %v2532 = vunpack.c.l.b16 %v1303
    %v2533 = vunpack.c.h.b16 %v1303
    %v2534 = vunpack.c.l.b16 %v1304
    %v2535 = vunpack.c.h.b16 %v1304
    %v2536 = vunpack.c.l.b16 %v1305
    %v2537 = vunpack.c.h.b16 %v1305
    %v2538 = vunpack.c.l.b16 %v1306
    %v2539 = vunpack.c.h.b16 %v1306
    %v2540 = vunpack.c.l.b16 %v1307
    %v2541 = vunpack.c.h.b16 %v1307
    %v2542 = vunpack.c.l.b16 %v1308
    %v2543 = vunpack.c.h.b16 %v1308
    %v2544 = vunpack.c.l.b16 %v1309
    %v2545 = vunpack.c.h.b16 %v1309
    %v2546 = vunpack.c.l.b16 %v1310
    %v2547 = vunpack.c.h.b16 %v1310
    %v2548 = vunpack.c.l.b16 %v1311
    %v2549 = vunpack.c.h.b16 %v1311
    %v2550 = vunpack.c.l.b16 %v1312
    %v2551 = vunpack.c.h.b16 %v1312
    %v2552 = vunpack.c.l.b16 %v1313
    %v2553 = vunpack.c.h.b16 %v1313
    %v2554 = vunpack.c.l.b16 %v1314
    %v2555 = vunpack.c.h.b16 %v1314
    %v2556 = vunpack.c.l.b16 %v1315
    %v2557 = vunpack.c.h.b16 %v1315
    %v2558 = vunpack.c.l.b16 %v1316
    %v2559 = vunpack.c.h.b16 %v1316
    %v2560 = vunpack.c.l.b16 %v1317
    %v2561 = vunpack.c.h.b16 %v1317
    %v2562 = vunpack.c.l.b16 %v1318
    %v2563 = vunpack.c.h.b16 %v1318
    %v2564 = vunpack.c.l.b16 %v1319
    %v2565 = vunpack.c.h.b16 %v1319
    %v2566 = vunpack.c.l.b16 %v1320
    %v2567 = vunpack.c.h.b16 %v1320
    %v2568 = vunpack.c.l.b16 %v1321
    %v2569 = vunpack.c.h.b16 %v1321
    %v2570 = vunpack.c.l.b16 %v1322
    %v2571 = vunpack.c.h.b16 %v1322
    %v2572 = vunpack.c.l.b16 %v1323
    %v2573 = vunpack.c.h.b16 %v1323
    %v2574 = vunpack.c.l.b16 %v1324
    %v2575 = vunpack.c.h.b16 %v1324
    %v2576 = vunpack.c.l.b16 %v1325
    %v2577 = vunpack.c.h.b16 %v1325
    %v2578 = vunpack.c.l.b16 %v1326
    %v2579 = vunpack.c.h.b16 %v1326
    %v2580 = vunpack.c.l.b16 %v1327
    %v2581 = vunpack.c.h.b16 %v1327
    %v2582 = vunpack.c.l.b16 %v1328
    %v2583 = vunpack.c.h.b16 %v1328
    %v2584 = vunpack.c.l.b16 %v1329
    %v2585 = vunpack.c.h.b16 %v1329
    %v2586 = vunpack.c.l.b16 %v1330
    %v2587 = vunpack.c.h.b16 %v1330
    %v2588 = vunpack.c.l.b16 %v1331
    %v2589 = vunpack.c.h.b16 %v1331
    %v2590 = vunpack.c.l.b16 %v1332
    %v2591 = vunpack.c.h.b16 %v1332
    %v2592 = vunpack.c.l.b16 %v1333
    %v2593 = vunpack.c.h.b16 %v1333
    %v2594 = vunpack.c.l.b16 %v1334
    %v2595 = vunpack.c.h.b16 %v1334
    %v2596 = vunpack.c.l.b16 %v1335
    %v2597 = vunpack.c.h.b16 %v1335
    %v2598 = vunpack.c.l.b16 %v1336
    %v2599 = vunpack.c.h.b16 %v1336
    %v2600 = vunpack.c.l.b16 %v1337
    %v2601 = vunpack.c.h.b16 %v1337
    %v2602 = vunpack.c.l.b16 %v1338
    %v2603 = vunpack.c.h.b16 %v1338
    %v2604 = vunpack.c.l.b16 %v1339
    %v2605 = vunpack.c.h.b16 %v1339
    %v2606 = vunpack.c.l.b16 %v1340
    %v2607 = vunpack.c.h.b16 %v1340
    %v2608 = vunpack.c.l.b16 %v1341
    %v2609 = vunpack.c.h.b16 %v1341
    %v2610 = vunpack.c.l.b16 %v1342
    %v2611 = vunpack.c.h.b16 %v1342
    %v2612 = vunpack.c.l.b16 %v1343
    %v2613 = vunpack.c.h.b16 %v1343
    %v2614 = vunpack.c.l.b16 %v1344
    %v2615 = vunpack.c.h.b16 %v1344
    %v2616 = vunpack.c.l.b16 %v1345
    %v2617 = vunpack.c.h.b16 %v1345
    %v2618 = vunpack.c.l.b16 %v1346
    %v2619 = vunpack.c.h.b16 %v1346
    %v2620 = vunpack.c.l.b16 %v1347
    %v2621 = vunpack.c.h.b16 %v1347
    %v2622 = vunpack.c.l.b16 %v1348
    %v2623 = vunpack.c.h.b16 %v1348
    %v2624 = vunpack.c.l.b16 %v1349
    %v2625 = vunpack.c.h.b16 %v1349
    %v2626 = vunpack.c.l.b16 %v1350
    %v2627 = vunpack.c.h.b16 %v1350
    %v2628 = vunpack.c.l.b16 %v1351
    %v2629 = vunpack.c.h.b16 %v1351
    %v2630 = vunpack.c.l.b16 %v1352
    %v2631 = vunpack.c.h.b16 %v1352
    %v2632 = vunpack.c.l.b16 %v1353
    %v2633 = vunpack.c.h.b16 %v1353
    %v2634 = vunpack.c.l.b16 %v1354
    %v2635 = vunpack.c.h.b16 %v1354
    %v2636 = vunpack.c.l.b16 %v1355
    %v2637 = vunpack.c.h.b16 %v1355
    %v2638 = vunpack.c.l.b16 %v1356
    %v2639 = vunpack.c.h.b16 %v1356
    %v2640 = vunpack.c.l.b16 %v1357
    %v2641 = vunpack.c.h.b16 %v1357
    %v2642 = vunpack.c.l.b16 %v1358
    %v2643 = vunpack.c.h.b16 %v1358
    %v2644 = vunpack.c.l.b16 %v1359
    %v2645 = vunpack.c.h.b16 %v1359
    %v2646 = vunpack.c.l.b16 %v1360
    %v2647 = vunpack.c.h.b16 %v1360
    %v2648 = vunpack.c.l.b16 %v1361
    %v2649 = vunpack.c.h.b16 %v1361
    %v2650 = vunpack.c.l.b16 %v1362
    %v2651 = vunpack.c.h.b16 %v1362
    %v2652 = vunpack.c.l.b16 %v1363
    %v2653 = vunpack.c.h.b16 %v1363
    %v2654 = vunpack.c.l.b16 %v1364
    %v2655 = vunpack.c.h.b16 %v1364
    %v2656 = vunpack.c.l.b16 %v1365
    %v2657 = vunpack.c.h.b16 %v1365
    %v2658 = vunpack.c.l.b16 %v1366
    %v2659 = vunpack.c.h.b16 %v1366
    %v2660 = vunpack.c.l.b16 %v1367
    %v2661 = vunpack.c.h.b16 %v1367
    %v2662 = vunpack.c.l.b16 %v1368
    %v2663 = vunpack.c.h.b16 %v1368
    %v2664 = vunpack.c.l.b16 %v1369
    %v2665 = vunpack.c.h.b16 %v1369
    %v2666 = vunpack.c.l.b16 %v1370
    %v2667 = vunpack.c.h.b16 %v1370
    %v2668 = vunpack.c.l.b16 %v1371
    %v2669 = vunpack.c.h.b16 %v1371
    %v2670 = vunpack.c.l.b16 %v1372
    %v2671 = vunpack.c.h.b16 %v1372
    %v2672 = vunpack.c.l.b16 %v1373
    %v2673 = vunpack.c.h.b16 %v1373
    %v2674 = vunpack.c.l.b16 %v1374
    %v2675 = vunpack.c.h.b16 %v1374
    %v2676 = vunpack.c.l.b16 %v1375
    %v2677 = vunpack.c.h.b16 %v1375
    %v2678 = vunpack.c.l.b16 %v1376
    %v2679 = vunpack.c.h.b16 %v1376
    %v2680 = vunpack.c.l.b16 %v1377
    %v2681 = vunpack.c.h.b16 %v1377
    %v2682 = vunpack.c.l.b16 %v1378
    %v2683 = vunpack.c.h.b16 %v1378
    %v2684 = vunpack.c.l.b16 %v1379
    %v2685 = vunpack.c.h.b16 %v1379
    %v2686 = vunpack.c.l.b16 %v1380
    %v2687 = vunpack.c.h.b16 %v1380
    %v2688 = vunpack.c.l.b16 %v1381
    %v2689 = vunpack.c.h.b16 %v1381
    %v2690 = vunpack.c.l.b16 %v1382
    %v2691 = vunpack.c.h.b16 %v1382
    %v2692 = vunpack.c.l.b16 %v1383
    %v2693 = vunpack.c.h.b16 %v1383
    %v2694 = vpack.c.b16 %v1836, %v1830
    %v2695 = vpack.c.b16 %v1837, %v1831
    %v2696 = vpack.c.b16 %v1838, %v1832
    %v2697 = vpack.c.b16 %v1839, %v1833
    %v2698 = vpack.c.b16 %v1840, %v1834
    %v2699 = vpack.c.b16 %v1841, %v1835
    %v2700 = vpack.c.b16 %v1848, %v1842
    %v2701 = vpack.c.b16 %v1849, %v1843
    %v2702 = vpack.c.b16 %v1850, %v1844
    %v2703 = vpack.c.b16 %v1851, %v1845
    %v2704 = vpack.c.b16 %v1852, %v1846
    %v2705 = vpack.c.b16 %v1853, %v1847
    %v2706 = vpack.c.b16 %v1860, %v1854
    %v2707 = vpack.c.b16 %v1861, %v1855
    %v2708 = vpack.c.b16 %v1862, %v1856
    %v2709 = vpack.c.b16 %v1863, %v1857
    %v2710 = vpack.c.b16 %v1864, %v1858
    %v2711 = vpack.c.b16 %v1865, %v1859
    %v2712 = vpack.c.b16 %v1872, %v1866
    %v2713 = vpack.c.b16 %v1873, %v1867
    %v2714 = vpack.c.b16 %v1874, %v1868
    %v2715 = vpack.c.b16 %v1875, %v1869
    %v2716 = vpack.c.b16 %v1876, %v1870
    %v2717 = vpack.c.b16 %v1877, %v1871
    %v2718 = vpack.c.b16 %v1884, %v1878
    %v2719 = vpack.c.b16 %v1885, %v1879
    %v2720 = vpack.c.b16 %v1886, %v1880
    %v2721 = vpack.c.b16 %v1887, %v1881
    %v2722 = vpack.c.b16 %v1888, %v1882
    %v2723 = vpack.c.b16 %v1889, %v1883
    %v2724 = vpack.c.b16 %v1896, %v1890
    %v2725 = vpack.c.b16 %v1897, %v1891
    %v2726 = vpack.c.b16 %v1898, %v1892
    %v2727 = vpack.c.b16 %v1899, %v1893
    %v2728 = vpack.c.b16 %v1900, %v1894
    %v2729 = vpack.c.b16 %v1901, %v1895
    %v2730 = vpack.c.b16 %v1908, %v1902
    %v2731 = vpack.c.b16 %v1909, %v1903
    %v2732 = vpack.c.b16 %v1910, %v1904
    %v2733 = vpack.c.b16 %v1911, %v1905
    %v2734 = vpack.c.b16 %v1912, %v1906
    %v2735 = vpack.c.b16 %v1913, %v1907
    %v2736 = vpack.c.b16 %v1920, %v1914
    %v2737 = vpack.c.b16 %v1921, %v1915
    %v2738 = vpack.c.b16 %v1922, %v1916
    %v2739 = vpack.c.b16 %v1923, %v1917
    %v2740 = vpack.c.b16 %v1924, %v1918
    %v2741 = vpack.c.b16 %v1925, %v1919
    %v2742 = vpack.c.b16 %v1932, %v1926
    %v2743 = vpack.c.b16 %v1933, %v1927
    %v2744 = vpack.c.b16 %v1934, %v1928
    %v2745 = vpack.c.b16 %v1935, %v1929
    %v2746 = vpack.c.b16 %v1936, %v1930
    %v2747 = vpack.c.b16 %v1937, %v1931
    %v2748 = vpack.c.b16 %v1944, %v1938
    %v2749 = vpack.c.b16 %v1945, %v1939
    %v2750 = vpack.c.b16 %v1946, %v1940
    %v2751 = vpack.c.b16 %v1947, %v1941
    %v2752 = vpack.c.b16 %v1948, %v1942
    %v2753 = vpack.c.b16 %v1949, %v1943
    %v2754 = vpack.c.b16 %v1956, %v1950
    %v2755 = vpack.c.b16 %v1957, %v1951
    %v2756 = vpack.c.b16 %v1958, %v1952
    %v2757 = vpack.c.b16 %v1959, %v1953
    %v2758 = vpack.c.b16 %v1960, %v1954
    %v2759 = vpack.c.b16 %v1961, %v1955
    %v2760 = vpack.c.b16 %v1968, %v1962
    %v2761 = vpack.c.b16 %v1969, %v1963
    %v2762 = vpack.c.b16 %v1970, %v1964
    %v2763 = vpack.c.b16 %v1971, %v1965
    %v2764 = vpack.c.b16 %v1972, %v1966
    %v2765 = vpack.c.b16 %v1973, %v1967
    %v2766 = vpack.c.b16 %v1980, %v1974
    %v2767 = vpack.c.b16 %v1981, %v1975
    %v2768 = vpack.c.b16 %v1982, %v1976
    %v2769 = vpack.c.b16 %v1983, %v1977
    %v2770 = vpack.c.b16 %v1984, %v1978
    %v2771 = vpack.c.b16 %v1985, %v1979
    %v2772 = vpack.c.b16 %v1992, %v1986
    %v2773 = vpack.c.b16 %v1993, %v1987
    %v2774 = vpack.c.b16 %v1994, %v1988
    %v2775 = vpack.c.b16 %v1995, %v1989
    %v2776 = vpack.c.b16 %v1996, %v1990
    %v2777 = vpack.c.b16 %v1997, %v1991
    %v2778 = vpack.c.b16 %v2004, %v1998
    %v2779 = vpack.c.b16 %v2005, %v1999
    %v2780 = vpack.c.b16 %v2006, %v2000
    %v2781 = vpack.c.b16 %v2007, %v2001
    %v2782 = vpack.c.b16 %v2008, %v2002
    %v2783 = vpack.c.b16 %v2009, %v2003
    %v2784 = vpack.c.b16 %v2016, %v2010
    %v2785 = vpack.c.b16 %v2017, %v2011
    %v2786 = vpack.c.b16 %v2018, %v2012
    %v2787 = vpack.c.b16 %v2019, %v2013
    %v2788 = vpack.c.b16 %v2020, %v2014
    %v2789 = vpack.c.b16 %v2021, %v2015
    %v2790 = vpack.c.b16 %v2028, %v2022
    %v2791 = vpack.c.b16 %v2029, %v2023
    %v2792 = vpack.c.b16 %v2030, %v2024
    %v2793 = vpack.c.b16 %v2031, %v2025
    %v2794 = vpack.c.b16 %v2032, %v2026
    %v2795 = vpack.c.b16 %v2033, %v2027
    %v2796 = vpack.c.b16 %v2040, %v2034
    %v2797 = vpack.c.b16 %v2041, %v2035
    %v2798 = vpack.c.b16 %v2042, %v2036
    %v2799 = vpack.c.b16 %v2043, %v2037
    %v2800 = vpack.c.b16 %v2044, %v2038
    %v2801 = vpack.c.b16 %v2045, %v2039
    %v2802 = vpack.c.b16 %v2052, %v2046
    %v2803 = vpack.c.b16 %v2053, %v2047
    %v2804 = vpack.c.b16 %v2054, %v2048
    %v2805 = vpack.c.b16 %v2055, %v2049
    %v2806 = vpack.c.b16 %v2056, %v2050
    %v2807 = vpack.c.b16 %v2057, %v2051
    %v2808 = vpack.c.b16 %v2064, %v2058
    %v2809 = vpack.c.b16 %v2065, %v2059
    %v2810 = vpack.c.b16 %v2066, %v2060
    %v2811 = vpack.c.b16 %v2067, %v2061
    %v2812 = vpack.c.b16 %v2068, %v2062
    %v2813 = vpack.c.b16 %v2069, %v2063
    %v2814 = vpack.c.b16 %v2076, %v2070
    %v2815 = vpack.c.b16 %v2077, %v2071
    %v2816 = vpack.c.b16 %v2078, %v2072
    %v2817 = vpack.c.b16 %v2079, %v2073
    %v2818 = vpack.c.b16 %v2080, %v2074
    %v2819 = vpack.c.b16 %v2081, %v2075
    %v2820 = vpack.c.b16 %v2088, %v2082
    %v2821 = vpack.c.b16 %v2089, %v2083
    %v2822 = vpack.c.b16 %v2090, %v2084
    %v2823 = vpack.c.b16 %v2091, %v2085
    %v2824 = vpack.c.b16 %v2092, %v2086
    %v2825 = vpack.c.b16 %v2093, %v2087
    %v2826 = vpack.c.b16 %v2100, %v2094
    %v2827 = vpack.c.b16 %v2101, %v2095
    %v2828 = vpack.c.b16 %v2102, %v2096
    %v2829 = vpack.c.b16 %v2103, %v2097
    %v2830 = vpack.c.b16 %v2104, %v2098
    %v2831 = vpack.c.b16 %v2105, %v2099
    %v2832 = vpack.c.b16 %v2112, %v2106
    %v2833 = vpack.c.b16 %v2113, %v2107
    %v2834 = vpack.c.b16 %v2114, %v2108
    %v2835 = vpack.c.b16 %v2115, %v2109
    %v2836 = vpack.c.b16 %v2116, %v2110
    %v2837 = vpack.c.b16 %v2117, %v2111
    %v2838 = vpack.c.b16 %v2124, %v2118
    %v2839 = vpack.c.b16 %v2125, %v2119
    %v2840 = vpack.c.b16 %v2126, %v2120
    %v2841 = vpack.c.b16 %v2127, %v2121
    %v2842 = vpack.c.b16 %v2128, %v2122
    %v2843 = vpack.c.b16 %v2129, %v2123
    %v2844 = vpack.c.b16 %v2136, %v2130
    %v2845 = vpack.c.b16 %v2137, %v2131
    %v2846 = vpack.c.b16 %v2138, %v2132
    %v2847 = vpack.c.b16 %v2139, %v2133
    %v2848 = vpack.c.b16 %v2140, %v2134
    %v2849 = vpack.c.b16 %v2141, %v2135
    %v2850 = vpack.c.b16 %v2148, %v2142
    %v2851 = vpack.c.b16 %v2149, %v2143
    %v2852 = vpack.c.b16 %v2150, %v2144
    %v2853 = vpack.c.b16 %v2151, %v2145
    %v2854 = vpack.c.b16 %v2152, %v2146
    %v2855 = vpack.c.b16 %v2153, %v2147
    %v2856 = vpack.c.b16 %v2160, %v2154
    %v2857 = vpack.c.b16 %v2161, %v2155
    %v2858 = vpack.c.b16 %v2162, %v2156
    %v2859 = vpack.c.b16 %v2163, %v2157
    %v2860 = vpack.c.b16 %v2164, %v2158
    %v2861 = vpack.c.b16 %v2165, %v2159
    %v2862 = vpack.c.b16 %v2172, %v2166
    %v2863 = vpack.c.b16 %v2173, %v2167
    %v2864 = vpack.c.b16 %v2174, %v2168
    %v2865 = vpack.c.b16 %v2175, %v2169
    %v2866 = vpack.c.b16 %v2176, %v2170
    %v2867 = vpack.c.b16 %v2177, %v2171
    %v2868 = vpack.c.b16 %v2184, %v2178
    %v2869 = vpack.c.b16 %v2185, %v2179
    %v2870 = vpack.c.b16 %v2186, %v2180
    %v2871 = vpack.c.b16 %v2187, %v2181
    %v2872 = vpack.c.b16 %v2188, %v2182
    %v2873 = vpack.c.b16 %v2189, %v2183
    %v2874 = vpack.c.b16 %v2196, %v2190
    %v2875 = vpack.c.b16 %v2197, %v2191
    %v2876 = vpack.c.b16 %v2198, %v2192
    %v2877 = vpack.c.b16 %v2199, %v2193
    %v2878 = vpack.c.b16 %v2200, %v2194
    %v2879 = vpack.c.b16 %v2201, %v2195
    %v2880 = vpack.c.b16 %v2208, %v2202
    %v2881 = vpack.c.b16 %v2209, %v2203
    %v2882 = vpack.c.b16 %v2210, %v2204
    %v2883 = vpack.c.b16 %v2211, %v2205
    %v2884 = vpack.c.b16 %v2212, %v2206
    %v2885 = vpack.c.b16 %v2213, %v2207
    %v2886 = vpack.c.b16 %v2220, %v2214
    %v2887 = vpack.c.b16 %v2221, %v2215
    %v2888 = vpack.c.b16 %v2222, %v2216
    %v2889 = vpack.c.b16 %v2223, %v2217
    %v2890 = vpack.c.b16 %v2224, %v2218
    %v2891 = vpack.c.b16 %v2225, %v2219
    %v2892 = vpack.c.b16 %v2232, %v2226
    %v2893 = vpack.c.b16 %v2233, %v2227
    %v2894 = vpack.c.b16 %v2234, %v2228
    %v2895 = vpack.c.b16 %v2235, %v2229
    %v2896 = vpack.c.b16 %v2236, %v2230
    %v2897 = vpack.c.b16 %v2237, %v2231
    %v2898 = vpack.c.b16 %v2244, %v2238
    %v2899 = vpack.c.b16 %v2245, %v2239
    %v2900 = vpack.c.b16 %v2246, %v2240
    %v2901 = vpack.c.b16 %v2247, %v2241
    %v2902 = vpack.c.b16 %v2248, %v2242
    %v2903 = vpack.c.b16 %v2249, %v2243
    %v2904 = vpack.c.b16 %v2256, %v2250
    %v2905 = vpack.c.b16 %v2257, %v2251
    %v2906 = vpack.c.b16 %v2258, %v2252
    %v2907 = vpack.c.b16 %v2259, %v2253
    %v2908 = vpack.c.b16 %v2260, %v2254
    %v2909 = vpack.c.b16 %v2261, %v2255
    %v2910 = vpack.c.b16 %v2268, %v2262
    %v2911 = vpack.c.b16 %v2269, %v2263
    %v2912 = vpack.c.b16 %v2270, %v2264
    %v2913 = vpack.c.b16 %v2271, %v2265
    %v2914 = vpack.c.b16 %v2272, %v2266
    %v2915 = vpack.c.b16 %v2273, %v2267
    %v2916 = vpack.c.b16 %v2280, %v2274
    %v2917 = vpack.c.b16 %v2281, %v2275
    %v2918 = vpack.c.b16 %v2282, %v2276
    %v2919 = vpack.c.b16 %v2283, %v2277
    %v2920 = vpack.c.b16 %v2284, %v2278
    %v2921 = vpack.c.b16 %v2285, %v2279
    %v2922 = vpack.c.b16 %v2292, %v2286
    %v2923 = vpack.c.b16 %v2293, %v2287
    %v2924 = vpack.c.b16 %v2294, %v2288
    %v2925 = vpack.c.b16 %v2295, %v2289
    %v2926 = vpack.c.b16 %v2296, %v2290
    %v2927 = vpack.c.b16 %v2297, %v2291
    %v2928 = vpack.c.b16 %v2304, %v2298
    %v2929 = vpack.c.b16 %v2305, %v2299
    %v2930 = vpack.c.b16 %v2306, %v2300
    %v2931 = vpack.c.b16 %v2307, %v2301
    %v2932 = vpack.c.b16 %v2308, %v2302
    %v2933 = vpack.c.b16 %v2309, %v2303
    %v2934 = vpack.c.b16 %v2316, %v2310
    %v2935 = vpack.c.b16 %v2317, %v2311
    %v2936 = vpack.c.b16 %v2318, %v2312
    %v2937 = vpack.c.b16 %v2319, %v2313
    %v2938 = vpack.c.b16 %v2320, %v2314
    %v2939 = vpack.c.b16 %v2321, %v2315
    %v2940 = vpack.c.b16 %v2328, %v2322
    %v2941 = vpack.c.b16 %v2329, %v2323
    %v2942 = vpack.c.b16 %v2330, %v2324
    %v2943 = vpack.c.b16 %v2331, %v2325
    %v2944 = vpack.c.b16 %v2332, %v2326
    %v2945 = vpack.c.b16 %v2333, %v2327
    %v2946 = vpack.c.b16 %v2340, %v2334
    %v2947 = vpack.c.b16 %v2341, %v2335
    %v2948 = vpack.c.b16 %v2342, %v2336
    %v2949 = vpack.c.b16 %v2343, %v2337
    %v2950 = vpack.c.b16 %v2344, %v2338
    %v2951 = vpack.c.b16 %v2345, %v2339
    %v2952 = vpack.c.b16 %v2352, %v2346
    %v2953 = vpack.c.b16 %v2353, %v2347
    %v2954 = vpack.c.b16 %v2354, %v2348
    %v2955 = vpack.c.b16 %v2355, %v2349
    %v2956 = vpack.c.b16 %v2356, %v2350
    %v2957 = vpack.c.b16 %v2357, %v2351
    %v2958 = vpack.c.b16 %v2364, %v2358
    %v2959 = vpack.c.b16 %v2365, %v2359
    %v2960 = vpack.c.b16 %v2366, %v2360
    %v2961 = vpack.c.b16 %v2367, %v2361
    %v2962 = vpack.c.b16 %v2368, %v2362
    %v2963 = vpack.c.b16 %v2369, %v2363
    %v2964 = vpack.c.b16 %v2376, %v2370
    %v2965 = vpack.c.b16 %v2377, %v2371
    %v2966 = vpack.c.b16 %v2378, %v2372
    %v2967 = vpack.c.b16 %v2379, %v2373
    %v2968 = vpack.c.b16 %v2380, %v2374
    %v2969 = vpack.c.b16 %v2381, %v2375
    %v2970 = vpack.c.b16 %v2388, %v2382
    %v2971 = vpack.c.b16 %v2389, %v2383
    %v2972 = vpack.c.b16 %v2390, %v2384
    %v2973 = vpack.c.b16 %v2391, %v2385
    %v2974 = vpack.c.b16 %v2392, %v2386
    %v2975 = vpack.c.b16 %v2393, %v2387
    %v2976 = vpack.c.b16 %v2400, %v2394
    %v2977 = vpack.c.b16 %v2401, %v2395
    %v2978 = vpack.c.b16 %v2402, %v2396
    %v2979 = vpack.c.b16 %v2403, %v2397
    %v2980 = vpack.c.b16 %v2404, %v2398
    %v2981 = vpack.c.b16 %v2405, %v2399
    %v2982 = vpack.c.b16 %v2412, %v2406
    %v2983 = vpack.c.b16 %v2413, %v2407
    %v2984 = vpack.c.b16 %v2414, %v2408
    %v2985 = vpack.c.b16 %v2415, %v2409
    %v2986 = vpack.c.b16 %v2416, %v2410
    %v2987 = vpack.c.b16 %v2417, %v2411
    %v2988 = vpack.c.b16 %v2424, %v2418
    %v2989 = vpack.c.b16 %v2425, %v2419
    %v2990 = vpack.c.b16 %v2426, %v2420
    %v2991 = vpack.c.b16 %v2427, %v2421
    %v2992 = vpack.c.b16 %v2428, %v2422
    %v2993 = vpack.c.b16 %v2429, %v2423
    %v2994 = vpack.c.b16 %v2436, %v2430
    %v2995 = vpack.c.b16 %v2437, %v2431
    %v2996 = vpack.c.b16 %v2438, %v2432
    %v2997 = vpack.c.b16 %v2439, %v2433
    %v2998 = vpack.c.b16 %v2440, %v2434
    %v2999 = vpack.c.b16 %v2441, %v2435
    %v3000 = vpack.c.b16 %v2448, %v2442
    %v3001 = vpack.c.b16 %v2449, %v2443
    %v3002 = vpack.c.b16 %v2450, %v2444
    %v3003 = vpack.c.b16 %v2451, %v2445
    %v3004 = vpack.c.b16 %v2452, %v2446
    %v3005 = vpack.c.b16 %v2453, %v2447
    %v3006 = vpack.c.b16 %v2460, %v2454
    %v3007 = vpack.c.b16 %v2461, %v2455
    %v3008 = vpack.c.b16 %v2462, %v2456
    %v3009 = vpack.c.b16 %v2463, %v2457
    %v3010 = vpack.c.b16 %v2464, %v2458
    %v3011 = vpack.c.b16 %v2465, %v2459
    %v3012 = vpack.c.b16 %v2472, %v2466
    %v3013 = vpack.c.b16 %v2473, %v2467
    %v3014 = vpack.c.b16 %v2474, %v2468
    %v3015 = vpack.c.b16 %v2475, %v2469
    %v3016 = vpack.c.b16 %v2476, %v2470
    %v3017 = vpack.c.b16 %v2477, %v2471
    %v3018 = vpack.c.b16 %v2484, %v2478
    %v3019 = vpack.c.b16 %v2485, %v2479
    %v3020 = vpack.c.b16 %v2486, %v2480
    %v3021 = vpack.c.b16 %v2487, %v2481
    %v3022 = vpack.c.b16 %v2488, %v2482
    %v3023 = vpack.c.b16 %v2489, %v2483
    %v3024 = vpack.c.b16 %v2496, %v2490
    %v3025 = vpack.c.b16 %v2497, %v2491
    %v3026 = vpack.c.b16 %v2498, %v2492
    %v3027 = vpack.c.b16 %v2499, %v2493
    %v3028 = vpack.c.b16 %v2500, %v2494
    %v3029 = vpack.c.b16 %v2501, %v2495
    %v3030 = vpack.c.b16 %v2508, %v2502
    %v3031 = vpack.c.b16 %v2509, %v2503
    %v3032 = vpack.c.b16 %v2510, %v2504
    %v3033 = vpack.c.b16 %v2511, %v2505
    %v3034 = vpack.c.b16 %v2512, %v2506
    %v3035 = vpack.c.b16 %v2513, %v2507
    %v3036 = vpack.c.b16 %v2520, %v2514
    %v3037 = vpack.c.b16 %v2521, %v2515
    %v3038 = vpack.c.b16 %v2522, %v2516
    %v3039 = vpack.c.b16 %v2523, %v2517
    %v3040 = vpack.c.b16 %v2524, %v2518
    %v3041 = vpack.c.b16 %v2525, %v2519
    %v3042 = vpack.c.b16 %v2532, %v2526
    %v3043 = vpack.c.b16 %v2533, %v2527
    %v3044 = vpack.c.b16 %v2534, %v2528
    %v3045 = vpack.c.b16 %v2535, %v2529
    %v3046 = vpack.c.b16 %v2536, %v2530
    %v3047 = vpack.c.b16 %v2537, %v2531
    %v3048 = vpack.c.b16 %v2544, %v2538
    %v3049 = vpack.c.b16 %v2545, %v2539
    %v3050 = vpack.c.b16 %v2546, %v2540
    %v3051 = vpack.c.b16 %v2547, %v2541
    %v3052 = vpack.c.b16 %v2548, %v2542
    %v3053 = vpack.c.b16 %v2549, %v2543
    %v3054 = vpack.c.b16 %v2556, %v2550
    %v3055 = vpack.c.b16 %v2557, %v2551
    %v3056 = vpack.c.b16 %v2558, %v2552
    %v3057 = vpack.c.b16 %v2559, %v2553
    %v3058 = vpack.c.b16 %v2560, %v2554
    %v3059 = vpack.c.b16 %v2561, %v2555
    %v3060 = vpack.c.b16 %v2568, %v2562
    %v3061 = vpack.c.b16 %v2569, %v2563
    %v3062 = vpack.c.b16 %v2570, %v2564
    %v3063 = vpack.c.b16 %v2571, %v2565
    %v3064 = vpack.c.b16 %v2572, %v2566
    %v3065 = vpack.c.b16 %v2573, %v2567
    %v3066 = vpack.c.b16 %v2580, %v2574
    %v3067 = vpack.c.b16 %v2581, %v2575
    %v3068 = vpack.c.b16 %v2582, %v2576
    %v3069 = vpack.c.b16 %v2583, %v2577
    %v3070 = vpack.c.b16 %v2584, %v2578
    %v3071 = vpack.c.b16 %v2585, %v2579
    %v3072 = vpack.c.b16 %v2592, %v2586
    %v3073 = vpack.c.b16 %v2593, %v2587
    %v3074 = vpack.c.b16 %v2594, %v2588
    %v3075 = vpack.c.b16 %v2595, %v2589
    %v3076 = vpack.c.b16 %v2596, %v2590
    %v3077 = vpack.c.b16 %v2597, %v2591
    %v3078 = vpack.c.b16 %v2604, %v2598
    %v3079 = vpack.c.b16 %v2605, %v2599
    %v3080 = vpack.c.b16 %v2606, %v2600
    %v3081 = vpack.c.b16 %v2607, %v2601
    %v3082 = vpack.c.b16 %v2608, %v2602
    %v3083 = vpack.c.b16 %v2609, %v2603
    %v3084 = vpack.c.b16 %v2616, %v2610
    %v3085 = vpack.c.b16 %v2617, %v2611
    %v3086 = vpack.c.b16 %v2618, %v2612
    %v3087 = vpack.c.b16 %v2619, %v2613
    %v3088 = vpack.c.b16 %v2620, %v2614
    %v3089 = vpack.c.b16 %v2621, %v2615
    %v3090 = vpack.c.b16 %v2628, %v2622
    %v3091 = vpack.c.b16 %v2629, %v2623
    %v3092 = vpack.c.b16 %v2630, %v2624
    %v3093 = vpack.c.b16 %v2631, %v2625
    %v3094 = vpack.c.b16 %v2632, %v2626
    %v3095 = vpack.c.b16 %v2633, %v2627
    %v3096 = vpack.c.b16 %v2640, %v2634
    %v3097 = vpack.c.b16 %v2641, %v2635
    %v3098 = vpack.c.b16 %v2642, %v2636
    %v3099 = vpack.c.b16 %v2643, %v2637
    %v3100 = vpack.c.b16 %v2644, %v2638
    %v3101 = vpack.c.b16 %v2645, %v2639
    %v3102 = vpack.c.b16 %v2652, %v2646
    %v3103 = vpack.c.b16 %v2653, %v2647
    %v3104 = vpack.c.b16 %v2654, %v2648
    %v3105 = vpack.c.b16 %v2655, %v2649
    %v3106 = vpack.c.b16 %v2656, %v2650
    %v3107 = vpack.c.b16 %v2657, %v2651
    %v3108 = vpack.c.b16 %v2664, %v2658
    %v3109 = vpack.c.b16 %v2665, %v2659
    %v3110 = vpack.c.b16 %v2666, %v2660
    %v3111 = vpack.c.b16 %v2667, %v2661
    %v3112 = vpack.c.b16 %v2668, %v2662
    %v3113 = vpack.c.b16 %v2669, %v2663
    %v3114 = vpack.c.b16 %v2676, %v2670
    %v3115 = vpack.c.b16 %v2677, %v2671
    %v3116 = vpack.c.b16 %v2678, %v2672
    %v3117 = vpack.c.b16 %v2679, %v2673
    %v3118 = vpack.c.b16 %v2680, %v2674
    %v3119 = vpack.c.b16 %v2681, %v2675
    %v3120 = vpack.c.b16 %v2688, %v2682
    %v3121 = vpack.c.b16 %v2689, %v2683
    %v3122 = vpack.c.b16 %v2690, %v2684
    %v3123 = vpack.c.b16 %v2691, %v2685
    %v3124 = vpack.c.b16 %v2692, %v2686
    %v3125 = vpack.c.b16 %v2693, %v2687
    %3558 = vmatpush.bf16.msra.mxu0 %v2736
    %3559 = vmatpush.bf16.msra.mxu0 %v2730
    %3560 = vmatpush.bf16.msra.mxu0 %v2724
    %3561 = vmatpush.bf16.msra.mxu0 %v2718
    %3562 = vmatpush.bf16.msra.mxu0 %v2712
    %3563 = vmatpush.bf16.msra.mxu0 %v2706
    %3564 = vmatpush.bf16.msra.mxu0 %v2700
    %3565 = vmatpush.bf16.msra.mxu0 %v2694
    %3566 = vmatmul.bf16.gmra.mxu0 %v916
    %v3567 = vpop.f32.mrf.mxu0
    %v3568 = vadd.f32 %v1386, %v3567
    %v3569 = vpop.f32.mrf.mxu0
    %v3570 = vadd.f32 %v1386, %v3569
    %3571 = vmatmul.bf16.gmra.mxu0 %v919
    %v3572 = vpop.f32.mrf.mxu0
    %v3573 = vadd.f32 %v1386, %v3572
    %v3574 = vpop.f32.mrf.mxu0
    %v3575 = vadd.f32 %v1386, %v3574
    %3576 = vdwg.mxu0
    %3577 = vmatpush.bf16.msra.mxu0 %v2784
    %3578 = vmatpush.bf16.msra.mxu0 %v2778
    %3579 = vmatpush.bf16.msra.mxu0 %v2772
    %3580 = vmatpush.bf16.msra.mxu0 %v2766
    %3581 = vmatpush.bf16.msra.mxu0 %v2760
    %3582 = vmatpush.bf16.msra.mxu0 %v2754
    %3583 = vmatpush.bf16.msra.mxu0 %v2748
    %3584 = vmatpush.bf16.msra.mxu0 %v2742
    %3585 = vmatmul.bf16.gmra.mxu0 %v917
    %v3586 = vpop.f32.mrf.mxu0
    %v3587 = vadd.f32 %v3568, %v3586
    %v3588 = vpop.f32.mrf.mxu0
    %v3589 = vadd.f32 %v3570, %v3588
    %3590 = vmatmul.bf16.gmra.mxu0 %v920
    %v3591 = vpop.f32.mrf.mxu0
    %v3592 = vadd.f32 %v3573, %v3591
    %v3593 = vpop.f32.mrf.mxu0
    %v3594 = vadd.f32 %v3575, %v3593
    %3595 = vdwg.mxu0
    %3596 = vmatpush.bf16.msra.mxu0 %v2832
    %3597 = vmatpush.bf16.msra.mxu0 %v2826
    %3598 = vmatpush.bf16.msra.mxu0 %v2820
    %3599 = vmatpush.bf16.msra.mxu0 %v2814
    %3600 = vmatpush.bf16.msra.mxu0 %v2808
    %3601 = vmatpush.bf16.msra.mxu0 %v2802
    %3602 = vmatpush.bf16.msra.mxu0 %v2796
    %3603 = vmatpush.bf16.msra.mxu0 %v2790
    %3604 = vmatmul.bf16.gmra.mxu0 %v918
    %v3605 = vpop.f32.mrf.mxu0
    %v3606 = vadd.f32 %v3587, %v3605
    %v3607 = vpop.f32.mrf.mxu0
    %v3608 = vadd.f32 %v3589, %v3607
    %3609 = vmatmul.bf16.gmra.mxu0 %v921
    %v3610 = vpop.f32.mrf.mxu0
    %v3611 = vadd.f32 %v3592, %v3610
    %v3612 = vpop.f32.mrf.mxu0
    %v3613 = vadd.f32 %v3594, %v3612
    %3614 = vdwg.mxu0
    %3615 = vmatpush.bf16.msra.mxu0 %v2880
    %3616 = vmatpush.bf16.msra.mxu0 %v2874
    %3617 = vmatpush.bf16.msra.mxu0 %v2868
    %3618 = vmatpush.bf16.msra.mxu0 %v2862
    %3619 = vmatpush.bf16.msra.mxu0 %v2856
    %3620 = vmatpush.bf16.msra.mxu0 %v2850
    %3621 = vmatpush.bf16.msra.mxu0 %v2844
    %3622 = vmatpush.bf16.msra.mxu0 %v2838
    %3623 = vmatmul.bf16.gmra.mxu0 %v862
    %v3624 = vpop.f32.mrf.mxu0
    %v3625 = vadd.f32 %v3606, %v3624
    %v3626 = vpop.f32.mrf.mxu0
    %v3627 = vadd.f32 %v3608, %v3626
    %3628 = vmatmul.bf16.gmra.mxu0 %v865
    %v3629 = vpop.f32.mrf.mxu0
    %v3630 = vadd.f32 %v3611, %v3629
    %v3631 = vpop.f32.mrf.mxu0
    %v3632 = vadd.f32 %v3613, %v3631
    %3633 = vdwg.mxu0
    %3634 = vmatpush.bf16.msra.mxu0 %v2928
    %3635 = vmatpush.bf16.msra.mxu0 %v2922
    %3636 = vmatpush.bf16.msra.mxu0 %v2916
    %3637 = vmatpush.bf16.msra.mxu0 %v2910
    %3638 = vmatpush.bf16.msra.mxu0 %v2904
    %3639 = vmatpush.bf16.msra.mxu0 %v2898
    %3640 = vmatpush.bf16.msra.mxu0 %v2892
    %3641 = vmatpush.bf16.msra.mxu0 %v2886
    %3642 = vmatmul.bf16.gmra.mxu0 %v863
    %v3643 = vpop.f32.mrf.mxu0
    %v3644 = vadd.f32 %v3625, %v3643
    %v3645 = vpop.f32.mrf.mxu0
    %v3646 = vadd.f32 %v3627, %v3645
    %3647 = vmatmul.bf16.gmra.mxu0 %v866
    %v3648 = vpop.f32.mrf.mxu0
    %v3649 = vadd.f32 %v3630, %v3648
    %v3650 = vpop.f32.mrf.mxu0
    %v3651 = vadd.f32 %v3632, %v3650
    %3652 = vdwg.mxu0
    %3653 = vmatpush.bf16.msra.mxu0 %v2976
    %3654 = vmatpush.bf16.msra.mxu0 %v2970
    %3655 = vmatpush.bf16.msra.mxu0 %v2964
    %3656 = vmatpush.bf16.msra.mxu0 %v2958
    %3657 = vmatpush.bf16.msra.mxu0 %v2952
    %3658 = vmatpush.bf16.msra.mxu0 %v2946
    %3659 = vmatpush.bf16.msra.mxu0 %v2940
    %3660 = vmatpush.bf16.msra.mxu0 %v2934
    %3661 = vmatmul.bf16.gmra.mxu0 %v864
    %v3662 = vpop.f32.mrf.mxu0
    %v3663 = vadd.f32 %v3644, %v3662
    %v3664 = vpop.f32.mrf.mxu0
    %v3665 = vadd.f32 %v3646, %v3664
    %3666 = vmatmul.bf16.gmra.mxu0 %v867
    %v3667 = vpop.f32.mrf.mxu0
    %v3668 = vadd.f32 %v3649, %v3667
    %v3669 = vpop.f32.mrf.mxu0
    %v3670 = vadd.f32 %v3651, %v3669
    %3671 = vdwg.mxu0
    %3672 = vmatpush.bf16.msra.mxu0 %v3024
    %3673 = vmatpush.bf16.msra.mxu0 %v3018
    %3674 = vmatpush.bf16.msra.mxu0 %v3012
    %3675 = vmatpush.bf16.msra.mxu0 %v3006
    %3676 = vmatpush.bf16.msra.mxu0 %v3000
    %3677 = vmatpush.bf16.msra.mxu0 %v2994
    %3678 = vmatpush.bf16.msra.mxu0 %v2988
    %3679 = vmatpush.bf16.msra.mxu0 %v2982
    %3680 = vmatmul.bf16.gmra.mxu0 %v940
    %v3681 = vpop.f32.mrf.mxu0
    %v3682 = vadd.f32 %v3663, %v3681
    %v3683 = vpop.f32.mrf.mxu0
    %v3684 = vadd.f32 %v3665, %v3683
    %3685 = vmatmul.bf16.gmra.mxu0 %v943
    %v3686 = vpop.f32.mrf.mxu0
    %v3687 = vadd.f32 %v3668, %v3686
    %v3688 = vpop.f32.mrf.mxu0
    %v3689 = vadd.f32 %v3670, %v3688
    %3690 = vdwg.mxu0
    %3691 = vmatpush.bf16.msra.mxu0 %v3072
    %3692 = vmatpush.bf16.msra.mxu0 %v3066
    %3693 = vmatpush.bf16.msra.mxu0 %v3060
    %3694 = vmatpush.bf16.msra.mxu0 %v3054
    %3695 = vmatpush.bf16.msra.mxu0 %v3048
    %3696 = vmatpush.bf16.msra.mxu0 %v3042
    %3697 = vmatpush.bf16.msra.mxu0 %v3036
    %3698 = vmatpush.bf16.msra.mxu0 %v3030
    %3699 = vmatmul.bf16.gmra.mxu0 %v941
    %v3700 = vpop.f32.mrf.mxu0
    %v3701 = vadd.f32 %v3682, %v3700
    %v3702 = vpop.f32.mrf.mxu0
    %v3703 = vadd.f32 %v3684, %v3702
    %3704 = vmatmul.bf16.gmra.mxu0 %v944
    %v3705 = vpop.f32.mrf.mxu0
    %v3706 = vadd.f32 %v3687, %v3705
    %v3707 = vpop.f32.mrf.mxu0
    %v3708 = vadd.f32 %v3689, %v3707
    %3709 = vdwg.mxu0
    %3710 = vmatpush.bf16.msra.mxu0 %v3120
    %3711 = vmatpush.bf16.msra.mxu0 %v3114
    %3712 = vmatpush.bf16.msra.mxu0 %v3108
    %3713 = vmatpush.bf16.msra.mxu0 %v3102
    %3714 = vmatpush.bf16.msra.mxu0 %v3096
    %3715 = vmatpush.bf16.msra.mxu0 %v3090
    %3716 = vmatpush.bf16.msra.mxu0 %v3084
    %3717 = vmatpush.bf16.msra.mxu0 %v3078
    %3718 = vmatmul.bf16.gmra.mxu0 %v942
    %v3719 = vpop.f32.mrf.mxu0
    %v3720 = vadd.f32 %v3701, %v3719
    %v3721 = vpop.f32.mrf.mxu0
    %v3722 = vadd.f32 %v3703, %v3721
    %3723 = vmatmul.bf16.gmra.mxu0 %v945
    %v3724 = vpop.f32.mrf.mxu0
    %v3725 = vadd.f32 %v3706, %v3724
    %v3726 = vpop.f32.mrf.mxu0
    %v3727 = vadd.f32 %v3708, %v3726
    %3728 = vdwg.mxu0
    %3729 = vmatpush.bf16.msra.mxu0 %v2737
    %3730 = vmatpush.bf16.msra.mxu0 %v2731
    %3731 = vmatpush.bf16.msra.mxu0 %v2725
    %3732 = vmatpush.bf16.msra.mxu0 %v2719
    %3733 = vmatpush.bf16.msra.mxu0 %v2713
    %3734 = vmatpush.bf16.msra.mxu0 %v2707
    %3735 = vmatpush.bf16.msra.mxu0 %v2701
    %3736 = vmatpush.bf16.msra.mxu0 %v2695
    %3737 = vmatmul.bf16.gmra.mxu0 %v916
    %v3738 = vpop.f32.mrf.mxu0
    %v3739 = vadd.f32 %v1387, %v3738
    %v3740 = vpop.f32.mrf.mxu0
    %v3741 = vadd.f32 %v1387, %v3740
    %3742 = vmatmul.bf16.gmra.mxu0 %v919
    %v3743 = vpop.f32.mrf.mxu0
    %v3744 = vadd.f32 %v1387, %v3743
    %v3745 = vpop.f32.mrf.mxu0
    %v3746 = vadd.f32 %v1387, %v3745
    %3747 = vdwg.mxu0
    %3748 = vmatpush.bf16.msra.mxu0 %v2785
    %3749 = vmatpush.bf16.msra.mxu0 %v2779
    %3750 = vmatpush.bf16.msra.mxu0 %v2773
    %3751 = vmatpush.bf16.msra.mxu0 %v2767
    %3752 = vmatpush.bf16.msra.mxu0 %v2761
    %3753 = vmatpush.bf16.msra.mxu0 %v2755
    %3754 = vmatpush.bf16.msra.mxu0 %v2749
    %3755 = vmatpush.bf16.msra.mxu0 %v2743
    %3756 = vmatmul.bf16.gmra.mxu0 %v917
    %v3757 = vpop.f32.mrf.mxu0
    %v3758 = vadd.f32 %v3739, %v3757
    %v3759 = vpop.f32.mrf.mxu0
    %v3760 = vadd.f32 %v3741, %v3759
    %3761 = vmatmul.bf16.gmra.mxu0 %v920
    %v3762 = vpop.f32.mrf.mxu0
    %v3763 = vadd.f32 %v3744, %v3762
    %v3764 = vpop.f32.mrf.mxu0
    %v3765 = vadd.f32 %v3746, %v3764
    %3766 = vdwg.mxu0
    %3767 = vmatpush.bf16.msra.mxu0 %v2833
    %3768 = vmatpush.bf16.msra.mxu0 %v2827
    %3769 = vmatpush.bf16.msra.mxu0 %v2821
    %3770 = vmatpush.bf16.msra.mxu0 %v2815
    %3771 = vmatpush.bf16.msra.mxu0 %v2809
    %3772 = vmatpush.bf16.msra.mxu0 %v2803
    %3773 = vmatpush.bf16.msra.mxu0 %v2797
    %3774 = vmatpush.bf16.msra.mxu0 %v2791
    %3775 = vmatmul.bf16.gmra.mxu0 %v918
    %v3776 = vpop.f32.mrf.mxu0
    %v3777 = vadd.f32 %v3758, %v3776
    %v3778 = vpop.f32.mrf.mxu0
    %v3779 = vadd.f32 %v3760, %v3778
    %3780 = vmatmul.bf16.gmra.mxu0 %v921
    %v3781 = vpop.f32.mrf.mxu0
    %v3782 = vadd.f32 %v3763, %v3781
    %v3783 = vpop.f32.mrf.mxu0
    %v3784 = vadd.f32 %v3765, %v3783
    %3785 = vdwg.mxu0
    %3786 = vmatpush.bf16.msra.mxu0 %v2881
    %3787 = vmatpush.bf16.msra.mxu0 %v2875
    %3788 = vmatpush.bf16.msra.mxu0 %v2869
    %3789 = vmatpush.bf16.msra.mxu0 %v2863
    %3790 = vmatpush.bf16.msra.mxu0 %v2857
    %3791 = vmatpush.bf16.msra.mxu0 %v2851
    %3792 = vmatpush.bf16.msra.mxu0 %v2845
    %3793 = vmatpush.bf16.msra.mxu0 %v2839
    %3794 = vmatmul.bf16.gmra.mxu0 %v862
    %v3795 = vpop.f32.mrf.mxu0
    %v3796 = vadd.f32 %v3777, %v3795
    %v3797 = vpop.f32.mrf.mxu0
    %v3798 = vadd.f32 %v3779, %v3797
    %3799 = vmatmul.bf16.gmra.mxu0 %v865
    %v3800 = vpop.f32.mrf.mxu0
    %v3801 = vadd.f32 %v3782, %v3800
    %v3802 = vpop.f32.mrf.mxu0
    %v3803 = vadd.f32 %v3784, %v3802
    %3804 = vdwg.mxu0
    %3805 = vmatpush.bf16.msra.mxu0 %v2929
    %3806 = vmatpush.bf16.msra.mxu0 %v2923
    %3807 = vmatpush.bf16.msra.mxu0 %v2917
    %3808 = vmatpush.bf16.msra.mxu0 %v2911
    %3809 = vmatpush.bf16.msra.mxu0 %v2905
    %3810 = vmatpush.bf16.msra.mxu0 %v2899
    %3811 = vmatpush.bf16.msra.mxu0 %v2893
    %3812 = vmatpush.bf16.msra.mxu0 %v2887
    %3813 = vmatmul.bf16.gmra.mxu0 %v863
    %v3814 = vpop.f32.mrf.mxu0
    %v3815 = vadd.f32 %v3796, %v3814
    %v3816 = vpop.f32.mrf.mxu0
    %v3817 = vadd.f32 %v3798, %v3816
    %3818 = vmatmul.bf16.gmra.mxu0 %v866
    %v3819 = vpop.f32.mrf.mxu0
    %v3820 = vadd.f32 %v3801, %v3819
    %v3821 = vpop.f32.mrf.mxu0
    %v3822 = vadd.f32 %v3803, %v3821
    %3823 = vdwg.mxu0
    %3824 = vmatpush.bf16.msra.mxu0 %v2977
    %3825 = vmatpush.bf16.msra.mxu0 %v2971
    %3826 = vmatpush.bf16.msra.mxu0 %v2965
    %3827 = vmatpush.bf16.msra.mxu0 %v2959
    %3828 = vmatpush.bf16.msra.mxu0 %v2953
    %3829 = vmatpush.bf16.msra.mxu0 %v2947
    %3830 = vmatpush.bf16.msra.mxu0 %v2941
    %3831 = vmatpush.bf16.msra.mxu0 %v2935
    %3832 = vmatmul.bf16.gmra.mxu0 %v864
    %v3833 = vpop.f32.mrf.mxu0
    %v3834 = vadd.f32 %v3815, %v3833
    %v3835 = vpop.f32.mrf.mxu0
    %v3836 = vadd.f32 %v3817, %v3835
    %3837 = vmatmul.bf16.gmra.mxu0 %v867
    %v3838 = vpop.f32.mrf.mxu0
    %v3839 = vadd.f32 %v3820, %v3838
    %v3840 = vpop.f32.mrf.mxu0
    %v3841 = vadd.f32 %v3822, %v3840
    %3842 = vdwg.mxu0
    %3843 = vmatpush.bf16.msra.mxu0 %v3025
    %3844 = vmatpush.bf16.msra.mxu0 %v3019
    %3845 = vmatpush.bf16.msra.mxu0 %v3013
    %3846 = vmatpush.bf16.msra.mxu0 %v3007
    %3847 = vmatpush.bf16.msra.mxu0 %v3001
    %3848 = vmatpush.bf16.msra.mxu0 %v2995
    %3849 = vmatpush.bf16.msra.mxu0 %v2989
    %3850 = vmatpush.bf16.msra.mxu0 %v2983
    %3851 = vmatmul.bf16.gmra.mxu0 %v940
    %v3852 = vpop.f32.mrf.mxu0
    %v3853 = vadd.f32 %v3834, %v3852
    %v3854 = vpop.f32.mrf.mxu0
    %v3855 = vadd.f32 %v3836, %v3854
    %3856 = vmatmul.bf16.gmra.mxu0 %v943
    %v3857 = vpop.f32.mrf.mxu0
    %v3858 = vadd.f32 %v3839, %v3857
    %v3859 = vpop.f32.mrf.mxu0
    %v3860 = vadd.f32 %v3841, %v3859
    %3861 = vdwg.mxu0
    %3862 = vmatpush.bf16.msra.mxu0 %v3073
    %3863 = vmatpush.bf16.msra.mxu0 %v3067
    %3864 = vmatpush.bf16.msra.mxu0 %v3061
    %3865 = vmatpush.bf16.msra.mxu0 %v3055
    %3866 = vmatpush.bf16.msra.mxu0 %v3049
    %3867 = vmatpush.bf16.msra.mxu0 %v3043
    %3868 = vmatpush.bf16.msra.mxu0 %v3037
    %3869 = vmatpush.bf16.msra.mxu0 %v3031
    %3870 = vmatmul.bf16.gmra.mxu0 %v941
    %v3871 = vpop.f32.mrf.mxu0
    %v3872 = vadd.f32 %v3853, %v3871
    %v3873 = vpop.f32.mrf.mxu0
    %v3874 = vadd.f32 %v3855, %v3873
    %3875 = vmatmul.bf16.gmra.mxu0 %v944
    %v3876 = vpop.f32.mrf.mxu0
    %v3877 = vadd.f32 %v3858, %v3876
    %v3878 = vpop.f32.mrf.mxu0
    %v3879 = vadd.f32 %v3860, %v3878
    %3880 = vdwg.mxu0
    %3881 = vmatpush.bf16.msra.mxu0 %v3121
    %3882 = vmatpush.bf16.msra.mxu0 %v3115
    %3883 = vmatpush.bf16.msra.mxu0 %v3109
    %3884 = vmatpush.bf16.msra.mxu0 %v3103
    %3885 = vmatpush.bf16.msra.mxu0 %v3097
    %3886 = vmatpush.bf16.msra.mxu0 %v3091
    %3887 = vmatpush.bf16.msra.mxu0 %v3085
    %3888 = vmatpush.bf16.msra.mxu0 %v3079
    %3889 = vmatmul.bf16.gmra.mxu0 %v942
    %v3890 = vpop.f32.mrf.mxu0
    %v3891 = vadd.f32 %v3872, %v3890
    %v3892 = vpop.f32.mrf.mxu0
    %v3893 = vadd.f32 %v3874, %v3892
    %3894 = vmatmul.bf16.gmra.mxu0 %v945
    %v3895 = vpop.f32.mrf.mxu0
    %v3896 = vadd.f32 %v3877, %v3895
    %v3897 = vpop.f32.mrf.mxu0
    %v3898 = vadd.f32 %v3879, %v3897
    %3899 = vdwg.mxu0
    %3900 = vmatpush.bf16.msra.mxu0 %v2738
    %3901 = vmatpush.bf16.msra.mxu0 %v2732
    %3902 = vmatpush.bf16.msra.mxu0 %v2726
    %3903 = vmatpush.bf16.msra.mxu0 %v2720
    %3904 = vmatpush.bf16.msra.mxu0 %v2714
    %3905 = vmatpush.bf16.msra.mxu0 %v2708
    %3906 = vmatpush.bf16.msra.mxu0 %v2702
    %3907 = vmatpush.bf16.msra.mxu0 %v2696
    %3908 = vmatmul.bf16.gmra.mxu0 %v916
    %v3909 = vpop.f32.mrf.mxu0
    %v3910 = vadd.f32 %v1388, %v3909
    %v3911 = vpop.f32.mrf.mxu0
    %v3912 = vadd.f32 %v1388, %v3911
    %3913 = vmatmul.bf16.gmra.mxu0 %v919
    %v3914 = vpop.f32.mrf.mxu0
    %v3915 = vadd.f32 %v1388, %v3914
    %v3916 = vpop.f32.mrf.mxu0
    %v3917 = vadd.f32 %v1388, %v3916
    %3918 = vdwg.mxu0
    %3919 = vmatpush.bf16.msra.mxu0 %v2786
    %3920 = vmatpush.bf16.msra.mxu0 %v2780
    %3921 = vmatpush.bf16.msra.mxu0 %v2774
    %3922 = vmatpush.bf16.msra.mxu0 %v2768
    %3923 = vmatpush.bf16.msra.mxu0 %v2762
    %3924 = vmatpush.bf16.msra.mxu0 %v2756
    %3925 = vmatpush.bf16.msra.mxu0 %v2750
    %3926 = vmatpush.bf16.msra.mxu0 %v2744
    %3927 = vmatmul.bf16.gmra.mxu0 %v917
    %v3928 = vpop.f32.mrf.mxu0
    %v3929 = vadd.f32 %v3910, %v3928
    %v3930 = vpop.f32.mrf.mxu0
    %v3931 = vadd.f32 %v3912, %v3930
    %3932 = vmatmul.bf16.gmra.mxu0 %v920
    %v3933 = vpop.f32.mrf.mxu0
    %v3934 = vadd.f32 %v3915, %v3933
    %v3935 = vpop.f32.mrf.mxu0
    %v3936 = vadd.f32 %v3917, %v3935
    %3937 = vdwg.mxu0
    %3938 = vmatpush.bf16.msra.mxu0 %v2834
    %3939 = vmatpush.bf16.msra.mxu0 %v2828
    %3940 = vmatpush.bf16.msra.mxu0 %v2822
    %3941 = vmatpush.bf16.msra.mxu0 %v2816
    %3942 = vmatpush.bf16.msra.mxu0 %v2810
    %3943 = vmatpush.bf16.msra.mxu0 %v2804
    %3944 = vmatpush.bf16.msra.mxu0 %v2798
    %3945 = vmatpush.bf16.msra.mxu0 %v2792
    %3946 = vmatmul.bf16.gmra.mxu0 %v918
    %v3947 = vpop.f32.mrf.mxu0
    %v3948 = vadd.f32 %v3929, %v3947
    %v3949 = vpop.f32.mrf.mxu0
    %v3950 = vadd.f32 %v3931, %v3949
    %3951 = vmatmul.bf16.gmra.mxu0 %v921
    %v3952 = vpop.f32.mrf.mxu0
    %v3953 = vadd.f32 %v3934, %v3952
    %v3954 = vpop.f32.mrf.mxu0
    %v3955 = vadd.f32 %v3936, %v3954
    %3956 = vdwg.mxu0
    %3957 = vmatpush.bf16.msra.mxu0 %v2882
    %3958 = vmatpush.bf16.msra.mxu0 %v2876
    %3959 = vmatpush.bf16.msra.mxu0 %v2870
    %3960 = vmatpush.bf16.msra.mxu0 %v2864
    %3961 = vmatpush.bf16.msra.mxu0 %v2858
    %3962 = vmatpush.bf16.msra.mxu0 %v2852
    %3963 = vmatpush.bf16.msra.mxu0 %v2846
    %3964 = vmatpush.bf16.msra.mxu0 %v2840
    %3965 = vmatmul.bf16.gmra.mxu0 %v862
    %v3966 = vpop.f32.mrf.mxu0
    %v3967 = vadd.f32 %v3948, %v3966
    %v3968 = vpop.f32.mrf.mxu0
    %v3969 = vadd.f32 %v3950, %v3968
    %3970 = vmatmul.bf16.gmra.mxu0 %v865
    %v3971 = vpop.f32.mrf.mxu0
    %v3972 = vadd.f32 %v3953, %v3971
    %v3973 = vpop.f32.mrf.mxu0
    %v3974 = vadd.f32 %v3955, %v3973
    %3975 = vdwg.mxu0
    %3976 = vmatpush.bf16.msra.mxu0 %v2930
    %3977 = vmatpush.bf16.msra.mxu0 %v2924
    %3978 = vmatpush.bf16.msra.mxu0 %v2918
    %3979 = vmatpush.bf16.msra.mxu0 %v2912
    %3980 = vmatpush.bf16.msra.mxu0 %v2906
    %3981 = vmatpush.bf16.msra.mxu0 %v2900
    %3982 = vmatpush.bf16.msra.mxu0 %v2894
    %3983 = vmatpush.bf16.msra.mxu0 %v2888
    %3984 = vmatmul.bf16.gmra.mxu0 %v863
    %v3985 = vpop.f32.mrf.mxu0
    %v3986 = vadd.f32 %v3967, %v3985
    %v3987 = vpop.f32.mrf.mxu0
    %v3988 = vadd.f32 %v3969, %v3987
    %3989 = vmatmul.bf16.gmra.mxu0 %v866
    %v3990 = vpop.f32.mrf.mxu0
    %v3991 = vadd.f32 %v3972, %v3990
    %v3992 = vpop.f32.mrf.mxu0
    %v3993 = vadd.f32 %v3974, %v3992
    %3994 = vdwg.mxu0
    %3995 = vmatpush.bf16.msra.mxu0 %v2978
    %3996 = vmatpush.bf16.msra.mxu0 %v2972
    %3997 = vmatpush.bf16.msra.mxu0 %v2966
    %3998 = vmatpush.bf16.msra.mxu0 %v2960
    %3999 = vmatpush.bf16.msra.mxu0 %v2954
    %4000 = vmatpush.bf16.msra.mxu0 %v2948
    %4001 = vmatpush.bf16.msra.mxu0 %v2942
    %4002 = vmatpush.bf16.msra.mxu0 %v2936
    %4003 = vmatmul.bf16.gmra.mxu0 %v864
    %v4004 = vpop.f32.mrf.mxu0
    %v4005 = vadd.f32 %v3986, %v4004
    %v4006 = vpop.f32.mrf.mxu0
    %v4007 = vadd.f32 %v3988, %v4006
    %4008 = vmatmul.bf16.gmra.mxu0 %v867
    %v4009 = vpop.f32.mrf.mxu0
    %v4010 = vadd.f32 %v3991, %v4009
    %v4011 = vpop.f32.mrf.mxu0
    %v4012 = vadd.f32 %v3993, %v4011
    %4013 = vdwg.mxu0
    %4014 = vmatpush.bf16.msra.mxu0 %v3026
    %4015 = vmatpush.bf16.msra.mxu0 %v3020
    %4016 = vmatpush.bf16.msra.mxu0 %v3014
    %4017 = vmatpush.bf16.msra.mxu0 %v3008
    %4018 = vmatpush.bf16.msra.mxu0 %v3002
    %4019 = vmatpush.bf16.msra.mxu0 %v2996
    %4020 = vmatpush.bf16.msra.mxu0 %v2990
    %4021 = vmatpush.bf16.msra.mxu0 %v2984
    %4022 = vmatmul.bf16.gmra.mxu0 %v940
    %v4023 = vpop.f32.mrf.mxu0
    %v4024 = vadd.f32 %v4005, %v4023
    %v4025 = vpop.f32.mrf.mxu0
    %v4026 = vadd.f32 %v4007, %v4025
    %4027 = vmatmul.bf16.gmra.mxu0 %v943
    %v4028 = vpop.f32.mrf.mxu0
    %v4029 = vadd.f32 %v4010, %v4028
    %v4030 = vpop.f32.mrf.mxu0
    %v4031 = vadd.f32 %v4012, %v4030
    %4032 = vdwg.mxu0
    %4033 = vmatpush.bf16.msra.mxu0 %v3074
    %4034 = vmatpush.bf16.msra.mxu0 %v3068
    %4035 = vmatpush.bf16.msra.mxu0 %v3062
    %4036 = vmatpush.bf16.msra.mxu0 %v3056
    %4037 = vmatpush.bf16.msra.mxu0 %v3050
    %4038 = vmatpush.bf16.msra.mxu0 %v3044
    %4039 = vmatpush.bf16.msra.mxu0 %v3038
    %4040 = vmatpush.bf16.msra.mxu0 %v3032
    %4041 = vmatmul.bf16.gmra.mxu0 %v941
    %v4042 = vpop.f32.mrf.mxu0
    %v4043 = vadd.f32 %v4024, %v4042
    %v4044 = vpop.f32.mrf.mxu0
    %v4045 = vadd.f32 %v4026, %v4044
    %4046 = vmatmul.bf16.gmra.mxu0 %v944
    %v4047 = vpop.f32.mrf.mxu0
    %v4048 = vadd.f32 %v4029, %v4047
    %v4049 = vpop.f32.mrf.mxu0
    %v4050 = vadd.f32 %v4031, %v4049
    %4051 = vdwg.mxu0
    %4052 = vmatpush.bf16.msra.mxu0 %v3122
    %4053 = vmatpush.bf16.msra.mxu0 %v3116
    %4054 = vmatpush.bf16.msra.mxu0 %v3110
    %4055 = vmatpush.bf16.msra.mxu0 %v3104
    %4056 = vmatpush.bf16.msra.mxu0 %v3098
    %4057 = vmatpush.bf16.msra.mxu0 %v3092
    %4058 = vmatpush.bf16.msra.mxu0 %v3086
    %4059 = vmatpush.bf16.msra.mxu0 %v3080
    %4060 = vmatmul.bf16.gmra.mxu0 %v942
    %v4061 = vpop.f32.mrf.mxu0
    %v4062 = vadd.f32 %v4043, %v4061
    %v4063 = vpop.f32.mrf.mxu0
    %v4064 = vadd.f32 %v4045, %v4063
    %4065 = vmatmul.bf16.gmra.mxu0 %v945
    %v4066 = vpop.f32.mrf.mxu0
    %v4067 = vadd.f32 %v4048, %v4066
    %v4068 = vpop.f32.mrf.mxu0
    %v4069 = vadd.f32 %v4050, %v4068
    %4070 = vdwg.mxu0
    %4071 = vmatpush.bf16.msra.mxu0 %v2739
    %4072 = vmatpush.bf16.msra.mxu0 %v2733
    %4073 = vmatpush.bf16.msra.mxu0 %v2727
    %4074 = vmatpush.bf16.msra.mxu0 %v2721
    %4075 = vmatpush.bf16.msra.mxu0 %v2715
    %4076 = vmatpush.bf16.msra.mxu0 %v2709
    %4077 = vmatpush.bf16.msra.mxu0 %v2703
    %4078 = vmatpush.bf16.msra.mxu0 %v2697
    %4079 = vmatmul.bf16.gmra.mxu0 %v916
    %v4080 = vpop.f32.mrf.mxu0
    %v4081 = vadd.f32 %v1389, %v4080
    %v4082 = vpop.f32.mrf.mxu0
    %v4083 = vadd.f32 %v1389, %v4082
    %4084 = vmatmul.bf16.gmra.mxu0 %v919
    %v4085 = vpop.f32.mrf.mxu0
    %v4086 = vadd.f32 %v1389, %v4085
    %v4087 = vpop.f32.mrf.mxu0
    %v4088 = vadd.f32 %v1389, %v4087
    %4089 = vdwg.mxu0
    %4090 = vmatpush.bf16.msra.mxu0 %v2787
    %4091 = vmatpush.bf16.msra.mxu0 %v2781
    %4092 = vmatpush.bf16.msra.mxu0 %v2775
    %4093 = vmatpush.bf16.msra.mxu0 %v2769
    %4094 = vmatpush.bf16.msra.mxu0 %v2763
    %4095 = vmatpush.bf16.msra.mxu0 %v2757
    %4096 = vmatpush.bf16.msra.mxu0 %v2751
    %4097 = vmatpush.bf16.msra.mxu0 %v2745
    %4098 = vmatmul.bf16.gmra.mxu0 %v917
    %v4099 = vpop.f32.mrf.mxu0
    %v4100 = vadd.f32 %v4081, %v4099
    %v4101 = vpop.f32.mrf.mxu0
    %v4102 = vadd.f32 %v4083, %v4101
    %4103 = vmatmul.bf16.gmra.mxu0 %v920
    %v4104 = vpop.f32.mrf.mxu0
    %v4105 = vadd.f32 %v4086, %v4104
    %v4106 = vpop.f32.mrf.mxu0
    %v4107 = vadd.f32 %v4088, %v4106
    %4108 = vdwg.mxu0
    %4109 = vmatpush.bf16.msra.mxu0 %v2835
    %4110 = vmatpush.bf16.msra.mxu0 %v2829
    %4111 = vmatpush.bf16.msra.mxu0 %v2823
    %4112 = vmatpush.bf16.msra.mxu0 %v2817
    %4113 = vmatpush.bf16.msra.mxu0 %v2811
    %4114 = vmatpush.bf16.msra.mxu0 %v2805
    %4115 = vmatpush.bf16.msra.mxu0 %v2799
    %4116 = vmatpush.bf16.msra.mxu0 %v2793
    %4117 = vmatmul.bf16.gmra.mxu0 %v918
    %v4118 = vpop.f32.mrf.mxu0
    %v4119 = vadd.f32 %v4100, %v4118
    %v4120 = vpop.f32.mrf.mxu0
    %v4121 = vadd.f32 %v4102, %v4120
    %4122 = vmatmul.bf16.gmra.mxu0 %v921
    %v4123 = vpop.f32.mrf.mxu0
    %v4124 = vadd.f32 %v4105, %v4123
    %v4125 = vpop.f32.mrf.mxu0
    %v4126 = vadd.f32 %v4107, %v4125
    %4127 = vdwg.mxu0
    %4128 = vmatpush.bf16.msra.mxu0 %v2883
    %4129 = vmatpush.bf16.msra.mxu0 %v2877
    %4130 = vmatpush.bf16.msra.mxu0 %v2871
    %4131 = vmatpush.bf16.msra.mxu0 %v2865
    %4132 = vmatpush.bf16.msra.mxu0 %v2859
    %4133 = vmatpush.bf16.msra.mxu0 %v2853
    %4134 = vmatpush.bf16.msra.mxu0 %v2847
    %4135 = vmatpush.bf16.msra.mxu0 %v2841
    %4136 = vmatmul.bf16.gmra.mxu0 %v862
    %v4137 = vpop.f32.mrf.mxu0
    %v4138 = vadd.f32 %v4119, %v4137
    %v4139 = vpop.f32.mrf.mxu0
    %v4140 = vadd.f32 %v4121, %v4139
    %4141 = vmatmul.bf16.gmra.mxu0 %v865
    %v4142 = vpop.f32.mrf.mxu0
    %v4143 = vadd.f32 %v4124, %v4142
    %v4144 = vpop.f32.mrf.mxu0
    %v4145 = vadd.f32 %v4126, %v4144
    %4146 = vdwg.mxu0
    %4147 = vmatpush.bf16.msra.mxu0 %v2931
    %4148 = vmatpush.bf16.msra.mxu0 %v2925
    %4149 = vmatpush.bf16.msra.mxu0 %v2919
    %4150 = vmatpush.bf16.msra.mxu0 %v2913
    %4151 = vmatpush.bf16.msra.mxu0 %v2907
    %4152 = vmatpush.bf16.msra.mxu0 %v2901
    %4153 = vmatpush.bf16.msra.mxu0 %v2895
    %4154 = vmatpush.bf16.msra.mxu0 %v2889
    %4155 = vmatmul.bf16.gmra.mxu0 %v863
    %v4156 = vpop.f32.mrf.mxu0
    %v4157 = vadd.f32 %v4138, %v4156
    %v4158 = vpop.f32.mrf.mxu0
    %v4159 = vadd.f32 %v4140, %v4158
    %4160 = vmatmul.bf16.gmra.mxu0 %v866
    %v4161 = vpop.f32.mrf.mxu0
    %v4162 = vadd.f32 %v4143, %v4161
    %v4163 = vpop.f32.mrf.mxu0
    %v4164 = vadd.f32 %v4145, %v4163
    %4165 = vdwg.mxu0
    %4166 = vmatpush.bf16.msra.mxu0 %v2979
    %4167 = vmatpush.bf16.msra.mxu0 %v2973
    %4168 = vmatpush.bf16.msra.mxu0 %v2967
    %4169 = vmatpush.bf16.msra.mxu0 %v2961
    %4170 = vmatpush.bf16.msra.mxu0 %v2955
    %4171 = vmatpush.bf16.msra.mxu0 %v2949
    %4172 = vmatpush.bf16.msra.mxu0 %v2943
    %4173 = vmatpush.bf16.msra.mxu0 %v2937
    %4174 = vmatmul.bf16.gmra.mxu0 %v864
    %v4175 = vpop.f32.mrf.mxu0
    %v4176 = vadd.f32 %v4157, %v4175
    %v4177 = vpop.f32.mrf.mxu0
    %v4178 = vadd.f32 %v4159, %v4177
    %4179 = vmatmul.bf16.gmra.mxu0 %v867
    %v4180 = vpop.f32.mrf.mxu0
    %v4181 = vadd.f32 %v4162, %v4180
    %v4182 = vpop.f32.mrf.mxu0
    %v4183 = vadd.f32 %v4164, %v4182
    %4184 = vdwg.mxu0
    %4185 = vmatpush.bf16.msra.mxu0 %v3027
    %4186 = vmatpush.bf16.msra.mxu0 %v3021
    %4187 = vmatpush.bf16.msra.mxu0 %v3015
    %4188 = vmatpush.bf16.msra.mxu0 %v3009
    %4189 = vmatpush.bf16.msra.mxu0 %v3003
    %4190 = vmatpush.bf16.msra.mxu0 %v2997
    %4191 = vmatpush.bf16.msra.mxu0 %v2991
    %4192 = vmatpush.bf16.msra.mxu0 %v2985
    %4193 = vmatmul.bf16.gmra.mxu0 %v940
    %v4194 = vpop.f32.mrf.mxu0
    %v4195 = vadd.f32 %v4176, %v4194
    %v4196 = vpop.f32.mrf.mxu0
    %v4197 = vadd.f32 %v4178, %v4196
    %4198 = vmatmul.bf16.gmra.mxu0 %v943
    %v4199 = vpop.f32.mrf.mxu0
    %v4200 = vadd.f32 %v4181, %v4199
    %v4201 = vpop.f32.mrf.mxu0
    %v4202 = vadd.f32 %v4183, %v4201
    %4203 = vdwg.mxu0
    %4204 = vmatpush.bf16.msra.mxu0 %v3075
    %4205 = vmatpush.bf16.msra.mxu0 %v3069
    %4206 = vmatpush.bf16.msra.mxu0 %v3063
    %4207 = vmatpush.bf16.msra.mxu0 %v3057
    %4208 = vmatpush.bf16.msra.mxu0 %v3051
    %4209 = vmatpush.bf16.msra.mxu0 %v3045
    %4210 = vmatpush.bf16.msra.mxu0 %v3039
    %4211 = vmatpush.bf16.msra.mxu0 %v3033
    %4212 = vmatmul.bf16.gmra.mxu0 %v941
    %v4213 = vpop.f32.mrf.mxu0
    %v4214 = vadd.f32 %v4195, %v4213
    %v4215 = vpop.f32.mrf.mxu0
    %v4216 = vadd.f32 %v4197, %v4215
    %4217 = vmatmul.bf16.gmra.mxu0 %v944
    %v4218 = vpop.f32.mrf.mxu0
    %v4219 = vadd.f32 %v4200, %v4218
    %v4220 = vpop.f32.mrf.mxu0
    %v4221 = vadd.f32 %v4202, %v4220
    %4222 = vdwg.mxu0
    %4223 = vmatpush.bf16.msra.mxu0 %v3123
    %4224 = vmatpush.bf16.msra.mxu0 %v3117
    %4225 = vmatpush.bf16.msra.mxu0 %v3111
    %4226 = vmatpush.bf16.msra.mxu0 %v3105
    %4227 = vmatpush.bf16.msra.mxu0 %v3099
    %4228 = vmatpush.bf16.msra.mxu0 %v3093
    %4229 = vmatpush.bf16.msra.mxu0 %v3087
    %4230 = vmatpush.bf16.msra.mxu0 %v3081
    %4231 = vmatmul.bf16.gmra.mxu0 %v942
    %v4232 = vpop.f32.mrf.mxu0
    %v4233 = vadd.f32 %v4214, %v4232
    %v4234 = vpop.f32.mrf.mxu0
    %v4235 = vadd.f32 %v4216, %v4234
    %4236 = vmatmul.bf16.gmra.mxu0 %v945
    %v4237 = vpop.f32.mrf.mxu0
    %v4238 = vadd.f32 %v4219, %v4237
    %v4239 = vpop.f32.mrf.mxu0
    %v4240 = vadd.f32 %v4221, %v4239
    %4241 = vdwg.mxu0
    %4242 = vmatpush.bf16.msra.mxu0 %v2740
    %4243 = vmatpush.bf16.msra.mxu0 %v2734
    %4244 = vmatpush.bf16.msra.mxu0 %v2728
    %4245 = vmatpush.bf16.msra.mxu0 %v2722
    %4246 = vmatpush.bf16.msra.mxu0 %v2716
    %4247 = vmatpush.bf16.msra.mxu0 %v2710
    %4248 = vmatpush.bf16.msra.mxu0 %v2704
    %4249 = vmatpush.bf16.msra.mxu0 %v2698
    %4250 = vmatmul.bf16.gmra.mxu0 %v916
    %v4251 = vpop.f32.mrf.mxu0
    %v4252 = vadd.f32 %v1390, %v4251
    %v4253 = vpop.f32.mrf.mxu0
    %v4254 = vadd.f32 %v1390, %v4253
    %4255 = vmatmul.bf16.gmra.mxu0 %v919
    %v4256 = vpop.f32.mrf.mxu0
    %v4257 = vadd.f32 %v1390, %v4256
    %v4258 = vpop.f32.mrf.mxu0
    %v4259 = vadd.f32 %v1390, %v4258
    %4260 = vdwg.mxu0
    %4261 = vmatpush.bf16.msra.mxu0 %v2788
    %4262 = vmatpush.bf16.msra.mxu0 %v2782
    %4263 = vmatpush.bf16.msra.mxu0 %v2776
    %4264 = vmatpush.bf16.msra.mxu0 %v2770
    %4265 = vmatpush.bf16.msra.mxu0 %v2764
    %4266 = vmatpush.bf16.msra.mxu0 %v2758
    %4267 = vmatpush.bf16.msra.mxu0 %v2752
    %4268 = vmatpush.bf16.msra.mxu0 %v2746
    %4269 = vmatmul.bf16.gmra.mxu0 %v917
    %v4270 = vpop.f32.mrf.mxu0
    %v4271 = vadd.f32 %v4252, %v4270
    %v4272 = vpop.f32.mrf.mxu0
    %v4273 = vadd.f32 %v4254, %v4272
    %4274 = vmatmul.bf16.gmra.mxu0 %v920
    %v4275 = vpop.f32.mrf.mxu0
    %v4276 = vadd.f32 %v4257, %v4275
    %v4277 = vpop.f32.mrf.mxu0
    %v4278 = vadd.f32 %v4259, %v4277
    %4279 = vdwg.mxu0
    %4280 = vmatpush.bf16.msra.mxu0 %v2836
    %4281 = vmatpush.bf16.msra.mxu0 %v2830
    %4282 = vmatpush.bf16.msra.mxu0 %v2824
    %4283 = vmatpush.bf16.msra.mxu0 %v2818
    %4284 = vmatpush.bf16.msra.mxu0 %v2812
    %4285 = vmatpush.bf16.msra.mxu0 %v2806
    %4286 = vmatpush.bf16.msra.mxu0 %v2800
    %4287 = vmatpush.bf16.msra.mxu0 %v2794
    %4288 = vmatmul.bf16.gmra.mxu0 %v918
    %v4289 = vpop.f32.mrf.mxu0
    %v4290 = vadd.f32 %v4271, %v4289
    %v4291 = vpop.f32.mrf.mxu0
    %v4292 = vadd.f32 %v4273, %v4291
    %4293 = vmatmul.bf16.gmra.mxu0 %v921
    %v4294 = vpop.f32.mrf.mxu0
    %v4295 = vadd.f32 %v4276, %v4294
    %v4296 = vpop.f32.mrf.mxu0
    %v4297 = vadd.f32 %v4278, %v4296
    %4298 = vdwg.mxu0
    %4299 = vmatpush.bf16.msra.mxu0 %v2884
    %4300 = vmatpush.bf16.msra.mxu0 %v2878
    %4301 = vmatpush.bf16.msra.mxu0 %v2872
    %4302 = vmatpush.bf16.msra.mxu0 %v2866
    %4303 = vmatpush.bf16.msra.mxu0 %v2860
    %4304 = vmatpush.bf16.msra.mxu0 %v2854
    %4305 = vmatpush.bf16.msra.mxu0 %v2848
    %4306 = vmatpush.bf16.msra.mxu0 %v2842
    %4307 = vmatmul.bf16.gmra.mxu0 %v862
    %v4308 = vpop.f32.mrf.mxu0
    %v4309 = vadd.f32 %v4290, %v4308
    %v4310 = vpop.f32.mrf.mxu0
    %v4311 = vadd.f32 %v4292, %v4310
    %4312 = vmatmul.bf16.gmra.mxu0 %v865
    %v4313 = vpop.f32.mrf.mxu0
    %v4314 = vadd.f32 %v4295, %v4313
    %v4315 = vpop.f32.mrf.mxu0
    %v4316 = vadd.f32 %v4297, %v4315
    %4317 = vdwg.mxu0
    %4318 = vmatpush.bf16.msra.mxu0 %v2932
    %4319 = vmatpush.bf16.msra.mxu0 %v2926
    %4320 = vmatpush.bf16.msra.mxu0 %v2920
    %4321 = vmatpush.bf16.msra.mxu0 %v2914
    %4322 = vmatpush.bf16.msra.mxu0 %v2908
    %4323 = vmatpush.bf16.msra.mxu0 %v2902
    %4324 = vmatpush.bf16.msra.mxu0 %v2896
    %4325 = vmatpush.bf16.msra.mxu0 %v2890
    %4326 = vmatmul.bf16.gmra.mxu0 %v863
    %v4327 = vpop.f32.mrf.mxu0
    %v4328 = vadd.f32 %v4309, %v4327
    %v4329 = vpop.f32.mrf.mxu0
    %v4330 = vadd.f32 %v4311, %v4329
    %4331 = vmatmul.bf16.gmra.mxu0 %v866
    %v4332 = vpop.f32.mrf.mxu0
    %v4333 = vadd.f32 %v4314, %v4332
    %v4334 = vpop.f32.mrf.mxu0
    %v4335 = vadd.f32 %v4316, %v4334
    %4336 = vdwg.mxu0
    %4337 = vmatpush.bf16.msra.mxu0 %v2980
    %4338 = vmatpush.bf16.msra.mxu0 %v2974
    %4339 = vmatpush.bf16.msra.mxu0 %v2968
    %4340 = vmatpush.bf16.msra.mxu0 %v2962
    %4341 = vmatpush.bf16.msra.mxu0 %v2956
    %4342 = vmatpush.bf16.msra.mxu0 %v2950
    %4343 = vmatpush.bf16.msra.mxu0 %v2944
    %4344 = vmatpush.bf16.msra.mxu0 %v2938
    %4345 = vmatmul.bf16.gmra.mxu0 %v864
    %v4346 = vpop.f32.mrf.mxu0
    %v4347 = vadd.f32 %v4328, %v4346
    %v4348 = vpop.f32.mrf.mxu0
    %v4349 = vadd.f32 %v4330, %v4348
    %4350 = vmatmul.bf16.gmra.mxu0 %v867
    %v4351 = vpop.f32.mrf.mxu0
    %v4352 = vadd.f32 %v4333, %v4351
    %v4353 = vpop.f32.mrf.mxu0
    %v4354 = vadd.f32 %v4335, %v4353
    %4355 = vdwg.mxu0
    %4356 = vmatpush.bf16.msra.mxu0 %v3028
    %4357 = vmatpush.bf16.msra.mxu0 %v3022
    %4358 = vmatpush.bf16.msra.mxu0 %v3016
    %4359 = vmatpush.bf16.msra.mxu0 %v3010
    %4360 = vmatpush.bf16.msra.mxu0 %v3004
    %4361 = vmatpush.bf16.msra.mxu0 %v2998
    %4362 = vmatpush.bf16.msra.mxu0 %v2992
    %4363 = vmatpush.bf16.msra.mxu0 %v2986
    %4364 = vmatmul.bf16.gmra.mxu0 %v940
    %v4365 = vpop.f32.mrf.mxu0
    %v4366 = vadd.f32 %v4347, %v4365
    %v4367 = vpop.f32.mrf.mxu0
    %v4368 = vadd.f32 %v4349, %v4367
    %4369 = vmatmul.bf16.gmra.mxu0 %v943
    %v4370 = vpop.f32.mrf.mxu0
    %v4371 = vadd.f32 %v4352, %v4370
    %v4372 = vpop.f32.mrf.mxu0
    %v4373 = vadd.f32 %v4354, %v4372
    %4374 = vdwg.mxu0
    %4375 = vmatpush.bf16.msra.mxu0 %v3076
    %4376 = vmatpush.bf16.msra.mxu0 %v3070
    %4377 = vmatpush.bf16.msra.mxu0 %v3064
    %4378 = vmatpush.bf16.msra.mxu0 %v3058
    %4379 = vmatpush.bf16.msra.mxu0 %v3052
    %4380 = vmatpush.bf16.msra.mxu0 %v3046
    %4381 = vmatpush.bf16.msra.mxu0 %v3040
    %4382 = vmatpush.bf16.msra.mxu0 %v3034
    %4383 = vmatmul.bf16.gmra.mxu0 %v941
    %v4384 = vpop.f32.mrf.mxu0
    %v4385 = vadd.f32 %v4366, %v4384
    %v4386 = vpop.f32.mrf.mxu0
    %v4387 = vadd.f32 %v4368, %v4386
    %4388 = vmatmul.bf16.gmra.mxu0 %v944
    %v4389 = vpop.f32.mrf.mxu0
    %v4390 = vadd.f32 %v4371, %v4389
    %v4391 = vpop.f32.mrf.mxu0
    %v4392 = vadd.f32 %v4373, %v4391
    %4393 = vdwg.mxu0
    %4394 = vmatpush.bf16.msra.mxu0 %v3124
    %4395 = vmatpush.bf16.msra.mxu0 %v3118
    %4396 = vmatpush.bf16.msra.mxu0 %v3112
    %4397 = vmatpush.bf16.msra.mxu0 %v3106
    %4398 = vmatpush.bf16.msra.mxu0 %v3100
    %4399 = vmatpush.bf16.msra.mxu0 %v3094
    %4400 = vmatpush.bf16.msra.mxu0 %v3088
    %4401 = vmatpush.bf16.msra.mxu0 %v3082
    %4402 = vmatmul.bf16.gmra.mxu0 %v942
    %v4403 = vpop.f32.mrf.mxu0
    %v4404 = vadd.f32 %v4385, %v4403
    %v4405 = vpop.f32.mrf.mxu0
    %v4406 = vadd.f32 %v4387, %v4405
    %4407 = vmatmul.bf16.gmra.mxu0 %v945
    %v4408 = vpop.f32.mrf.mxu0
    %v4409 = vadd.f32 %v4390, %v4408
    %v4410 = vpop.f32.mrf.mxu0
    %v4411 = vadd.f32 %v4392, %v4410
    %4412 = vdwg.mxu0
    %4413 = vmatpush.bf16.msra.mxu0 %v2741
    %4414 = vmatpush.bf16.msra.mxu0 %v2735
    %4415 = vmatpush.bf16.msra.mxu0 %v2729
    %4416 = vmatpush.bf16.msra.mxu0 %v2723
    %4417 = vmatpush.bf16.msra.mxu0 %v2717
    %4418 = vmatpush.bf16.msra.mxu0 %v2711
    %4419 = vmatpush.bf16.msra.mxu0 %v2705
    %4420 = vmatpush.bf16.msra.mxu0 %v2699
    %4421 = vmatmul.bf16.gmra.mxu0 %v916
    %v4422 = vpop.f32.mrf.mxu0
    %v4423 = vadd.f32 %v1391, %v4422
    %v4424 = vpop.f32.mrf.mxu0
    %v4425 = vadd.f32 %v1391, %v4424
    %4426 = vmatmul.bf16.gmra.mxu0 %v919
    %v4427 = vpop.f32.mrf.mxu0
    %v4428 = vadd.f32 %v1391, %v4427
    %v4429 = vpop.f32.mrf.mxu0
    %v4430 = vadd.f32 %v1391, %v4429
    %4431 = vdwg.mxu0
    %4432 = vmatpush.bf16.msra.mxu0 %v2789
    %4433 = vmatpush.bf16.msra.mxu0 %v2783
    %4434 = vmatpush.bf16.msra.mxu0 %v2777
    %4435 = vmatpush.bf16.msra.mxu0 %v2771
    %4436 = vmatpush.bf16.msra.mxu0 %v2765
    %4437 = vmatpush.bf16.msra.mxu0 %v2759
    %4438 = vmatpush.bf16.msra.mxu0 %v2753
    %4439 = vmatpush.bf16.msra.mxu0 %v2747
    %4440 = vmatmul.bf16.gmra.mxu0 %v917
    %v4441 = vpop.f32.mrf.mxu0
    %v4442 = vadd.f32 %v4423, %v4441
    %v4443 = vpop.f32.mrf.mxu0
    %v4444 = vadd.f32 %v4425, %v4443
    %4445 = vmatmul.bf16.gmra.mxu0 %v920
    %v4446 = vpop.f32.mrf.mxu0
    %v4447 = vadd.f32 %v4428, %v4446
    %v4448 = vpop.f32.mrf.mxu0
    %v4449 = vadd.f32 %v4430, %v4448
    %4450 = vdwg.mxu0
    %4451 = vmatpush.bf16.msra.mxu0 %v2837
    %4452 = vmatpush.bf16.msra.mxu0 %v2831
    %4453 = vmatpush.bf16.msra.mxu0 %v2825
    %4454 = vmatpush.bf16.msra.mxu0 %v2819
    %4455 = vmatpush.bf16.msra.mxu0 %v2813
    %4456 = vmatpush.bf16.msra.mxu0 %v2807
    %4457 = vmatpush.bf16.msra.mxu0 %v2801
    %4458 = vmatpush.bf16.msra.mxu0 %v2795
    %4459 = vmatmul.bf16.gmra.mxu0 %v918
    %v4460 = vpop.f32.mrf.mxu0
    %v4461 = vadd.f32 %v4442, %v4460
    %v4462 = vpop.f32.mrf.mxu0
    %v4463 = vadd.f32 %v4444, %v4462
    %4464 = vmatmul.bf16.gmra.mxu0 %v921
    %v4465 = vpop.f32.mrf.mxu0
    %v4466 = vadd.f32 %v4447, %v4465
    %v4467 = vpop.f32.mrf.mxu0
    %v4468 = vadd.f32 %v4449, %v4467
    %4469 = vdwg.mxu0
    %4470 = vmatpush.bf16.msra.mxu0 %v2885
    %4471 = vmatpush.bf16.msra.mxu0 %v2879
    %4472 = vmatpush.bf16.msra.mxu0 %v2873
    %4473 = vmatpush.bf16.msra.mxu0 %v2867
    %4474 = vmatpush.bf16.msra.mxu0 %v2861
    %4475 = vmatpush.bf16.msra.mxu0 %v2855
    %4476 = vmatpush.bf16.msra.mxu0 %v2849
    %4477 = vmatpush.bf16.msra.mxu0 %v2843
    %4478 = vmatmul.bf16.gmra.mxu0 %v862
    %v4479 = vpop.f32.mrf.mxu0
    %v4480 = vadd.f32 %v4461, %v4479
    %v4481 = vpop.f32.mrf.mxu0
    %v4482 = vadd.f32 %v4463, %v4481
    %4483 = vmatmul.bf16.gmra.mxu0 %v865
    %v4484 = vpop.f32.mrf.mxu0
    %v4485 = vadd.f32 %v4466, %v4484
    %v4486 = vpop.f32.mrf.mxu0
    %v4487 = vadd.f32 %v4468, %v4486
    %4488 = vdwg.mxu0
    %4489 = vmatpush.bf16.msra.mxu0 %v2933
    %4490 = vmatpush.bf16.msra.mxu0 %v2927
    %4491 = vmatpush.bf16.msra.mxu0 %v2921
    %4492 = vmatpush.bf16.msra.mxu0 %v2915
    %4493 = vmatpush.bf16.msra.mxu0 %v2909
    %4494 = vmatpush.bf16.msra.mxu0 %v2903
    %4495 = vmatpush.bf16.msra.mxu0 %v2897
    %4496 = vmatpush.bf16.msra.mxu0 %v2891
    %4497 = vmatmul.bf16.gmra.mxu0 %v863
    %v4498 = vpop.f32.mrf.mxu0
    %v4499 = vadd.f32 %v4480, %v4498
    %v4500 = vpop.f32.mrf.mxu0
    %v4501 = vadd.f32 %v4482, %v4500
    %4502 = vmatmul.bf16.gmra.mxu0 %v866
    %v4503 = vpop.f32.mrf.mxu0
    %v4504 = vadd.f32 %v4485, %v4503
    %v4505 = vpop.f32.mrf.mxu0
    %v4506 = vadd.f32 %v4487, %v4505
    %4507 = vdwg.mxu0
    %4508 = vmatpush.bf16.msra.mxu0 %v2981
    %4509 = vmatpush.bf16.msra.mxu0 %v2975
    %4510 = vmatpush.bf16.msra.mxu0 %v2969
    %4511 = vmatpush.bf16.msra.mxu0 %v2963
    %4512 = vmatpush.bf16.msra.mxu0 %v2957
    %4513 = vmatpush.bf16.msra.mxu0 %v2951
    %4514 = vmatpush.bf16.msra.mxu0 %v2945
    %4515 = vmatpush.bf16.msra.mxu0 %v2939
    %4516 = vmatmul.bf16.gmra.mxu0 %v864
    %v4517 = vpop.f32.mrf.mxu0
    %v4518 = vadd.f32 %v4499, %v4517
    %v4519 = vpop.f32.mrf.mxu0
    %v4520 = vadd.f32 %v4501, %v4519
    %4521 = vmatmul.bf16.gmra.mxu0 %v867
    %v4522 = vpop.f32.mrf.mxu0
    %v4523 = vadd.f32 %v4504, %v4522
    %v4524 = vpop.f32.mrf.mxu0
    %v4525 = vadd.f32 %v4506, %v4524
    %4526 = vdwg.mxu0
    %4527 = vmatpush.bf16.msra.mxu0 %v3029
    %4528 = vmatpush.bf16.msra.mxu0 %v3023
    %4529 = vmatpush.bf16.msra.mxu0 %v3017
    %4530 = vmatpush.bf16.msra.mxu0 %v3011
    %4531 = vmatpush.bf16.msra.mxu0 %v3005
    %4532 = vmatpush.bf16.msra.mxu0 %v2999
    %4533 = vmatpush.bf16.msra.mxu0 %v2993
    %4534 = vmatpush.bf16.msra.mxu0 %v2987
    %4535 = vmatmul.bf16.gmra.mxu0 %v940
    %v4536 = vpop.f32.mrf.mxu0
    %v4537 = vadd.f32 %v4518, %v4536
    %v4538 = vpop.f32.mrf.mxu0
    %v4539 = vadd.f32 %v4520, %v4538
    %4540 = vmatmul.bf16.gmra.mxu0 %v943
    %v4541 = vpop.f32.mrf.mxu0
    %v4542 = vadd.f32 %v4523, %v4541
    %v4543 = vpop.f32.mrf.mxu0
    %v4544 = vadd.f32 %v4525, %v4543
    %4545 = vdwg.mxu0
    %4546 = vmatpush.bf16.msra.mxu0 %v3077
    %4547 = vmatpush.bf16.msra.mxu0 %v3071
    %4548 = vmatpush.bf16.msra.mxu0 %v3065
    %4549 = vmatpush.bf16.msra.mxu0 %v3059
    %4550 = vmatpush.bf16.msra.mxu0 %v3053
    %4551 = vmatpush.bf16.msra.mxu0 %v3047
    %4552 = vmatpush.bf16.msra.mxu0 %v3041
    %4553 = vmatpush.bf16.msra.mxu0 %v3035
    %4554 = vmatmul.bf16.gmra.mxu0 %v941
    %v4555 = vpop.f32.mrf.mxu0
    %v4556 = vadd.f32 %v4537, %v4555
    %v4557 = vpop.f32.mrf.mxu0
    %v4558 = vadd.f32 %v4539, %v4557
    %4559 = vmatmul.bf16.gmra.mxu0 %v944
    %v4560 = vpop.f32.mrf.mxu0
    %v4561 = vadd.f32 %v4542, %v4560
    %v4562 = vpop.f32.mrf.mxu0
    %v4563 = vadd.f32 %v4544, %v4562
    %4564 = vdwg.mxu0
    %4565 = vmatpush.bf16.msra.mxu0 %v3125
    %4566 = vmatpush.bf16.msra.mxu0 %v3119
    %4567 = vmatpush.bf16.msra.mxu0 %v3113
    %4568 = vmatpush.bf16.msra.mxu0 %v3107
    %4569 = vmatpush.bf16.msra.mxu0 %v3101
    %4570 = vmatpush.bf16.msra.mxu0 %v3095
    %4571 = vmatpush.bf16.msra.mxu0 %v3089
    %4572 = vmatpush.bf16.msra.mxu0 %v3083
    %4573 = vmatmul.bf16.gmra.mxu0 %v942
    %v4574 = vpop.f32.mrf.mxu0
    %v4575 = vadd.f32 %v4556, %v4574
    %v4576 = vpop.f32.mrf.mxu0
    %v4577 = vadd.f32 %v4558, %v4576
    %4578 = vmatmul.bf16.gmra.mxu0 %v945
    %v4579 = vpop.f32.mrf.mxu0
    %v4580 = vadd.f32 %v4561, %v4579
    %v4581 = vpop.f32.mrf.mxu0
    %v4582 = vadd.f32 %v4563, %v4581
    %4583 = vdwg.mxu0
    %v4584 = vmax.f32 %v3720, 0.0
    %v4585 = vmax.f32 %v3891, 0.0
    %v4586 = vmax.f32 %v4062, 0.0
    %v4587 = vmax.f32 %v4233, 0.0
    %v4588 = vmax.f32 %v4404, 0.0
    %v4589 = vmax.f32 %v4575, 0.0
    %v4590 = vmax.f32 %v3722, 0.0
    %v4591 = vmax.f32 %v3893, 0.0
    %v4592 = vmax.f32 %v4064, 0.0
    %v4593 = vmax.f32 %v4235, 0.0
    %v4594 = vmax.f32 %v4406, 0.0
    %v4595 = vmax.f32 %v4577, 0.0
    %v4596 = vmax.f32 %v3725, 0.0
    %v4597 = vmax.f32 %v3896, 0.0
    %v4598 = vmax.f32 %v4067, 0.0
    %v4599 = vmax.f32 %v4238, 0.0
    %v4600 = vmax.f32 %v4409, 0.0
    %v4601 = vmax.f32 %v4580, 0.0
    %v4602 = vmax.f32 %v3727, 0.0
    %v4603 = vmax.f32 %v3898, 0.0
    %v4604 = vmax.f32 %v4069, 0.0
    %v4605 = vmax.f32 %v4240, 0.0
    %v4606 = vmax.f32 %v4411, 0.0
    %v4607 = vmax.f32 %v4582, 0.0
    %v4608 = vadd.f32 %v4584, %v4590
    %v4609 = vrot.slane %v4608, 4
    %v4610 = vadd.f32 %v4608, %v4609
    %v4611 = vrot.slane %v4610, 2
    %v4612 = vadd.f32 %v4610, %v4611
    %v4613 = vrot.slane %v4612, 1
    %v4614 = vadd.f32 %v4612, %v4613
    %v4615 = vadd.f32 %v4585, %v4591
    %v4616 = vrot.slane %v4615, 4
    %v4617 = vadd.f32 %v4615, %v4616
    %v4618 = vrot.slane %v4617, 2
    %v4619 = vadd.f32 %v4617, %v4618
    %v4620 = vrot.slane %v4619, 1
    %v4621 = vadd.f32 %v4619, %v4620
    %v4622 = vadd.f32 %v4586, %v4592
    %v4623 = vrot.slane %v4622, 4
    %v4624 = vadd.f32 %v4622, %v4623
    %v4625 = vrot.slane %v4624, 2
    %v4626 = vadd.f32 %v4624, %v4625
    %v4627 = vrot.slane %v4626, 1
    %v4628 = vadd.f32 %v4626, %v4627
    %v4629 = vadd.f32 %v4587, %v4593
    %v4630 = vrot.slane %v4629, 4
    %v4631 = vadd.f32 %v4629, %v4630
    %v4632 = vrot.slane %v4631, 2
    %v4633 = vadd.f32 %v4631, %v4632
    %v4634 = vrot.slane %v4633, 1
    %v4635 = vadd.f32 %v4633, %v4634
    %v4636 = vadd.f32 %v4588, %v4594
    %v4637 = vrot.slane %v4636, 4
    %v4638 = vadd.f32 %v4636, %v4637
    %v4639 = vrot.slane %v4638, 2
    %v4640 = vadd.f32 %v4638, %v4639
    %v4641 = vrot.slane %v4640, 1
    %v4642 = vadd.f32 %v4640, %v4641
    %v4643 = vadd.f32 %v4589, %v4595
    %v4644 = vrot.slane %v4643, 4
    %v4645 = vadd.f32 %v4643, %v4644
    %v4646 = vrot.slane %v4645, 2
    %v4647 = vadd.f32 %v4645, %v4646
    %v4648 = vrot.slane %v4647, 1
    %v4649 = vadd.f32 %v4647, %v4648
    %v4650 = vadd.f32 %v4596, %v4602
    %v4651 = vrot.slane %v4650, 4
    %v4652 = vadd.f32 %v4650, %v4651
    %v4653 = vrot.slane %v4652, 2
    %v4654 = vadd.f32 %v4652, %v4653
    %v4655 = vrot.slane %v4654, 1
    %v4656 = vadd.f32 %v4654, %v4655
    %v4657 = vadd.f32 %v4597, %v4603
    %v4658 = vrot.slane %v4657, 4
    %v4659 = vadd.f32 %v4657, %v4658
    %v4660 = vrot.slane %v4659, 2
    %v4661 = vadd.f32 %v4659, %v4660
    %v4662 = vrot.slane %v4661, 1
    %v4663 = vadd.f32 %v4661, %v4662
    %v4664 = vadd.f32 %v4598, %v4604
    %v4665 = vrot.slane %v4664, 4
    %v4666 = vadd.f32 %v4664, %v4665
    %v4667 = vrot.slane %v4666, 2
    %v4668 = vadd.f32 %v4666, %v4667
    %v4669 = vrot.slane %v4668, 1
    %v4670 = vadd.f32 %v4668, %v4669
    %v4671 = vadd.f32 %v4599, %v4605
    %v4672 = vrot.slane %v4671, 4
    %v4673 = vadd.f32 %v4671, %v4672
    %v4674 = vrot.slane %v4673, 2
    %v4675 = vadd.f32 %v4673, %v4674
    %v4676 = vrot.slane %v4675, 1
    %v4677 = vadd.f32 %v4675, %v4676
    %v4678 = vadd.f32 %v4600, %v4606
    %v4679 = vrot.slane %v4678, 4
    %v4680 = vadd.f32 %v4678, %v4679
    %v4681 = vrot.slane %v4680, 2
    %v4682 = vadd.f32 %v4680, %v4681
    %v4683 = vrot.slane %v4682, 1
    %v4684 = vadd.f32 %v4682, %v4683
    %v4685 = vadd.f32 %v4601, %v4607
    %v4686 = vrot.slane %v4685, 4
    %v4687 = vadd.f32 %v4685, %v4686
    %v4688 = vrot.slane %v4687, 2
    %v4689 = vadd.f32 %v4687, %v4688
    %v4690 = vrot.slane %v4689, 1
    %v4691 = vadd.f32 %v4689, %v4690
    %v4692 = vpack.c.bf16 %v4614, %v4614
    %v4693 = vpack.c.bf16 %v4621, %v4621
    %v4694 = vpack.c.bf16 %v4628, %v4628
    %v4695 = vpack.c.bf16 %v4635, %v4635
    %v4696 = vpack.c.bf16 %v4642, %v4642
    %v4697 = vpack.c.bf16 %v4649, %v4649
    %v4698 = vpack.c.bf16 %v4656, %v4656
    %v4699 = vpack.c.bf16 %v4663, %v4663
    %v4700 = vpack.c.bf16 %v4670, %v4670
    %v4701 = vpack.c.bf16 %v4677, %v4677
    %v4702 = vpack.c.bf16 %v4684, %v4684
    %v4703 = vpack.c.bf16 %v4691, %v4691
    %v4704 = vld [vmem:[#allocation9] sm:$0xff]
    %v4705 = vld [vmem:[#allocation9 + $0x8] sm:$0xf]
    %v4706 = vld [vmem:[#allocation9 + $0xc] sm:$0xff]
    %v4707 = vld [vmem:[#allocation9 + $0x14] sm:$0xf]
    %v4708 = vld [vmem:[#allocation9 + $0x18] sm:$0xff]
    %v4709 = vld [vmem:[#allocation9 + $0x20] sm:$0xf]
    %v4710 = vld [vmem:[#allocation9 + $0x24] sm:$0xff]
    %v4711 = vld [vmem:[#allocation9 + $0x2c] sm:$0xf]
    %v4712 = vld [vmem:[#allocation9 + $0x30] sm:$0xff]
    %v4713 = vld [vmem:[#allocation9 + $0x38] sm:$0xf]
    %v4714 = vld [vmem:[#allocation9 + $0x3c] sm:$0xff]
    %v4715 = vld [vmem:[#allocation9 + $0x44] sm:$0xf]
    %v4716 = vld [vmem:[#allocation9 + $0x48] sm:$0xff]
    %v4717 = vld [vmem:[#allocation9 + $0x50] sm:$0xf]
    %v4718 = vld [vmem:[#allocation9 + $0x54] sm:$0xff]
    %v4719 = vld [vmem:[#allocation9 + $0x5c] sm:$0xf]
    %v4720 = vld [vmem:[#allocation9 + $0x60] sm:$0xff]
    %v4721 = vld [vmem:[#allocation9 + $0x68] sm:$0xf]
    %v4722 = vld [vmem:[#allocation9 + $0x6c] sm:$0xff]
    %v4723 = vld [vmem:[#allocation9 + $0x74] sm:$0xf]
    %v4724 = vld [vmem:[#allocation9 + $0x78] sm:$0xff]
    %v4725 = vld [vmem:[#allocation9 + $0x80] sm:$0xf]
    %v4726 = vld [vmem:[#allocation9 + $0x84] sm:$0xff]
    %v4727 = vld [vmem:[#allocation9 + $0x8c] sm:$0xf]
    %v4728 = vld [vmem:[#allocation9 + $0x90] sm:$0xff]
    %v4729 = vld [vmem:[#allocation9 + $0x98] sm:$0xf]
    %v4730 = vld [vmem:[#allocation9 + $0x9c] sm:$0xff]
    %v4731 = vld [vmem:[#allocation9 + $0xa4] sm:$0xf]
    %v4732 = vld [vmem:[#allocation9 + $0xa8] sm:$0xff]
    %v4733 = vld [vmem:[#allocation9 + $0xb0] sm:$0xf]
    %v4734 = vld [vmem:[#allocation9 + $0xb4] sm:$0xff]
    %v4735 = vld [vmem:[#allocation9 + $0xbc] sm:$0xf]
    %v4736 = vld [vmem:[#allocation9 + $0xc0] sm:$0xff]
    %v4737 = vld [vmem:[#allocation9 + $0xc8] sm:$0xf]
    %v4738 = vld [vmem:[#allocation9 + $0xcc] sm:$0xff]
    %v4739 = vld [vmem:[#allocation9 + $0xd4] sm:$0xf]
    %v4740 = vld [vmem:[#allocation9 + $0xd8] sm:$0xff]
    %v4741 = vld [vmem:[#allocation9 + $0xe0] sm:$0xf]
    %v4742 = vld [vmem:[#allocation9 + $0xe4] sm:$0xff]
    %v4743 = vld [vmem:[#allocation9 + $0xec] sm:$0xf]
    %v4744 = vld [vmem:[#allocation9 + $0xf0] sm:$0xff]
    %v4745 = vld [vmem:[#allocation9 + $0xf8] sm:$0xf]
    %v4746 = vld [vmem:[#allocation9 + $0xfc] sm:$0xff]
    %v4747 = vld [vmem:[#allocation9 + $0x104] sm:$0xf]
    %v4748 = vld [vmem:[#allocation9 + $0x108] sm:$0xff]
    %v4749 = vld [vmem:[#allocation9 + $0x110] sm:$0xf]
    %v4750 = vld [vmem:[#allocation9 + $0x114] sm:$0xff]
    %v4751 = vld [vmem:[#allocation9 + $0x11c] sm:$0xf]
    %v4752 = vld [vmem:[#allocation9 + $0x120] sm:$0xff]
    %v4753 = vld [vmem:[#allocation9 + $0x128] sm:$0xf]
    %v4754 = vld [vmem:[#allocation9 + $0x12c] sm:$0xff]
    %v4755 = vld [vmem:[#allocation9 + $0x134] sm:$0xf]
    %v4756 = vld [vmem:[#allocation9 + $0x138] sm:$0xff]
    %v4757 = vld [vmem:[#allocation9 + $0x140] sm:$0xf]
    %v4758 = vld [vmem:[#allocation9 + $0x144] sm:$0xff]
    %v4759 = vld [vmem:[#allocation9 + $0x14c] sm:$0xf]
    %v4760 = vld [vmem:[#allocation9 + $0x150] sm:$0xff]
    %v4761 = vld [vmem:[#allocation9 + $0x158] sm:$0xf]
    %v4762 = vld [vmem:[#allocation9 + $0x15c] sm:$0xff]
    %v4763 = vld [vmem:[#allocation9 + $0x164] sm:$0xf]
    %v4764 = vld [vmem:[#allocation9 + $0x168] sm:$0xff]
    %v4765 = vld [vmem:[#allocation9 + $0x170] sm:$0xf]
    %v4766 = vld [vmem:[#allocation9 + $0x174] sm:$0xff]
    %v4767 = vld [vmem:[#allocation9 + $0x17c] sm:$0xf]
    %v4768 = vld [vmem:[#allocation9 + $0x180] sm:$0xff]
    %v4769 = vld [vmem:[#allocation9 + $0x188] sm:$0xf]
    %v4770 = vld [vmem:[#allocation9 + $0x18c] sm:$0xff]
    %v4771 = vld [vmem:[#allocation9 + $0x194] sm:$0xf]
    %v4772 = vld [vmem:[#allocation9 + $0x198] sm:$0xff]
    %v4773 = vld [vmem:[#allocation9 + $0x1a0] sm:$0xf]
    %v4774 = vld [vmem:[#allocation9 + $0x1a4] sm:$0xff]
    %v4775 = vld [vmem:[#allocation9 + $0x1ac] sm:$0xf]
    %v4776 = vld [vmem:[#allocation9 + $0x1b0] sm:$0xff]
    %v4777 = vld [vmem:[#allocation9 + $0x1b8] sm:$0xf]
    %v4778 = vld [vmem:[#allocation9 + $0x1bc] sm:$0xff]
    %v4779 = vld [vmem:[#allocation9 + $0x1c4] sm:$0xf]
    %v4780 = vld [vmem:[#allocation9 + $0x1c8] sm:$0xff]
    %v4781 = vld [vmem:[#allocation9 + $0x1d0] sm:$0xf]
    %v4782 = vld [vmem:[#allocation9 + $0x1d4] sm:$0xff]
    %v4783 = vld [vmem:[#allocation9 + $0x1dc] sm:$0xf]
    %v4784 = vld [vmem:[#allocation9 + $0x1e0] sm:$0xff]
    %v4785 = vld [vmem:[#allocation9 + $0x1e8] sm:$0xf]
    %v4786 = vld [vmem:[#allocation9 + $0x1ec] sm:$0xff]
    %v4787 = vld [vmem:[#allocation9 + $0x1f4] sm:$0xf]
    %v4788 = vld [vmem:[#allocation9 + $0x1f8] sm:$0xff]
    %v4789 = vld [vmem:[#allocation9 + $0x200] sm:$0xf]
    %v4790 = vld [vmem:[#allocation9 + $0x204] sm:$0xff]
    %v4791 = vld [vmem:[#allocation9 + $0x20c] sm:$0xf]
    %v4792 = vld [vmem:[#allocation9 + $0x210] sm:$0xff]
    %v4793 = vld [vmem:[#allocation9 + $0x218] sm:$0xf]
    %v4794 = vld [vmem:[#allocation9 + $0x21c] sm:$0xff]
    %v4795 = vld [vmem:[#allocation9 + $0x224] sm:$0xf]
    %v4796 = vld [vmem:[#allocation9 + $0x228] sm:$0xff]
    %v4797 = vld [vmem:[#allocation9 + $0x230] sm:$0xf]
    %v4798 = vld [vmem:[#allocation9 + $0x234] sm:$0xff]
    %v4799 = vld [vmem:[#allocation9 + $0x23c] sm:$0xf]
    %v4800 = vld [vmem:[#allocation9 + $0x240] sm:$0xff]
    %v4801 = vld [vmem:[#allocation9 + $0x248] sm:$0xf]
    %v4802 = vld [vmem:[#allocation9 + $0x24c] sm:$0xff]
    %v4803 = vld [vmem:[#allocation9 + $0x254] sm:$0xf]
    %v4804 = vld [vmem:[#allocation9 + $0x258] sm:$0xff]
    %v4805 = vld [vmem:[#allocation9 + $0x260] sm:$0xf]
    %v4806 = vld [vmem:[#allocation9 + $0x264] sm:$0xff]
    %v4807 = vld [vmem:[#allocation9 + $0x26c] sm:$0xf]
    %v4808 = vld [vmem:[#allocation9 + $0x270] sm:$0xff]
    %v4809 = vld [vmem:[#allocation9 + $0x278] sm:$0xf]
    %v4810 = vld [vmem:[#allocation9 + $0x27c] sm:$0xff]
    %v4811 = vld [vmem:[#allocation9 + $0x284] sm:$0xf]
    %v4812 = vld [vmem:[#allocation9 + $0x288] sm:$0xff]
    %v4813 = vld [vmem:[#allocation9 + $0x290] sm:$0xf]
    %v4814 = vld [vmem:[#allocation9 + $0x294] sm:$0xff]
    %v4815 = vld [vmem:[#allocation9 + $0x29c] sm:$0xf]
    %v4816 = vld [vmem:[#allocation9 + $0x2a0] sm:$0xff]
    %v4817 = vld [vmem:[#allocation9 + $0x2a8] sm:$0xf]
    %v4818 = vld [vmem:[#allocation9 + $0x2ac] sm:$0xff]
    %v4819 = vld [vmem:[#allocation9 + $0x2b4] sm:$0xf]
    %v4820 = vld [vmem:[#allocation9 + $0x2b8] sm:$0xff]
    %v4821 = vld [vmem:[#allocation9 + $0x2c0] sm:$0xf]
    %v4822 = vld [vmem:[#allocation9 + $0x2c4] sm:$0xff]
    %v4823 = vld [vmem:[#allocation9 + $0x2cc] sm:$0xf]
    %v4824 = vld [vmem:[#allocation9 + $0x2d0] sm:$0xff]
    %v4825 = vld [vmem:[#allocation9 + $0x2d8] sm:$0xf]
    %v4826 = vld [vmem:[#allocation9 + $0x2dc] sm:$0xff]
    %v4827 = vld [vmem:[#allocation9 + $0x2e4] sm:$0xf]
    %v4828 = vld [vmem:[#allocation9 + $0x2e8] sm:$0xff]
    %v4829 = vld [vmem:[#allocation9 + $0x2f0] sm:$0xf]
    %v4830 = vld [vmem:[#allocation9 + $0x2f4] sm:$0xff]
    %v4831 = vld [vmem:[#allocation9 + $0x2fc] sm:$0xf]
    %v4832 = vld [vmem:[#allocation9 + $0x300] sm:$0xff]
    %v4833 = vld [vmem:[#allocation9 + $0x308] sm:$0xf]
    %v4834 = vld [vmem:[#allocation9 + $0x30c] sm:$0xff]
    %v4835 = vld [vmem:[#allocation9 + $0x314] sm:$0xf]
    %v4836 = vld [vmem:[#allocation9 + $0x318] sm:$0xff]
    %v4837 = vld [vmem:[#allocation9 + $0x320] sm:$0xf]
    %v4838 = vld [vmem:[#allocation9 + $0x324] sm:$0xff]
    %v4839 = vld [vmem:[#allocation9 + $0x32c] sm:$0xf]
    %v4840 = vld [vmem:[#allocation9 + $0x330] sm:$0xff]
    %v4841 = vld [vmem:[#allocation9 + $0x338] sm:$0xf]
    %v4842 = vld [vmem:[#allocation9 + $0x33c] sm:$0xff]
    %v4843 = vld [vmem:[#allocation9 + $0x344] sm:$0xf]
    %v4844 = vld [vmem:[#allocation9 + $0x348] sm:$0xff]
    %v4845 = vld [vmem:[#allocation9 + $0x350] sm:$0xf]
    %v4846 = vld [vmem:[#allocation9 + $0x354] sm:$0xff]
    %v4847 = vld [vmem:[#allocation9 + $0x35c] sm:$0xf]
    %v4848 = vld [vmem:[#allocation9 + $0x360] sm:$0xff]
    %v4849 = vld [vmem:[#allocation9 + $0x368] sm:$0xf]
    %v4850 = vld [vmem:[#allocation9 + $0x36c] sm:$0xff]
    %v4851 = vld [vmem:[#allocation9 + $0x374] sm:$0xf]
    %v4852 = vld [vmem:[#allocation9 + $0x378] sm:$0xff]
    %v4853 = vld [vmem:[#allocation9 + $0x380] sm:$0xf]
    %v4854 = vld [vmem:[#allocation9 + $0x384] sm:$0xff]
    %v4855 = vld [vmem:[#allocation9 + $0x38c] sm:$0xf]
    %v4856 = vld [vmem:[#allocation9 + $0x390] sm:$0xff]
    %v4857 = vld [vmem:[#allocation9 + $0x398] sm:$0xf]
    %v4858 = vld [vmem:[#allocation9 + $0x39c] sm:$0xff]
    %v4859 = vld [vmem:[#allocation9 + $0x3a4] sm:$0xf]
    %v4860 = vld [vmem:[#allocation9 + $0x3a8] sm:$0xff]
    %v4861 = vld [vmem:[#allocation9 + $0x3b0] sm:$0xf]
    %v4862 = vld [vmem:[#allocation9 + $0x3b4] sm:$0xff]
    %v4863 = vld [vmem:[#allocation9 + $0x3bc] sm:$0xf]
    %v4864 = vld [vmem:[#allocation9 + $0x3c0] sm:$0xff]
    %v4865 = vld [vmem:[#allocation9 + $0x3c8] sm:$0xf]
    %v4866 = vld [vmem:[#allocation9 + $0x3cc] sm:$0xff]
    %v4867 = vld [vmem:[#allocation9 + $0x3d4] sm:$0xf]
    %v4868 = vld [vmem:[#allocation9 + $0x3d8] sm:$0xff]
    %v4869 = vld [vmem:[#allocation9 + $0x3e0] sm:$0xf]
    %v4870 = vld [vmem:[#allocation9 + $0x3e4] sm:$0xff]
    %v4871 = vld [vmem:[#allocation9 + $0x3ec] sm:$0xf]
    %v4872 = vld [vmem:[#allocation9 + $0x3f0] sm:$0xff]
    %v4873 = vld [vmem:[#allocation9 + $0x3f8] sm:$0xf]
    %v4874 = vld [vmem:[#allocation9 + $0x3fc] sm:$0xff]
    %v4875 = vld [vmem:[#allocation9 + $0x404] sm:$0xf]
    %v4876 = vld [vmem:[#allocation9 + $0x408] sm:$0xff]
    %v4877 = vld [vmem:[#allocation9 + $0x410] sm:$0xf]
    %v4878 = vld [vmem:[#allocation9 + $0x414] sm:$0xff]
    %v4879 = vld [vmem:[#allocation9 + $0x41c] sm:$0xf]
    %v4880 = vld [vmem:[#allocation9 + $0x420] sm:$0xff]
    %v4881 = vld [vmem:[#allocation9 + $0x428] sm:$0xf]
    %v4882 = vld [vmem:[#allocation9 + $0x42c] sm:$0xff]
    %v4883 = vld [vmem:[#allocation9 + $0x434] sm:$0xf]
    %v4884 = vld [vmem:[#allocation9 + $0x438] sm:$0xff]
    %v4885 = vld [vmem:[#allocation9 + $0x440] sm:$0xf]
    %v4886 = vld [vmem:[#allocation9 + $0x444] sm:$0xff]
    %v4887 = vld [vmem:[#allocation9 + $0x44c] sm:$0xf]
    %v4888 = vld [vmem:[#allocation9 + $0x450] sm:$0xff]
    %v4889 = vld [vmem:[#allocation9 + $0x458] sm:$0xf]
    %v4890 = vld [vmem:[#allocation9 + $0x45c] sm:$0xff]
    %v4891 = vld [vmem:[#allocation9 + $0x464] sm:$0xf]
    %v4892 = vld [vmem:[#allocation9 + $0x468] sm:$0xff]
    %v4893 = vld [vmem:[#allocation9 + $0x470] sm:$0xf]
    %v4894 = vld [vmem:[#allocation9 + $0x474] sm:$0xff]
    %v4895 = vld [vmem:[#allocation9 + $0x47c] sm:$0xf]
    %v4896 = vld [vmem:[#allocation10] sm:$0x7]
    %v4898 = vperm.slane %v4896, 0
    %v4899 = vperm.slane %v4896, 1
    %v4900 = vperm.slane %v4896, 2
    %v4916 = vunpack.c.l.b16 %v4692
    %v4917 = vunpack.c.l.b16 %v4693
    %v4918 = vunpack.c.l.b16 %v4694
    %v4919 = vunpack.c.l.b16 %v4695
    %v4920 = vunpack.c.l.b16 %v4696
    %v4921 = vunpack.c.l.b16 %v4697
    %v4922 = vunpack.c.l.b16 %v4698
    %v4923 = vunpack.c.l.b16 %v4699
    %v4924 = vunpack.c.l.b16 %v4700
    %v4925 = vunpack.c.l.b16 %v4701
    %v4926 = vunpack.c.l.b16 %v4702
    %v4927 = vunpack.c.l.b16 %v4703
    %vm4928 = vcmask 1041409
    %v4929 = vsel %vm4928, %v4922, %v4916
    %v4930 = vsel %vm4928, %v4923, %v4917
    %v4931 = vsel %vm4928, %v4924, %v4918
    %v4932 = vsel %vm4928, %v4925, %v4919
    %v4933 = vsel %vm4928, %v4926, %v4920
    %v4934 = vsel %vm4928, %v4927, %v4921
    %v4935 = vpack.c.b16 %v4929, %v4929
    %v4936 = vpack.c.b16 %v4930, %v4930
    %v4937 = vpack.c.b16 %v4931, %v4931
    %v4938 = vpack.c.b16 %v4932, %v4932
    %v4939 = vpack.c.b16 %v4933, %v4933
    %v4940 = vpack.c.b16 %v4934, %v4934
    %v5139 = vunpack.c.l.b16 %v4704
    %v5140 = vunpack.c.h.b16 %v4704
    %v5141 = vunpack.c.l.b16 %v4705
    %v5142 = vunpack.c.l.b16 %v4706
    %v5143 = vunpack.c.h.b16 %v4706
    %v5144 = vunpack.c.l.b16 %v4707
    %v5145 = vunpack.c.l.b16 %v4708
    %v5146 = vunpack.c.h.b16 %v4708
    %v5147 = vunpack.c.l.b16 %v4709
    %v5148 = vunpack.c.l.b16 %v4710
    %v5149 = vunpack.c.h.b16 %v4710
    %v5150 = vunpack.c.l.b16 %v4711
    %v5151 = vunpack.c.l.b16 %v4712
    %v5152 = vunpack.c.h.b16 %v4712
    %v5153 = vunpack.c.l.b16 %v4713
    %v5154 = vunpack.c.l.b16 %v4714
    %v5155 = vunpack.c.h.b16 %v4714
    %v5156 = vunpack.c.l.b16 %v4715
    %v5157 = vunpack.c.l.b16 %v4716
    %v5158 = vunpack.c.h.b16 %v4716
    %v5159 = vunpack.c.l.b16 %v4717
    %v5160 = vunpack.c.l.b16 %v4718
    %v5161 = vunpack.c.h.b16 %v4718
    %v5162 = vunpack.c.l.b16 %v4719
    %v5163 = vunpack.c.l.b16 %v4720
    %v5164 = vunpack.c.h.b16 %v4720
    %v5165 = vunpack.c.l.b16 %v4721
    %v5166 = vunpack.c.l.b16 %v4722
    %v5167 = vunpack.c.h.b16 %v4722
    %v5168 = vunpack.c.l.b16 %v4723
    %v5169 = vunpack.c.l.b16 %v4724
    %v5170 = vunpack.c.h.b16 %v4724
    %v5171 = vunpack.c.l.b16 %v4725
    %v5172 = vunpack.c.l.b16 %v4726
    %v5173 = vunpack.c.h.b16 %v4726
    %v5174 = vunpack.c.l.b16 %v4727
    %v5175 = vunpack.c.l.b16 %v4728
    %v5176 = vunpack.c.h.b16 %v4728
    %v5177 = vunpack.c.l.b16 %v4729
    %v5178 = vunpack.c.l.b16 %v4730
    %v5179 = vunpack.c.h.b16 %v4730
    %v5180 = vunpack.c.l.b16 %v4731
    %v5181 = vunpack.c.l.b16 %v4732
    %v5182 = vunpack.c.h.b16 %v4732
    %v5183 = vunpack.c.l.b16 %v4733
    %v5184 = vunpack.c.l.b16 %v4734
    %v5185 = vunpack.c.h.b16 %v4734
    %v5186 = vunpack.c.l.b16 %v4735
    %v5187 = vunpack.c.l.b16 %v4736
    %v5188 = vunpack.c.h.b16 %v4736
    %v5189 = vunpack.c.l.b16 %v4737
    %v5190 = vunpack.c.l.b16 %v4738
    %v5191 = vunpack.c.h.b16 %v4738
    %v5192 = vunpack.c.l.b16 %v4739
    %v5193 = vunpack.c.l.b16 %v4740
    %v5194 = vunpack.c.h.b16 %v4740
    %v5195 = vunpack.c.l.b16 %v4741
    %v5196 = vunpack.c.l.b16 %v4742
    %v5197 = vunpack.c.h.b16 %v4742
    %v5198 = vunpack.c.l.b16 %v4743
    %v5199 = vunpack.c.l.b16 %v4744
    %v5200 = vunpack.c.h.b16 %v4744
    %v5201 = vunpack.c.l.b16 %v4745
    %v5202 = vunpack.c.l.b16 %v4746
    %v5203 = vunpack.c.h.b16 %v4746
    %v5204 = vunpack.c.l.b16 %v4747
    %v5205 = vunpack.c.l.b16 %v4748
    %v5206 = vunpack.c.h.b16 %v4748
    %v5207 = vunpack.c.l.b16 %v4749
    %v5208 = vunpack.c.l.b16 %v4750
    %v5209 = vunpack.c.h.b16 %v4750
    %v5210 = vunpack.c.l.b16 %v4751
    %v5211 = vunpack.c.l.b16 %v4752
    %v5212 = vunpack.c.h.b16 %v4752
    %v5213 = vunpack.c.l.b16 %v4753
    %v5214 = vunpack.c.l.b16 %v4754
    %v5215 = vunpack.c.h.b16 %v4754
    %v5216 = vunpack.c.l.b16 %v4755
    %v5217 = vunpack.c.l.b16 %v4756
    %v5218 = vunpack.c.h.b16 %v4756
    %v5219 = vunpack.c.l.b16 %v4757
    %v5220 = vunpack.c.l.b16 %v4758
    %v5221 = vunpack.c.h.b16 %v4758
    %v5222 = vunpack.c.l.b16 %v4759
    %v5223 = vunpack.c.l.b16 %v4760
    %v5224 = vunpack.c.h.b16 %v4760
    %v5225 = vunpack.c.l.b16 %v4761
    %v5226 = vunpack.c.l.b16 %v4762
    %v5227 = vunpack.c.h.b16 %v4762
    %v5228 = vunpack.c.l.b16 %v4763
    %v5229 = vunpack.c.l.b16 %v4764
    %v5230 = vunpack.c.h.b16 %v4764
    %v5231 = vunpack.c.l.b16 %v4765
    %v5232 = vunpack.c.l.b16 %v4766
    %v5233 = vunpack.c.h.b16 %v4766
    %v5234 = vunpack.c.l.b16 %v4767
    %v5235 = vunpack.c.l.b16 %v4768
    %v5236 = vunpack.c.h.b16 %v4768
    %v5237 = vunpack.c.l.b16 %v4769
    %v5238 = vunpack.c.l.b16 %v4770
    %v5239 = vunpack.c.h.b16 %v4770
    %v5240 = vunpack.c.l.b16 %v4771
    %v5241 = vunpack.c.l.b16 %v4772
    %v5242 = vunpack.c.h.b16 %v4772
    %v5243 = vunpack.c.l.b16 %v4773
    %v5244 = vunpack.c.l.b16 %v4774
    %v5245 = vunpack.c.h.b16 %v4774
    %v5246 = vunpack.c.l.b16 %v4775
    %v5247 = vunpack.c.l.b16 %v4776
    %v5248 = vunpack.c.h.b16 %v4776
    %v5249 = vunpack.c.l.b16 %v4777
    %v5250 = vunpack.c.l.b16 %v4778
    %v5251 = vunpack.c.h.b16 %v4778
    %v5252 = vunpack.c.l.b16 %v4779
    %v5253 = vunpack.c.l.b16 %v4780
    %v5254 = vunpack.c.h.b16 %v4780
    %v5255 = vunpack.c.l.b16 %v4781
    %v5256 = vunpack.c.l.b16 %v4782
    %v5257 = vunpack.c.h.b16 %v4782
    %v5258 = vunpack.c.l.b16 %v4783
    %v5259 = vunpack.c.l.b16 %v4784
    %v5260 = vunpack.c.h.b16 %v4784
    %v5261 = vunpack.c.l.b16 %v4785
    %v5262 = vunpack.c.l.b16 %v4786
    %v5263 = vunpack.c.h.b16 %v4786
    %v5264 = vunpack.c.l.b16 %v4787
    %v5265 = vunpack.c.l.b16 %v4788
    %v5266 = vunpack.c.h.b16 %v4788
    %v5267 = vunpack.c.l.b16 %v4789
    %v5268 = vunpack.c.l.b16 %v4790
    %v5269 = vunpack.c.h.b16 %v4790
    %v5270 = vunpack.c.l.b16 %v4791
    %v5271 = vunpack.c.l.b16 %v4792
    %v5272 = vunpack.c.h.b16 %v4792
    %v5273 = vunpack.c.l.b16 %v4793
    %v5274 = vunpack.c.l.b16 %v4794
    %v5275 = vunpack.c.h.b16 %v4794
    %v5276 = vunpack.c.l.b16 %v4795
    %v5277 = vunpack.c.l.b16 %v4796
    %v5278 = vunpack.c.h.b16 %v4796
    %v5279 = vunpack.c.l.b16 %v4797
    %v5280 = vunpack.c.l.b16 %v4798
    %v5281 = vunpack.c.h.b16 %v4798
    %v5282 = vunpack.c.l.b16 %v4799
    %v5283 = vunpack.c.l.b16 %v4800
    %v5284 = vunpack.c.h.b16 %v4800
    %v5285 = vunpack.c.l.b16 %v4801
    %v5286 = vunpack.c.l.b16 %v4802
    %v5287 = vunpack.c.h.b16 %v4802
    %v5288 = vunpack.c.l.b16 %v4803
    %v5289 = vunpack.c.l.b16 %v4804
    %v5290 = vunpack.c.h.b16 %v4804
    %v5291 = vunpack.c.l.b16 %v4805
    %v5292 = vunpack.c.l.b16 %v4806
    %v5293 = vunpack.c.h.b16 %v4806
    %v5294 = vunpack.c.l.b16 %v4807
    %v5295 = vunpack.c.l.b16 %v4808
    %v5296 = vunpack.c.h.b16 %v4808
    %v5297 = vunpack.c.l.b16 %v4809
    %v5298 = vunpack.c.l.b16 %v4810
    %v5299 = vunpack.c.h.b16 %v4810
    %v5300 = vunpack.c.l.b16 %v4811
    %v5301 = vunpack.c.l.b16 %v4812
    %v5302 = vunpack.c.h.b16 %v4812
    %v5303 = vunpack.c.l.b16 %v4813
    %v5304 = vunpack.c.l.b16 %v4814
    %v5305 = vunpack.c.h.b16 %v4814
    %v5306 = vunpack.c.l.b16 %v4815
    %v5307 = vunpack.c.l.b16 %v4816
    %v5308 = vunpack.c.h.b16 %v4816
    %v5309 = vunpack.c.l.b16 %v4817
    %v5310 = vunpack.c.l.b16 %v4818
    %v5311 = vunpack.c.h.b16 %v4818
    %v5312 = vunpack.c.l.b16 %v4819
    %v5313 = vunpack.c.l.b16 %v4820
    %v5314 = vunpack.c.h.b16 %v4820
    %v5315 = vunpack.c.l.b16 %v4821
    %v5316 = vunpack.c.l.b16 %v4822
    %v5317 = vunpack.c.h.b16 %v4822
    %v5318 = vunpack.c.l.b16 %v4823
    %v5319 = vunpack.c.l.b16 %v4824
    %v5320 = vunpack.c.h.b16 %v4824
    %v5321 = vunpack.c.l.b16 %v4825
    %v5322 = vunpack.c.l.b16 %v4826
    %v5323 = vunpack.c.h.b16 %v4826
    %v5324 = vunpack.c.l.b16 %v4827
    %v5325 = vunpack.c.l.b16 %v4828
    %v5326 = vunpack.c.h.b16 %v4828
    %v5327 = vunpack.c.l.b16 %v4829
    %v5328 = vunpack.c.l.b16 %v4830
    %v5329 = vunpack.c.h.b16 %v4830
    %v5330 = vunpack.c.l.b16 %v4831
    %v5331 = vunpack.c.l.b16 %v4832
    %v5332 = vunpack.c.h.b16 %v4832
    %v5333 = vunpack.c.l.b16 %v4833
    %v5334 = vunpack.c.l.b16 %v4834
    %v5335 = vunpack.c.h.b16 %v4834
    %v5336 = vunpack.c.l.b16 %v4835
    %v5337 = vunpack.c.l.b16 %v4836
    %v5338 = vunpack.c.h.b16 %v4836
    %v5339 = vunpack.c.l.b16 %v4837
    %v5340 = vunpack.c.l.b16 %v4838
    %v5341 = vunpack.c.h.b16 %v4838
    %v5342 = vunpack.c.l.b16 %v4839
    %v5343 = vunpack.c.l.b16 %v4840
    %v5344 = vunpack.c.h.b16 %v4840
    %v5345 = vunpack.c.l.b16 %v4841
    %v5346 = vunpack.c.l.b16 %v4842
    %v5347 = vunpack.c.h.b16 %v4842
    %v5348 = vunpack.c.l.b16 %v4843
    %v5349 = vunpack.c.l.b16 %v4844
    %v5350 = vunpack.c.h.b16 %v4844
    %v5351 = vunpack.c.l.b16 %v4845
    %v5352 = vunpack.c.l.b16 %v4846
    %v5353 = vunpack.c.h.b16 %v4846
    %v5354 = vunpack.c.l.b16 %v4847
    %v5355 = vunpack.c.l.b16 %v4848
    %v5356 = vunpack.c.h.b16 %v4848
    %v5357 = vunpack.c.l.b16 %v4849
    %v5358 = vunpack.c.l.b16 %v4850
    %v5359 = vunpack.c.h.b16 %v4850
    %v5360 = vunpack.c.l.b16 %v4851
    %v5361 = vunpack.c.l.b16 %v4852
    %v5362 = vunpack.c.h.b16 %v4852
    %v5363 = vunpack.c.l.b16 %v4853
    %v5364 = vunpack.c.l.b16 %v4854
    %v5365 = vunpack.c.h.b16 %v4854
    %v5366 = vunpack.c.l.b16 %v4855
    %v5367 = vunpack.c.l.b16 %v4856
    %v5368 = vunpack.c.h.b16 %v4856
    %v5369 = vunpack.c.l.b16 %v4857
    %v5370 = vunpack.c.l.b16 %v4858
    %v5371 = vunpack.c.h.b16 %v4858
    %v5372 = vunpack.c.l.b16 %v4859
    %v5373 = vunpack.c.l.b16 %v4860
    %v5374 = vunpack.c.h.b16 %v4860
    %v5375 = vunpack.c.l.b16 %v4861
    %v5376 = vunpack.c.l.b16 %v4862
    %v5377 = vunpack.c.h.b16 %v4862
    %v5378 = vunpack.c.l.b16 %v4863
    %v5379 = vunpack.c.l.b16 %v4864
    %v5380 = vunpack.c.h.b16 %v4864
    %v5381 = vunpack.c.l.b16 %v4865
    %v5382 = vunpack.c.l.b16 %v4866
    %v5383 = vunpack.c.h.b16 %v4866
    %v5384 = vunpack.c.l.b16 %v4867
    %v5385 = vunpack.c.l.b16 %v4868
    %v5386 = vunpack.c.h.b16 %v4868
    %v5387 = vunpack.c.l.b16 %v4869
    %v5388 = vunpack.c.l.b16 %v4870
    %v5389 = vunpack.c.h.b16 %v4870
    %v5390 = vunpack.c.l.b16 %v4871
    %v5391 = vunpack.c.l.b16 %v4872
    %v5392 = vunpack.c.h.b16 %v4872
    %v5393 = vunpack.c.l.b16 %v4873
    %v5394 = vunpack.c.l.b16 %v4874
    %v5395 = vunpack.c.h.b16 %v4874
    %v5396 = vunpack.c.l.b16 %v4875
    %v5397 = vunpack.c.l.b16 %v4876
    %v5398 = vunpack.c.h.b16 %v4876
    %v5399 = vunpack.c.l.b16 %v4877
    %v5400 = vunpack.c.l.b16 %v4878
    %v5401 = vunpack.c.h.b16 %v4878
    %v5402 = vunpack.c.l.b16 %v4879
    %v5403 = vunpack.c.l.b16 %v4880
    %v5404 = vunpack.c.h.b16 %v4880
    %v5405 = vunpack.c.l.b16 %v4881
    %v5406 = vunpack.c.l.b16 %v4882
    %v5407 = vunpack.c.h.b16 %v4882
    %v5408 = vunpack.c.l.b16 %v4883
    %v5409 = vunpack.c.l.b16 %v4884
    %v5410 = vunpack.c.h.b16 %v4884
    %v5411 = vunpack.c.l.b16 %v4885
    %v5412 = vunpack.c.l.b16 %v4886
    %v5413 = vunpack.c.h.b16 %v4886
    %v5414 = vunpack.c.l.b16 %v4887
    %v5415 = vunpack.c.l.b16 %v4888
    %v5416 = vunpack.c.h.b16 %v4888
    %v5417 = vunpack.c.l.b16 %v4889
    %v5418 = vunpack.c.l.b16 %v4890
    %v5419 = vunpack.c.h.b16 %v4890
    %v5420 = vunpack.c.l.b16 %v4891
    %v5421 = vunpack.c.l.b16 %v4892
    %v5422 = vunpack.c.h.b16 %v4892
    %v5423 = vunpack.c.l.b16 %v4893
    %v5424 = vunpack.c.l.b16 %v4894
    %v5425 = vunpack.c.h.b16 %v4894
    %v5426 = vunpack.c.l.b16 %v4895
    %v5427 = vpack.c.b16 %v5142, %v5139
    %v5428 = vpack.c.b16 %v5143, %v5140
    %v5429 = vpack.c.b16 %v5144, %v5141
    %v5430 = vpack.c.b16 %v5148, %v5145
    %v5431 = vpack.c.b16 %v5149, %v5146
    %v5432 = vpack.c.b16 %v5150, %v5147
    %v5433 = vpack.c.b16 %v5154, %v5151
    %v5434 = vpack.c.b16 %v5155, %v5152
    %v5435 = vpack.c.b16 %v5156, %v5153
    %v5436 = vpack.c.b16 %v5160, %v5157
    %v5437 = vpack.c.b16 %v5161, %v5158
    %v5438 = vpack.c.b16 %v5162, %v5159
    %v5439 = vpack.c.b16 %v5166, %v5163
    %v5440 = vpack.c.b16 %v5167, %v5164
    %v5441 = vpack.c.b16 %v5168, %v5165
    %v5442 = vpack.c.b16 %v5172, %v5169
    %v5443 = vpack.c.b16 %v5173, %v5170
    %v5444 = vpack.c.b16 %v5174, %v5171
    %v5445 = vpack.c.b16 %v5178, %v5175
    %v5446 = vpack.c.b16 %v5179, %v5176
    %v5447 = vpack.c.b16 %v5180, %v5177
    %v5448 = vpack.c.b16 %v5184, %v5181
    %v5449 = vpack.c.b16 %v5185, %v5182
    %v5450 = vpack.c.b16 %v5186, %v5183
    %v5451 = vpack.c.b16 %v5190, %v5187
    %v5452 = vpack.c.b16 %v5191, %v5188
    %v5453 = vpack.c.b16 %v5192, %v5189
    %v5454 = vpack.c.b16 %v5196, %v5193
    %v5455 = vpack.c.b16 %v5197, %v5194
    %v5456 = vpack.c.b16 %v5198, %v5195
    %v5457 = vpack.c.b16 %v5202, %v5199
    %v5458 = vpack.c.b16 %v5203, %v5200
    %v5459 = vpack.c.b16 %v5204, %v5201
    %v5460 = vpack.c.b16 %v5208, %v5205
    %v5461 = vpack.c.b16 %v5209, %v5206
    %v5462 = vpack.c.b16 %v5210, %v5207
    %v5463 = vpack.c.b16 %v5214, %v5211
    %v5464 = vpack.c.b16 %v5215, %v5212
    %v5465 = vpack.c.b16 %v5216, %v5213
    %v5466 = vpack.c.b16 %v5220, %v5217
    %v5467 = vpack.c.b16 %v5221, %v5218
    %v5468 = vpack.c.b16 %v5222, %v5219
    %v5469 = vpack.c.b16 %v5226, %v5223
    %v5470 = vpack.c.b16 %v5227, %v5224
    %v5471 = vpack.c.b16 %v5228, %v5225
    %v5472 = vpack.c.b16 %v5232, %v5229
    %v5473 = vpack.c.b16 %v5233, %v5230
    %v5474 = vpack.c.b16 %v5234, %v5231
    %v5475 = vpack.c.b16 %v5238, %v5235
    %v5476 = vpack.c.b16 %v5239, %v5236
    %v5477 = vpack.c.b16 %v5240, %v5237
    %v5478 = vpack.c.b16 %v5244, %v5241
    %v5479 = vpack.c.b16 %v5245, %v5242
    %v5480 = vpack.c.b16 %v5246, %v5243
    %v5481 = vpack.c.b16 %v5250, %v5247
    %v5482 = vpack.c.b16 %v5251, %v5248
    %v5483 = vpack.c.b16 %v5252, %v5249
    %v5484 = vpack.c.b16 %v5256, %v5253
    %v5485 = vpack.c.b16 %v5257, %v5254
    %v5486 = vpack.c.b16 %v5258, %v5255
    %v5487 = vpack.c.b16 %v5262, %v5259
    %v5488 = vpack.c.b16 %v5263, %v5260
    %v5489 = vpack.c.b16 %v5264, %v5261
    %v5490 = vpack.c.b16 %v5268, %v5265
    %v5491 = vpack.c.b16 %v5269, %v5266
    %v5492 = vpack.c.b16 %v5270, %v5267
    %v5493 = vpack.c.b16 %v5274, %v5271
    %v5494 = vpack.c.b16 %v5275, %v5272
    %v5495 = vpack.c.b16 %v5276, %v5273
    %v5496 = vpack.c.b16 %v5280, %v5277
    %v5497 = vpack.c.b16 %v5281, %v5278
    %v5498 = vpack.c.b16 %v5282, %v5279
    %v5499 = vpack.c.b16 %v5286, %v5283
    %v5500 = vpack.c.b16 %v5287, %v5284
    %v5501 = vpack.c.b16 %v5288, %v5285
    %v5502 = vpack.c.b16 %v5292, %v5289
    %v5503 = vpack.c.b16 %v5293, %v5290
    %v5504 = vpack.c.b16 %v5294, %v5291
    %v5505 = vpack.c.b16 %v5298, %v5295
    %v5506 = vpack.c.b16 %v5299, %v5296
    %v5507 = vpack.c.b16 %v5300, %v5297
    %v5508 = vpack.c.b16 %v5304, %v5301
    %v5509 = vpack.c.b16 %v5305, %v5302
    %v5510 = vpack.c.b16 %v5306, %v5303
    %v5511 = vpack.c.b16 %v5310, %v5307
    %v5512 = vpack.c.b16 %v5311, %v5308
    %v5513 = vpack.c.b16 %v5312, %v5309
    %v5514 = vpack.c.b16 %v5316, %v5313
    %v5515 = vpack.c.b16 %v5317, %v5314
    %v5516 = vpack.c.b16 %v5318, %v5315
    %v5517 = vpack.c.b16 %v5322, %v5319
    %v5518 = vpack.c.b16 %v5323, %v5320
    %v5519 = vpack.c.b16 %v5324, %v5321
    %v5520 = vpack.c.b16 %v5328, %v5325
    %v5521 = vpack.c.b16 %v5329, %v5326
    %v5522 = vpack.c.b16 %v5330, %v5327
    %v5523 = vpack.c.b16 %v5334, %v5331
    %v5524 = vpack.c.b16 %v5335, %v5332
    %v5525 = vpack.c.b16 %v5336, %v5333
    %v5526 = vpack.c.b16 %v5340, %v5337
    %v5527 = vpack.c.b16 %v5341, %v5338
    %v5528 = vpack.c.b16 %v5342, %v5339
    %v5529 = vpack.c.b16 %v5346, %v5343
    %v5530 = vpack.c.b16 %v5347, %v5344
    %v5531 = vpack.c.b16 %v5348, %v5345
    %v5532 = vpack.c.b16 %v5352, %v5349
    %v5533 = vpack.c.b16 %v5353, %v5350
    %v5534 = vpack.c.b16 %v5354, %v5351
    %v5535 = vpack.c.b16 %v5358, %v5355
    %v5536 = vpack.c.b16 %v5359, %v5356
    %v5537 = vpack.c.b16 %v5360, %v5357
    %v5538 = vpack.c.b16 %v5364, %v5361
    %v5539 = vpack.c.b16 %v5365, %v5362
    %v5540 = vpack.c.b16 %v5366, %v5363
    %v5541 = vpack.c.b16 %v5370, %v5367
    %v5542 = vpack.c.b16 %v5371, %v5368
    %v5543 = vpack.c.b16 %v5372, %v5369
    %v5544 = vpack.c.b16 %v5376, %v5373
    %v5545 = vpack.c.b16 %v5377, %v5374
    %v5546 = vpack.c.b16 %v5378, %v5375
    %v5547 = vpack.c.b16 %v5382, %v5379
    %v5548 = vpack.c.b16 %v5383, %v5380
    %v5549 = vpack.c.b16 %v5384, %v5381
    %v5550 = vpack.c.b16 %v5388, %v5385
    %v5551 = vpack.c.b16 %v5389, %v5386
    %v5552 = vpack.c.b16 %v5390, %v5387
    %v5553 = vpack.c.b16 %v5394, %v5391
    %v5554 = vpack.c.b16 %v5395, %v5392
    %v5555 = vpack.c.b16 %v5396, %v5393
    %v5556 = vpack.c.b16 %v5400, %v5397
    %v5557 = vpack.c.b16 %v5401, %v5398
    %v5558 = vpack.c.b16 %v5402, %v5399
    %v5559 = vpack.c.b16 %v5406, %v5403
    %v5560 = vpack.c.b16 %v5407, %v5404
    %v5561 = vpack.c.b16 %v5408, %v5405
    %v5562 = vpack.c.b16 %v5412, %v5409
    %v5563 = vpack.c.b16 %v5413, %v5410
    %v5564 = vpack.c.b16 %v5414, %v5411
    %v5565 = vpack.c.b16 %v5418, %v5415
    %v5566 = vpack.c.b16 %v5419, %v5416
    %v5567 = vpack.c.b16 %v5420, %v5417
    %v5568 = vpack.c.b16 %v5424, %v5421
    %v5569 = vpack.c.b16 %v5425, %v5422
    %v5570 = vpack.c.b16 %v5426, %v5423
    %5715 = vmatpush.bf16.msra.mxu0 %v5448
    %5716 = vmatpush.bf16.msra.mxu0 %v5445
    %5717 = vmatpush.bf16.msra.mxu0 %v5442
    %5718 = vmatpush.bf16.msra.mxu0 %v5439
    %5719 = vmatpush.bf16.msra.mxu0 %v5436
    %5720 = vmatpush.bf16.msra.mxu0 %v5433
    %5721 = vmatpush.bf16.msra.mxu0 %v5430
    %5722 = vmatpush.bf16.msra.mxu0 %v5427
    %5723 = vmatmul.bf16.gmra.mxu0 %v4935
    %v5724 = vpop.f32.mrf.mxu0
    %v5725 = vadd.f32 %v4898, %v5724
    %v5726 = vpop.f32.mrf.mxu0
    %5727 = vdwg.mxu0
    %5728 = vmatpush.bf16.msra.mxu0 %v5472
    %5729 = vmatpush.bf16.msra.mxu0 %v5469
    %5730 = vmatpush.bf16.msra.mxu0 %v5466
    %5731 = vmatpush.bf16.msra.mxu0 %v5463
    %5732 = vmatpush.bf16.msra.mxu0 %v5460
    %5733 = vmatpush.bf16.msra.mxu0 %v5457
    %5734 = vmatpush.bf16.msra.mxu0 %v5454
    %5735 = vmatpush.bf16.msra.mxu0 %v5451
    %5736 = vmatmul.bf16.gmra.mxu0 %v4936
    %v5737 = vpop.f32.mrf.mxu0
    %v5738 = vadd.f32 %v5725, %v5737
    %v5739 = vpop.f32.mrf.mxu0
    %5740 = vdwg.mxu0
    %5741 = vmatpush.bf16.msra.mxu0 %v5496
    %5742 = vmatpush.bf16.msra.mxu0 %v5493
    %5743 = vmatpush.bf16.msra.mxu0 %v5490
    %5744 = vmatpush.bf16.msra.mxu0 %v5487
    %5745 = vmatpush.bf16.msra.mxu0 %v5484
    %5746 = vmatpush.bf16.msra.mxu0 %v5481
    %5747 = vmatpush.bf16.msra.mxu0 %v5478
    %5748 = vmatpush.bf16.msra.mxu0 %v5475
    %5749 = vmatmul.bf16.gmra.mxu0 %v4937
    %v5750 = vpop.f32.mrf.mxu0
    %v5751 = vadd.f32 %v5738, %v5750
    %v5752 = vpop.f32.mrf.mxu0
    %5753 = vdwg.mxu0
    %5754 = vmatpush.bf16.msra.mxu0 %v5520
    %5755 = vmatpush.bf16.msra.mxu0 %v5517
    %5756 = vmatpush.bf16.msra.mxu0 %v5514
    %5757 = vmatpush.bf16.msra.mxu0 %v5511
    %5758 = vmatpush.bf16.msra.mxu0 %v5508
    %5759 = vmatpush.bf16.msra.mxu0 %v5505
    %5760 = vmatpush.bf16.msra.mxu0 %v5502
    %5761 = vmatpush.bf16.msra.mxu0 %v5499
    %5762 = vmatmul.bf16.gmra.mxu0 %v4938
    %v5763 = vpop.f32.mrf.mxu0
    %v5764 = vadd.f32 %v5751, %v5763
    %v5765 = vpop.f32.mrf.mxu0
    %5766 = vdwg.mxu0
    %5767 = vmatpush.bf16.msra.mxu0 %v5544
    %5768 = vmatpush.bf16.msra.mxu0 %v5541
    %5769 = vmatpush.bf16.msra.mxu0 %v5538
    %5770 = vmatpush.bf16.msra.mxu0 %v5535
    %5771 = vmatpush.bf16.msra.mxu0 %v5532
    %5772 = vmatpush.bf16.msra.mxu0 %v5529
    %5773 = vmatpush.bf16.msra.mxu0 %v5526
    %5774 = vmatpush.bf16.msra.mxu0 %v5523
    %5775 = vmatmul.bf16.gmra.mxu0 %v4939
    %v5776 = vpop.f32.mrf.mxu0
    %v5777 = vadd.f32 %v5764, %v5776
    %v5778 = vpop.f32.mrf.mxu0
    %5779 = vdwg.mxu0
    %5780 = vmatpush.bf16.msra.mxu0 %v5568
    %5781 = vmatpush.bf16.msra.mxu0 %v5565
    %5782 = vmatpush.bf16.msra.mxu0 %v5562
    %5783 = vmatpush.bf16.msra.mxu0 %v5559
    %5784 = vmatpush.bf16.msra.mxu0 %v5556
    %5785 = vmatpush.bf16.msra.mxu0 %v5553
    %5786 = vmatpush.bf16.msra.mxu0 %v5550
    %5787 = vmatpush.bf16.msra.mxu0 %v5547
    %5788 = vmatmul.bf16.gmra.mxu0 %v4940
    %v5789 = vpop.f32.mrf.mxu0
    %v5790 = vadd.f32 %v5777, %v5789
    %v5791 = vpop.f32.mrf.mxu0
    %5792 = vdwg.mxu0
    %5793 = vmatpush.bf16.msra.mxu0 %v5449
    %5794 = vmatpush.bf16.msra.mxu0 %v5446
    %5795 = vmatpush.bf16.msra.mxu0 %v5443
    %5796 = vmatpush.bf16.msra.mxu0 %v5440
    %5797 = vmatpush.bf16.msra.mxu0 %v5437
    %5798 = vmatpush.bf16.msra.mxu0 %v5434
    %5799 = vmatpush.bf16.msra.mxu0 %v5431
    %5800 = vmatpush.bf16.msra.mxu0 %v5428
    %5801 = vmatmul.bf16.gmra.mxu0 %v4935
    %v5802 = vpop.f32.mrf.mxu0
    %v5803 = vadd.f32 %v4899, %v5802
    %v5804 = vpop.f32.mrf.mxu0
    %5805 = vdwg.mxu0
    %5806 = vmatpush.bf16.msra.mxu0 %v5473
    %5807 = vmatpush.bf16.msra.mxu0 %v5470
    %5808 = vmatpush.bf16.msra.mxu0 %v5467
    %5809 = vmatpush.bf16.msra.mxu0 %v5464
    %5810 = vmatpush.bf16.msra.mxu0 %v5461
    %5811 = vmatpush.bf16.msra.mxu0 %v5458
    %5812 = vmatpush.bf16.msra.mxu0 %v5455
    %5813 = vmatpush.bf16.msra.mxu0 %v5452
    %5814 = vmatmul.bf16.gmra.mxu0 %v4936
    %v5815 = vpop.f32.mrf.mxu0
    %v5816 = vadd.f32 %v5803, %v5815
    %v5817 = vpop.f32.mrf.mxu0
    %5818 = vdwg.mxu0
    %5819 = vmatpush.bf16.msra.mxu0 %v5497
    %5820 = vmatpush.bf16.msra.mxu0 %v5494
    %5821 = vmatpush.bf16.msra.mxu0 %v5491
    %5822 = vmatpush.bf16.msra.mxu0 %v5488
    %5823 = vmatpush.bf16.msra.mxu0 %v5485
    %5824 = vmatpush.bf16.msra.mxu0 %v5482
    %5825 = vmatpush.bf16.msra.mxu0 %v5479
    %5826 = vmatpush.bf16.msra.mxu0 %v5476
    %5827 = vmatmul.bf16.gmra.mxu0 %v4937
    %v5828 = vpop.f32.mrf.mxu0
    %v5829 = vadd.f32 %v5816, %v5828
    %v5830 = vpop.f32.mrf.mxu0
    %5831 = vdwg.mxu0
    %5832 = vmatpush.bf16.msra.mxu0 %v5521
    %5833 = vmatpush.bf16.msra.mxu0 %v5518
    %5834 = vmatpush.bf16.msra.mxu0 %v5515
    %5835 = vmatpush.bf16.msra.mxu0 %v5512
    %5836 = vmatpush.bf16.msra.mxu0 %v5509
    %5837 = vmatpush.bf16.msra.mxu0 %v5506
    %5838 = vmatpush.bf16.msra.mxu0 %v5503
    %5839 = vmatpush.bf16.msra.mxu0 %v5500
    %5840 = vmatmul.bf16.gmra.mxu0 %v4938
    %v5841 = vpop.f32.mrf.mxu0
    %v5842 = vadd.f32 %v5829, %v5841
    %v5843 = vpop.f32.mrf.mxu0
    %5844 = vdwg.mxu0
    %5845 = vmatpush.bf16.msra.mxu0 %v5545
    %5846 = vmatpush.bf16.msra.mxu0 %v5542
    %5847 = vmatpush.bf16.msra.mxu0 %v5539
    %5848 = vmatpush.bf16.msra.mxu0 %v5536
    %5849 = vmatpush.bf16.msra.mxu0 %v5533
    %5850 = vmatpush.bf16.msra.mxu0 %v5530
    %5851 = vmatpush.bf16.msra.mxu0 %v5527
    %5852 = vmatpush.bf16.msra.mxu0 %v5524
    %5853 = vmatmul.bf16.gmra.mxu0 %v4939
    %v5854 = vpop.f32.mrf.mxu0
    %v5855 = vadd.f32 %v5842, %v5854
    %v5856 = vpop.f32.mrf.mxu0
    %5857 = vdwg.mxu0
    %5858 = vmatpush.bf16.msra.mxu0 %v5569
    %5859 = vmatpush.bf16.msra.mxu0 %v5566
    %5860 = vmatpush.bf16.msra.mxu0 %v5563
    %5861 = vmatpush.bf16.msra.mxu0 %v5560
    %5862 = vmatpush.bf16.msra.mxu0 %v5557
    %5863 = vmatpush.bf16.msra.mxu0 %v5554
    %5864 = vmatpush.bf16.msra.mxu0 %v5551
    %5865 = vmatpush.bf16.msra.mxu0 %v5548
    %5866 = vmatmul.bf16.gmra.mxu0 %v4940
    %v5867 = vpop.f32.mrf.mxu0
    %v5868 = vadd.f32 %v5855, %v5867
    %v5869 = vpop.f32.mrf.mxu0
    %5870 = vdwg.mxu0
    %5871 = vmatpush.bf16.msra.mxu0 %v5450
    %5872 = vmatpush.bf16.msra.mxu0 %v5447
    %5873 = vmatpush.bf16.msra.mxu0 %v5444
    %5874 = vmatpush.bf16.msra.mxu0 %v5441
    %5875 = vmatpush.bf16.msra.mxu0 %v5438
    %5876 = vmatpush.bf16.msra.mxu0 %v5435
    %5877 = vmatpush.bf16.msra.mxu0 %v5432
    %5878 = vmatpush.bf16.msra.mxu0 %v5429
    %5879 = vmatmul.bf16.gmra.mxu0 %v4935
    %v5880 = vpop.f32.mrf.mxu0
    %v5881 = vadd.f32 %v4900, %v5880
    %v5882 = vpop.f32.mrf.mxu0
    %5883 = vdwg.mxu0
    %5884 = vmatpush.bf16.msra.mxu0 %v5474
    %5885 = vmatpush.bf16.msra.mxu0 %v5471
    %5886 = vmatpush.bf16.msra.mxu0 %v5468
    %5887 = vmatpush.bf16.msra.mxu0 %v5465
    %5888 = vmatpush.bf16.msra.mxu0 %v5462
    %5889 = vmatpush.bf16.msra.mxu0 %v5459
    %5890 = vmatpush.bf16.msra.mxu0 %v5456
    %5891 = vmatpush.bf16.msra.mxu0 %v5453
    %5892 = vmatmul.bf16.gmra.mxu0 %v4936
    %v5893 = vpop.f32.mrf.mxu0
    %v5894 = vadd.f32 %v5881, %v5893
    %v5895 = vpop.f32.mrf.mxu0
    %5896 = vdwg.mxu0
    %5897 = vmatpush.bf16.msra.mxu0 %v5498
    %5898 = vmatpush.bf16.msra.mxu0 %v5495
    %5899 = vmatpush.bf16.msra.mxu0 %v5492
    %5900 = vmatpush.bf16.msra.mxu0 %v5489
    %5901 = vmatpush.bf16.msra.mxu0 %v5486
    %5902 = vmatpush.bf16.msra.mxu0 %v5483
    %5903 = vmatpush.bf16.msra.mxu0 %v5480
    %5904 = vmatpush.bf16.msra.mxu0 %v5477
    %5905 = vmatmul.bf16.gmra.mxu0 %v4937
    %v5906 = vpop.f32.mrf.mxu0
    %v5907 = vadd.f32 %v5894, %v5906
    %v5908 = vpop.f32.mrf.mxu0
    %5909 = vdwg.mxu0
    %5910 = vmatpush.bf16.msra.mxu0 %v5522
    %5911 = vmatpush.bf16.msra.mxu0 %v5519
    %5912 = vmatpush.bf16.msra.mxu0 %v5516
    %5913 = vmatpush.bf16.msra.mxu0 %v5513
    %5914 = vmatpush.bf16.msra.mxu0 %v5510
    %5915 = vmatpush.bf16.msra.mxu0 %v5507
    %5916 = vmatpush.bf16.msra.mxu0 %v5504
    %5917 = vmatpush.bf16.msra.mxu0 %v5501
    %5918 = vmatmul.bf16.gmra.mxu0 %v4938
    %v5919 = vpop.f32.mrf.mxu0
    %v5920 = vadd.f32 %v5907, %v5919
    %v5921 = vpop.f32.mrf.mxu0
    %5922 = vdwg.mxu0
    %5923 = vmatpush.bf16.msra.mxu0 %v5546
    %5924 = vmatpush.bf16.msra.mxu0 %v5543
    %5925 = vmatpush.bf16.msra.mxu0 %v5540
    %5926 = vmatpush.bf16.msra.mxu0 %v5537
    %5927 = vmatpush.bf16.msra.mxu0 %v5534
    %5928 = vmatpush.bf16.msra.mxu0 %v5531
    %5929 = vmatpush.bf16.msra.mxu0 %v5528
    %5930 = vmatpush.bf16.msra.mxu0 %v5525
    %5931 = vmatmul.bf16.gmra.mxu0 %v4939
    %v5932 = vpop.f32.mrf.mxu0
    %v5933 = vadd.f32 %v5920, %v5932
    %v5934 = vpop.f32.mrf.mxu0
    %5935 = vdwg.mxu0
    %5936 = vmatpush.bf16.msra.mxu0 %v5570
    %5937 = vmatpush.bf16.msra.mxu0 %v5567
    %5938 = vmatpush.bf16.msra.mxu0 %v5564
    %5939 = vmatpush.bf16.msra.mxu0 %v5561
    %5940 = vmatpush.bf16.msra.mxu0 %v5558
    %5941 = vmatpush.bf16.msra.mxu0 %v5555
    %5942 = vmatpush.bf16.msra.mxu0 %v5552
    %5943 = vmatpush.bf16.msra.mxu0 %v5549
    %5944 = vmatmul.bf16.gmra.mxu0 %v4940
    %v5945 = vpop.f32.mrf.mxu0
    %v5946 = vadd.f32 %v5933, %v5945
    %v5947 = vpop.f32.mrf.mxu0
    %5948 = vdwg.mxu0
    %v5952 = vrot.slane %v5868, 6
    %v5953 = vrot.slane %v5946, 4
    %vm5954 = vcmask 1041408
    %v5955 = vsel %vm5954, %v5790, %v5952
    %vm5956 = vcmask 1043456
    %v5957 = vsel %vm5956, %v5955, %v5953
    %5959 = vst [vmem:[%s7] sm:$0x3f] %v5957
    // Predicated region
    $region54: #{leaves_gpt_net_forward.1} parent=1 // pred_check
      _
    $region55: #{leaves_gpt_net_forward.1} parent=1 // pred_check_branch
      %5961 = sbr.rel (0) target = $region57
    $region56: #{leaves_gpt_net_forward.1} parent=1 // pred_region
      _
    $region57: #{leaves_gpt_net_forward.1} parent=1 // pred_fallthru
      _
    // Predicated region
    $region58: #{leaves_gpt_net_forward.1} parent=1 // pred_check
      _
    $region59: #{leaves_gpt_net_forward.1} parent=1 // pred_check_branch
      %5963 = sbr.rel (0) target = $region61
    $region60: #{leaves_gpt_net_forward.1} parent=1 // pred_region
      _
    $region61: #{leaves_gpt_net_forward.1} parent=1 // pred_fallthru
      _
    %5964 = vsyncpa [#allocation3], 1
    %5965 = vsyncpa [#allocation5], 1
    %5966 = vsyncpa [#allocation8], 1
    %5967 = vsyncpa [#allocation11], 1

</llo_original>
